<compile_context>
chip_gen: v7x
topology: tpu7x:2x2x1
jax: 0.10.0
libtpu: 0.0.40
codegen_flags: <defaults>
</compile_context>

<pallas_src>
import math

import jax
import jax.numpy as jnp
from jax import lax
from jax.experimental import pallas as pl
from jax.experimental.pallas import tpu as pltpu


_VMEM = pl.BlockSpec(memory_space=pltpu.MemorySpace.VMEM)

# Packed gate position p -> original nn.LSTM gate index (i=0, f=1, g=2, o=3).
# Packed layout is [i, f, o, g] so the three sigmoid gates are lane-contiguous.
_GATE_ORDER = (0, 1, 3, 2)


# ----------------------------------------------------------------------------
# Fused Pallas kernel: 3 x bidirectional LSTM layers + fc head
# ----------------------------------------------------------------------------
def make_fused_kernel(layer_num, T, B, H):
    """Build the fused kernel for fixed static shapes.

    Kernel ref order:
      x2_ref [T*B, 2*D]                       (doubled input: [x | reverse_time(x)])
      for each layer l: wih2 [2*Din, 8H], b_cat [1, 8H], whh_bd [2H, 8H]
      gamma [1,2H], beta [1,2H], w1 [2H,2H], b1 [1,2H], w2 [2H,O], b2 [1,O]
      out_ref [B, O]
    """
    H2 = 2 * H
    n_in = 1 + 3 * layer_num + 6

    def kernel(*refs):
        x2_ref = refs[0]
        layer_refs = [refs[1 + 3 * l: 4 + 3 * l] for l in range(layer_num)]
        (gamma_ref, beta_ref, w1_ref, fb1_ref,
         w2_ref, fb2_ref) = refs[1 + 3 * layer_num: n_in]
        out_ref = refs[n_in]

        x2_in = x2_ref[...]                                  # [T*B, 2*Din]
        h = None
        for l, (wih_ref, bc_ref, whh_ref) in enumerate(layer_refs):
            # Hoisted input projection: one big matmul for all timesteps and
            # both directions; bias broadcast also out of the loop.  Because
            # the weight is block structured over the doubled input, row block
            # t already holds the fwd gates for time t and the bwd gates for
            # time T-1-t (no per-step select needed).
            zx_all = (jnp.dot(x2_in, wih_ref[...],
                              preferred_element_type=jnp.float32)
                      + bc_ref[...])                         # [T*B, 8H]
            whh = whh_ref[...]                               # [2H, 8H] block-diag

            collect = (l + 1 < layer_num)
            fwd_out = [None] * T                             # per OUTPUT time t
            bwd_out = [None] * T

            h = jnp.zeros((B, H2), jnp.float32)              # [h_fwd | h_bwd]
            c = jnp.zeros((B, H2), jnp.float32)              # [c_fwd | c_bwd]
            for s in range(T):                               # fully unrolled
                z = (zx_all[s * B:(s + 1) * B, :]
                     + jnp.dot(h, whh,
                               preferred_element_type=jnp.float32))   # [B, 8H]
                # sigmoid(x) = 0.5*tanh(0.5*x) + 0.5  -> single wide EUP call
                # covering the contiguous i,f,o gate lanes [0, 6H).
                sig = 0.5 * jnp.tanh(0.5 * z[:, 0:3 * H2]) + 0.5
                i = sig[:, 0:H2]
                f = sig[:, H2:2 * H2]
                o = sig[:, 2 * H2:3 * H2]
                g = jnp.tanh(z[:, 3 * H2:4 * H2])
                c = f * c + i * g
                h = o * jnp.tanh(c)
                if collect:
                    # fwd hidden belongs to output time s,
                    # bwd hidden belongs to output time T-1-s.
                    fwd_out[s] = h[:, 0:H]
                    bwd_out[T - 1 - s] = h[:, H:H2]

            if collect:
                # Assemble the next layer's doubled input [y_t | y_{T-1-t}]
                # entirely in vregs (no VMEM scratch round trip).
                rows = []
                for t in range(T):
                    rows.append(jnp.concatenate(
                        [fwd_out[t], bwd_out[t],
                         fwd_out[T - 1 - t], bwd_out[T - 1 - t]], axis=1))
                x2_in = jnp.concatenate(rows, axis=0)        # [T*B, 4H]

        # Sentence embedding = concat(final fwd h, final bwd h) == h  [B, 2H]
        s_emb = h

        # fc head: BatchNorm1d (batch stats, biased var) -> Linear -> Tanh
        #          -> Linear -> Softmax(dim=1)
        # TODO(synk): if the deployed model runs in eval(), running_mean/var
        # must be passed in instead of batch statistics.
        mean = jnp.mean(s_emb, axis=0, keepdims=True)
        diff = s_emb - mean
        var = jnp.mean(diff * diff, axis=0, keepdims=True)
        xbn = diff * lax.rsqrt(var + 1e-5) * gamma_ref[...] + beta_ref[...]
        h1 = jnp.tanh(jnp.dot(xbn, w1_ref[...],
                              preferred_element_type=jnp.float32) + fb1_ref[...])
        logits = jnp.dot(h1, w2_ref[...],
                         preferred_element_type=jnp.float32) + fb2_ref[...]
        m = jnp.max(logits, axis=1, keepdims=True)
        e = jnp.exp(logits - m)
        inv = pl.reciprocal(jnp.sum(e, axis=1, keepdims=True), approx=True)
        out_ref[...] = e * inv

    return kernel


# ----------------------------------------------------------------------------
# Parameter setup (torch-style per-direction weights, packed once at init)
# ----------------------------------------------------------------------------
def _interleave_gate_cols(mf, mb, H):
    """[.., 4H] fwd + [.., 4H] bwd (gate order i,f,g,o) -> [.., 8H] interleaved
    per-gate layout [i_f|i_b|f_f|f_b|o_f|o_b|g_f|g_b] (packed gate order i,f,o,g)."""
    blocks = []
    for g in _GATE_ORDER:
        blocks.append(mf[..., g * H:(g + 1) * H])
        blocks.append(mb[..., g * H:(g + 1) * H])
    return jnp.concatenate(blocks, axis=-1)


def _pack_layer(fwd, bwd, H, din):
    """Pack per-direction (w_ih[Din,4H], w_hh[H,4H], b[1,4H]) into the fused
    layout used by the kernel:
      wih2   [2*Din, 8H]  block structured over the doubled input
                          (rows 0:Din -> fwd-gate cols, rows Din:2Din -> bwd-gate cols)
      b_cat  [1, 8H]      interleaved combined bias
      whh_bd [2H, 8H]     block-diagonal bidirectional recurrence
    """
    b_cat = _interleave_gate_cols(fwd["b"], bwd["b"], H)               # [1, 8H]
    wih2 = jnp.zeros((2 * din, 8 * H), jnp.float32)
    whh_bd = jnp.zeros((2 * H, 8 * H), jnp.float32)
    for p, g in enumerate(_GATE_ORDER):
        cf = slice((2 * p) * H, (2 * p + 1) * H)       # fwd columns of packed gate p
        cb = slice((2 * p + 1) * H, (2 * p + 2) * H)   # bwd columns of packed gate p
        wih2 = wih2.at[0:din, cf].set(fwd["w_ih"][:, g * H:(g + 1) * H])
        wih2 = wih2.at[din:2 * din, cb].set(bwd["w_ih"][:, g * H:(g + 1) * H])
        whh_bd = whh_bd.at[0:H, cf].set(fwd["w_hh"][:, g * H:(g + 1) * H])
        whh_bd = whh_bd.at[H:2 * H, cb].set(bwd["w_hh"][:, g * H:(g + 1) * H])
    return {"wih2": wih2, "b_cat": b_cat, "whh_bd": whh_bd}


def init_params(key, input_dim, hidden_dim, output_dim, layer_num):
    params = {"lstm": []}
    k = 1.0 / math.sqrt(hidden_dim)

    def unif(key, shape, scale):
        return jax.random.uniform(key, shape, jnp.float32,
                                  minval=-scale, maxval=scale)

    for layer in range(layer_num):
        din = input_dim if layer == 0 else 2 * hidden_dim
        dirs = []
        for _ in range(2):  # forward, backward
            key, k1, k2, k3 = jax.random.split(key, 4)
            dirs.append({
                "w_ih": unif(k1, (din, 4 * hidden_dim), k),
                "w_hh": unif(k2, (hidden_dim, 4 * hidden_dim), k),
                "b": unif(k3, (1, 4 * hidden_dim), k),   # b_ih + b_hh combined
            })
        params["lstm"].append(_pack_layer(dirs[0], dirs[1], hidden_dim, din))

    key, k1, k2, k3, k4 = jax.random.split(key, 5)
    kd = 1.0 / math.sqrt(2 * hidden_dim)
    params["fc"] = {
        "gamma": jnp.ones((1, 2 * hidden_dim), jnp.float32),   # BN default init
        "beta": jnp.zeros((1, 2 * hidden_dim), jnp.float32),
        "w1": unif(k1, (2 * hidden_dim, 2 * hidden_dim), kd),
        "b1": unif(k2, (1, 2 * hidden_dim), kd),
        "w2": unif(k3, (2 * hidden_dim, output_dim), kd),
        "b2": unif(k4, (1, output_dim), kd),
    }
    return params


# ----------------------------------------------------------------------------
# Forward: one fused pallas_call for the entire model
# ----------------------------------------------------------------------------
@jax.jit
def intent_detection_forward(params, batch_data):
    """batch_data: [B, T, D] float32  ->  [B, output_dim] probabilities."""
    B, T, D = batch_data.shape
    layer_num = len(params["lstm"])
    H = params["lstm"][0]["whh_bd"].shape[0] // 2
    O = params["fc"]["w2"].shape[1]

    # time-major, doubled with the time-reversed copy so the kernel's packed
    # input projection can produce fwd/bwd gate pre-activations per row block.
    x = jnp.transpose(batch_data, (1, 0, 2)).astype(jnp.float32)    # [T, B, D]
    x_rev = x[::-1]                                                 # reversed time
    x2 = jnp.concatenate([x.reshape(T * B, D),
                          x_rev.reshape(T * B, D)], axis=1)         # [T*B, 2D]

    inputs = [x2]
    for layer in params["lstm"]:
        inputs += [layer["wih2"], layer["b_cat"], layer["whh_bd"]]
    fc = params["fc"]
    inputs += [fc["gamma"], fc["beta"], fc["w1"], fc["b1"], fc["w2"], fc["b2"]]

    kernel = make_fused_kernel(layer_num, T, B, H)

    return pl.pallas_call(
        kernel,
        out_shape=jax.ShapeDtypeStruct((B, O), jnp.float32),
        in_specs=[_VMEM] * len(inputs),
        out_specs=_VMEM,
    )(*inputs)


# ----------------------------------------------------------------------------
if __name__ == "__main__":
    # small shapes consistent with the module
    INPUT_DIM = 16     # word-embedding dim
    HIDDEN_DIM = 32    # LSTM hidden dim
    OUTPUT_DIM = 8     # number of labels
    LAYER_NUM = 3
    BATCH = 2
    SEQ = 8

    # TODO(synk): the custom `LSTM` wrapper's exact return packing is not shown;
    # a standard bidirectional nn.LSTM (zero init states) is assumed.

    key = jax.random.PRNGKey(0)
    key_x, key_p = jax.random.split(key)
    batch_data = jax.random.normal(key_x, (BATCH, SEQ, INPUT_DIM), jnp.float32)
    params = init_params(key_p, INPUT_DIM, HIDDEN_DIM, OUTPUT_DIM, LAYER_NUM)

    out = intent_detection_forward(params, batch_data)
    out = jax.block_until_ready(out)

    assert out.shape == (BATCH, OUTPUT_DIM)
    assert bool(jnp.all(jnp.isfinite(out)))
    # softmax rows sum to ~1 (approx-reciprocal used for the divide)
    assert bool(jnp.allclose(jnp.sum(out, axis=1), 1.0, atol=1e-2))
    print("KERNEL_OK")
</pallas_src>

<mosaic_0001>
module attributes {stable_mosaic.version = 11 : i64} {
  func.func @kernel(%arg0: memref<16x32xf32, #tpu.memory_space<vmem>>, %arg1: memref<32x256xf32, #tpu.memory_space<vmem>>, %arg2: memref<1x256xf32, #tpu.memory_space<vmem>>, %arg3: memref<64x256xf32, #tpu.memory_space<vmem>>, %arg4: memref<128x256xf32, #tpu.memory_space<vmem>>, %arg5: memref<1x256xf32, #tpu.memory_space<vmem>>, %arg6: memref<64x256xf32, #tpu.memory_space<vmem>>, %arg7: memref<128x256xf32, #tpu.memory_space<vmem>>, %arg8: memref<1x256xf32, #tpu.memory_space<vmem>>, %arg9: memref<64x256xf32, #tpu.memory_space<vmem>>, %arg10: memref<1x64xf32, #tpu.memory_space<vmem>>, %arg11: memref<1x64xf32, #tpu.memory_space<vmem>>, %arg12: memref<64x64xf32, #tpu.memory_space<vmem>>, %arg13: memref<1x64xf32, #tpu.memory_space<vmem>>, %arg14: memref<64x8xf32, #tpu.memory_space<vmem>>, %arg15: memref<1x8xf32, #tpu.memory_space<vmem>>, %arg16: memref<2x8xf32, #tpu.memory_space<vmem>>) attributes {dimension_semantics = [], scalar_prefetch = 0 : i64, scratch_operands = 0 : i64, tpu.core_type = #tpu.core_type<tc>} {
    %c0 = arith.constant 0 : index
    %c0_0 = arith.constant 0 : index
    %0 = vector.load %arg0[%c0, %c0_0] : memref<16x32xf32, #tpu.memory_space<vmem>>, vector<16x32xf32>
    %c0_1 = arith.constant 0 : index
    %c0_2 = arith.constant 0 : index
    %1 = vector.load %arg1[%c0_1, %c0_2] : memref<32x256xf32, #tpu.memory_space<vmem>>, vector<32x256xf32>
    %cst = arith.constant dense<0.000000e+00> : vector<16x256xf32>
    %2 = tpu.matmul %0, %1, %cst {dimension_numbers = #tpu.dot_dimension_numbers<[1], [0], [0], [1], [0, 0, 1, 1], [], []>} : vector<16x32xf32>, vector<32x256xf32>, vector<16x256xf32> -> vector<16x256xf32>
    %c0_3 = arith.constant 0 : index
    %c0_4 = arith.constant 0 : index
    %3 = vector.load %arg2[%c0_3, %c0_4] : memref<1x256xf32, #tpu.memory_space<vmem>>, vector<1x256xf32>
    %4 = vector.broadcast %3 : vector<1x256xf32> to vector<16x256xf32>
    %5 = arith.addf %2, %4 : vector<16x256xf32>
    %c0_5 = arith.constant 0 : index
    %c0_6 = arith.constant 0 : index
    %6 = vector.load %arg3[%c0_5, %c0_6] : memref<64x256xf32, #tpu.memory_space<vmem>>, vector<64x256xf32>
    %cst_7 = arith.constant 0.000000e+00 : f32
    %7 = vector.broadcast %cst_7 : f32 to vector<2x64xf32>
    %cst_8 = arith.constant 0.000000e+00 : f32
    %8 = vector.broadcast %cst_8 : f32 to vector<2x64xf32>
    %9 = vector.extract_strided_slice %5 {offsets = [0, 0], sizes = [2, 256], strides = [1, 1]} : vector<16x256xf32> to vector<2x256xf32>
    %cst_9 = arith.constant dense<0.000000e+00> : vector<2x256xf32>
    %10 = tpu.matmul %7, %6, %cst_9 {dimension_numbers = #tpu.dot_dimension_numbers<[1], [0], [0], [1], [0, 0, 1, 1], [], []>} : vector<2x64xf32>, vector<64x256xf32>, vector<2x256xf32> -> vector<2x256xf32>
    %11 = arith.addf %9, %10 : vector<2x256xf32>
    %12 = vector.extract_strided_slice %11 {offsets = [0, 0], sizes = [2, 192], strides = [1, 1]} : vector<2x256xf32> to vector<2x192xf32>
    %cst_10 = arith.constant 5.000000e-01 : f32
    %13 = vector.broadcast %cst_10 : f32 to vector<2x192xf32>
    %14 = arith.mulf %13, %12 : vector<2x192xf32>
    %15 = math.tanh %14 : vector<2x192xf32>
    %cst_11 = arith.constant 5.000000e-01 : f32
    %16 = vector.broadcast %cst_11 : f32 to vector<2x192xf32>
    %17 = arith.mulf %16, %15 : vector<2x192xf32>
    %cst_12 = arith.constant 5.000000e-01 : f32
    %18 = vector.broadcast %cst_12 : f32 to vector<2x192xf32>
    %19 = arith.addf %17, %18 : vector<2x192xf32>
    %20 = vector.extract_strided_slice %19 {offsets = [0, 0], sizes = [2, 64], strides = [1, 1]} : vector<2x192xf32> to vector<2x64xf32>
    %21 = vector.extract_strided_slice %19 {offsets = [0, 64], sizes = [2, 64], strides = [1, 1]} : vector<2x192xf32> to vector<2x64xf32>
    %22 = vector.extract_strided_slice %19 {offsets = [0, 128], sizes = [2, 64], strides = [1, 1]} : vector<2x192xf32> to vector<2x64xf32>
    %23 = vector.extract_strided_slice %11 {offsets = [0, 192], sizes = [2, 64], strides = [1, 1]} : vector<2x256xf32> to vector<2x64xf32>
    %24 = math.tanh %23 : vector<2x64xf32>
    %25 = arith.mulf %21, %8 : vector<2x64xf32>
    %26 = arith.mulf %20, %24 : vector<2x64xf32>
    %27 = arith.addf %25, %26 : vector<2x64xf32>
    %28 = math.tanh %27 : vector<2x64xf32>
    %29 = arith.mulf %22, %28 : vector<2x64xf32>
    %30 = vector.extract_strided_slice %29 {offsets = [0, 0], sizes = [2, 32], strides = [1, 1]} : vector<2x64xf32> to vector<2x32xf32>
    %31 = vector.extract_strided_slice %29 {offsets = [0, 32], sizes = [2, 32], strides = [1, 1]} : vector<2x64xf32> to vector<2x32xf32>
    %32 = vector.extract_strided_slice %5 {offsets = [2, 0], sizes = [2, 256], strides = [1, 1]} : vector<16x256xf32> to vector<2x256xf32>
    %cst_13 = arith.constant dense<0.000000e+00> : vector<2x256xf32>
    %33 = tpu.matmul %29, %6, %cst_13 {dimension_numbers = #tpu.dot_dimension_numbers<[1], [0], [0], [1], [0, 0, 1, 1], [], []>} : vector<2x64xf32>, vector<64x256xf32>, vector<2x256xf32> -> vector<2x256xf32>
    %34 = arith.addf %32, %33 : vector<2x256xf32>
    %35 = vector.extract_strided_slice %34 {offsets = [0, 0], sizes = [2, 192], strides = [1, 1]} : vector<2x256xf32> to vector<2x192xf32>
    %cst_14 = arith.constant 5.000000e-01 : f32
    %36 = vector.broadcast %cst_14 : f32 to vector<2x192xf32>
    %37 = arith.mulf %36, %35 : vector<2x192xf32>
    %38 = math.tanh %37 : vector<2x192xf32>
    %cst_15 = arith.constant 5.000000e-01 : f32
    %39 = vector.broadcast %cst_15 : f32 to vector<2x192xf32>
    %40 = arith.mulf %39, %38 : vector<2x192xf32>
    %cst_16 = arith.constant 5.000000e-01 : f32
    %41 = vector.broadcast %cst_16 : f32 to vector<2x192xf32>
    %42 = arith.addf %40, %41 : vector<2x192xf32>
    %43 = vector.extract_strided_slice %42 {offsets = [0, 0], sizes = [2, 64], strides = [1, 1]} : vector<2x192xf32> to vector<2x64xf32>
    %44 = vector.extract_strided_slice %42 {offsets = [0, 64], sizes = [2, 64], strides = [1, 1]} : vector<2x192xf32> to vector<2x64xf32>
    %45 = vector.extract_strided_slice %42 {offsets = [0, 128], sizes = [2, 64], strides = [1, 1]} : vector<2x192xf32> to vector<2x64xf32>
    %46 = vector.extract_strided_slice %34 {offsets = [0, 192], sizes = [2, 64], strides = [1, 1]} : vector<2x256xf32> to vector<2x64xf32>
    %47 = math.tanh %46 : vector<2x64xf32>
    %48 = arith.mulf %44, %27 : vector<2x64xf32>
    %49 = arith.mulf %43, %47 : vector<2x64xf32>
    %50 = arith.addf %48, %49 : vector<2x64xf32>
    %51 = math.tanh %50 : vector<2x64xf32>
    %52 = arith.mulf %45, %51 : vector<2x64xf32>
    %53 = vector.extract_strided_slice %52 {offsets = [0, 0], sizes = [2, 32], strides = [1, 1]} : vector<2x64xf32> to vector<2x32xf32>
    %54 = vector.extract_strided_slice %52 {offsets = [0, 32], sizes = [2, 32], strides = [1, 1]} : vector<2x64xf32> to vector<2x32xf32>
    %55 = vector.extract_strided_slice %5 {offsets = [4, 0], sizes = [2, 256], strides = [1, 1]} : vector<16x256xf32> to vector<2x256xf32>
    %cst_17 = arith.constant dense<0.000000e+00> : vector<2x256xf32>
    %56 = tpu.matmul %52, %6, %cst_17 {dimension_numbers = #tpu.dot_dimension_numbers<[1], [0], [0], [1], [0, 0, 1, 1], [], []>} : vector<2x64xf32>, vector<64x256xf32>, vector<2x256xf32> -> vector<2x256xf32>
    %57 = arith.addf %55, %56 : vector<2x256xf32>
    %58 = vector.extract_strided_slice %57 {offsets = [0, 0], sizes = [2, 192], strides = [1, 1]} : vector<2x256xf32> to vector<2x192xf32>
    %cst_18 = arith.constant 5.000000e-01 : f32
    %59 = vector.broadcast %cst_18 : f32 to vector<2x192xf32>
    %60 = arith.mulf %59, %58 : vector<2x192xf32>
    %61 = math.tanh %60 : vector<2x192xf32>
    %cst_19 = arith.constant 5.000000e-01 : f32
    %62 = vector.broadcast %cst_19 : f32 to vector<2x192xf32>
    %63 = arith.mulf %62, %61 : vector<2x192xf32>
    %cst_20 = arith.constant 5.000000e-01 : f32
    %64 = vector.broadcast %cst_20 : f32 to vector<2x192xf32>
    %65 = arith.addf %63, %64 : vector<2x192xf32>
    %66 = vector.extract_strided_slice %65 {offsets = [0, 0], sizes = [2, 64], strides = [1, 1]} : vector<2x192xf32> to vector<2x64xf32>
    %67 = vector.extract_strided_slice %65 {offsets = [0, 64], sizes = [2, 64], strides = [1, 1]} : vector<2x192xf32> to vector<2x64xf32>
    %68 = vector.extract_strided_slice %65 {offsets = [0, 128], sizes = [2, 64], strides = [1, 1]} : vector<2x192xf32> to vector<2x64xf32>
    %69 = vector.extract_strided_slice %57 {offsets = [0, 192], sizes = [2, 64], strides = [1, 1]} : vector<2x256xf32> to vector<2x64xf32>
    %70 = math.tanh %69 : vector<2x64xf32>
    %71 = arith.mulf %67, %50 : vector<2x64xf32>
    %72 = arith.mulf %66, %70 : vector<2x64xf32>
    %73 = arith.addf %71, %72 : vector<2x64xf32>
    %74 = math.tanh %73 : vector<2x64xf32>
    %75 = arith.mulf %68, %74 : vector<2x64xf32>
    %76 = vector.extract_strided_slice %75 {offsets = [0, 0], sizes = [2, 32], strides = [1, 1]} : vector<2x64xf32> to vector<2x32xf32>
    %77 = vector.extract_strided_slice %75 {offsets = [0, 32], sizes = [2, 32], strides = [1, 1]} : vector<2x64xf32> to vector<2x32xf32>
    %78 = vector.extract_strided_slice %5 {offsets = [6, 0], sizes = [2, 256], strides = [1, 1]} : vector<16x256xf32> to vector<2x256xf32>
    %cst_21 = arith.constant dense<0.000000e+00> : vector<2x256xf32>
    %79 = tpu.matmul %75, %6, %cst_21 {dimension_numbers = #tpu.dot_dimension_numbers<[1], [0], [0], [1], [0, 0, 1, 1], [], []>} : vector<2x64xf32>, vector<64x256xf32>, vector<2x256xf32> -> vector<2x256xf32>
    %80 = arith.addf %78, %79 : vector<2x256xf32>
    %81 = vector.extract_strided_slice %80 {offsets = [0, 0], sizes = [2, 192], strides = [1, 1]} : vector<2x256xf32> to vector<2x192xf32>
    %cst_22 = arith.constant 5.000000e-01 : f32
    %82 = vector.broadcast %cst_22 : f32 to vector<2x192xf32>
    %83 = arith.mulf %82, %81 : vector<2x192xf32>
    %84 = math.tanh %83 : vector<2x192xf32>
    %cst_23 = arith.constant 5.000000e-01 : f32
    %85 = vector.broadcast %cst_23 : f32 to vector<2x192xf32>
    %86 = arith.mulf %85, %84 : vector<2x192xf32>
    %cst_24 = arith.constant 5.000000e-01 : f32
    %87 = vector.broadcast %cst_24 : f32 to vector<2x192xf32>
    %88 = arith.addf %86, %87 : vector<2x192xf32>
    %89 = vector.extract_strided_slice %88 {offsets = [0, 0], sizes = [2, 64], strides = [1, 1]} : vector<2x192xf32> to vector<2x64xf32>
    %90 = vector.extract_strided_slice %88 {offsets = [0, 64], sizes = [2, 64], strides = [1, 1]} : vector<2x192xf32> to vector<2x64xf32>
    %91 = vector.extract_strided_slice %88 {offsets = [0, 128], sizes = [2, 64], strides = [1, 1]} : vector<2x192xf32> to vector<2x64xf32>
    %92 = vector.extract_strided_slice %80 {offsets = [0, 192], sizes = [2, 64], strides = [1, 1]} : vector<2x256xf32> to vector<2x64xf32>
    %93 = math.tanh %92 : vector<2x64xf32>
    %94 = arith.mulf %90, %73 : vector<2x64xf32>
    %95 = arith.mulf %89, %93 : vector<2x64xf32>
    %96 = arith.addf %94, %95 : vector<2x64xf32>
    %97 = math.tanh %96 : vector<2x64xf32>
    %98 = arith.mulf %91, %97 : vector<2x64xf32>
    %99 = vector.extract_strided_slice %98 {offsets = [0, 0], sizes = [2, 32], strides = [1, 1]} : vector<2x64xf32> to vector<2x32xf32>
    %100 = vector.extract_strided_slice %98 {offsets = [0, 32], sizes = [2, 32], strides = [1, 1]} : vector<2x64xf32> to vector<2x32xf32>
    %101 = vector.extract_strided_slice %5 {offsets = [8, 0], sizes = [2, 256], strides = [1, 1]} : vector<16x256xf32> to vector<2x256xf32>
    %cst_25 = arith.constant dense<0.000000e+00> : vector<2x256xf32>
    %102 = tpu.matmul %98, %6, %cst_25 {dimension_numbers = #tpu.dot_dimension_numbers<[1], [0], [0], [1], [0, 0, 1, 1], [], []>} : vector<2x64xf32>, vector<64x256xf32>, vector<2x256xf32> -> vector<2x256xf32>
    %103 = arith.addf %101, %102 : vector<2x256xf32>
    %104 = vector.extract_strided_slice %103 {offsets = [0, 0], sizes = [2, 192], strides = [1, 1]} : vector<2x256xf32> to vector<2x192xf32>
    %cst_26 = arith.constant 5.000000e-01 : f32
    %105 = vector.broadcast %cst_26 : f32 to vector<2x192xf32>
    %106 = arith.mulf %105, %104 : vector<2x192xf32>
    %107 = math.tanh %106 : vector<2x192xf32>
    %cst_27 = arith.constant 5.000000e-01 : f32
    %108 = vector.broadcast %cst_27 : f32 to vector<2x192xf32>
    %109 = arith.mulf %108, %107 : vector<2x192xf32>
    %cst_28 = arith.constant 5.000000e-01 : f32
    %110 = vector.broadcast %cst_28 : f32 to vector<2x192xf32>
    %111 = arith.addf %109, %110 : vector<2x192xf32>
    %112 = vector.extract_strided_slice %111 {offsets = [0, 0], sizes = [2, 64], strides = [1, 1]} : vector<2x192xf32> to vector<2x64xf32>
    %113 = vector.extract_strided_slice %111 {offsets = [0, 64], sizes = [2, 64], strides = [1, 1]} : vector<2x192xf32> to vector<2x64xf32>
    %114 = vector.extract_strided_slice %111 {offsets = [0, 128], sizes = [2, 64], strides = [1, 1]} : vector<2x192xf32> to vector<2x64xf32>
    %115 = vector.extract_strided_slice %103 {offsets = [0, 192], sizes = [2, 64], strides = [1, 1]} : vector<2x256xf32> to vector<2x64xf32>
    %116 = math.tanh %115 : vector<2x64xf32>
    %117 = arith.mulf %113, %96 : vector<2x64xf32>
    %118 = arith.mulf %112, %116 : vector<2x64xf32>
    %119 = arith.addf %117, %118 : vector<2x64xf32>
    %120 = math.tanh %119 : vector<2x64xf32>
    %121 = arith.mulf %114, %120 : vector<2x64xf32>
    %122 = vector.extract_strided_slice %121 {offsets = [0, 0], sizes = [2, 32], strides = [1, 1]} : vector<2x64xf32> to vector<2x32xf32>
    %123 = vector.extract_strided_slice %121 {offsets = [0, 32], sizes = [2, 32], strides = [1, 1]} : vector<2x64xf32> to vector<2x32xf32>
    %124 = vector.extract_strided_slice %5 {offsets = [10, 0], sizes = [2, 256], strides = [1, 1]} : vector<16x256xf32> to vector<2x256xf32>
    %cst_29 = arith.constant dense<0.000000e+00> : vector<2x256xf32>
    %125 = tpu.matmul %121, %6, %cst_29 {dimension_numbers = #tpu.dot_dimension_numbers<[1], [0], [0], [1], [0, 0, 1, 1], [], []>} : vector<2x64xf32>, vector<64x256xf32>, vector<2x256xf32> -> vector<2x256xf32>
    %126 = arith.addf %124, %125 : vector<2x256xf32>
    %127 = vector.extract_strided_slice %126 {offsets = [0, 0], sizes = [2, 192], strides = [1, 1]} : vector<2x256xf32> to vector<2x192xf32>
    %cst_30 = arith.constant 5.000000e-01 : f32
    %128 = vector.broadcast %cst_30 : f32 to vector<2x192xf32>
    %129 = arith.mulf %128, %127 : vector<2x192xf32>
    %130 = math.tanh %129 : vector<2x192xf32>
    %cst_31 = arith.constant 5.000000e-01 : f32
    %131 = vector.broadcast %cst_31 : f32 to vector<2x192xf32>
    %132 = arith.mulf %131, %130 : vector<2x192xf32>
    %cst_32 = arith.constant 5.000000e-01 : f32
    %133 = vector.broadcast %cst_32 : f32 to vector<2x192xf32>
    %134 = arith.addf %132, %133 : vector<2x192xf32>
    %135 = vector.extract_strided_slice %134 {offsets = [0, 0], sizes = [2, 64], strides = [1, 1]} : vector<2x192xf32> to vector<2x64xf32>
    %136 = vector.extract_strided_slice %134 {offsets = [0, 64], sizes = [2, 64], strides = [1, 1]} : vector<2x192xf32> to vector<2x64xf32>
    %137 = vector.extract_strided_slice %134 {offsets = [0, 128], sizes = [2, 64], strides = [1, 1]} : vector<2x192xf32> to vector<2x64xf32>
    %138 = vector.extract_strided_slice %126 {offsets = [0, 192], sizes = [2, 64], strides = [1, 1]} : vector<2x256xf32> to vector<2x64xf32>
    %139 = math.tanh %138 : vector<2x64xf32>
    %140 = arith.mulf %136, %119 : vector<2x64xf32>
    %141 = arith.mulf %135, %139 : vector<2x64xf32>
    %142 = arith.addf %140, %141 : vector<2x64xf32>
    %143 = math.tanh %142 : vector<2x64xf32>
    %144 = arith.mulf %137, %143 : vector<2x64xf32>
    %145 = vector.extract_strided_slice %144 {offsets = [0, 0], sizes = [2, 32], strides = [1, 1]} : vector<2x64xf32> to vector<2x32xf32>
    %146 = vector.extract_strided_slice %144 {offsets = [0, 32], sizes = [2, 32], strides = [1, 1]} : vector<2x64xf32> to vector<2x32xf32>
    %147 = vector.extract_strided_slice %5 {offsets = [12, 0], sizes = [2, 256], strides = [1, 1]} : vector<16x256xf32> to vector<2x256xf32>
    %cst_33 = arith.constant dense<0.000000e+00> : vector<2x256xf32>
    %148 = tpu.matmul %144, %6, %cst_33 {dimension_numbers = #tpu.dot_dimension_numbers<[1], [0], [0], [1], [0, 0, 1, 1], [], []>} : vector<2x64xf32>, vector<64x256xf32>, vector<2x256xf32> -> vector<2x256xf32>
    %149 = arith.addf %147, %148 : vector<2x256xf32>
    %150 = vector.extract_strided_slice %149 {offsets = [0, 0], sizes = [2, 192], strides = [1, 1]} : vector<2x256xf32> to vector<2x192xf32>
    %cst_34 = arith.constant 5.000000e-01 : f32
    %151 = vector.broadcast %cst_34 : f32 to vector<2x192xf32>
    %152 = arith.mulf %151, %150 : vector<2x192xf32>
    %153 = math.tanh %152 : vector<2x192xf32>
    %cst_35 = arith.constant 5.000000e-01 : f32
    %154 = vector.broadcast %cst_35 : f32 to vector<2x192xf32>
    %155 = arith.mulf %154, %153 : vector<2x192xf32>
    %cst_36 = arith.constant 5.000000e-01 : f32
    %156 = vector.broadcast %cst_36 : f32 to vector<2x192xf32>
    %157 = arith.addf %155, %156 : vector<2x192xf32>
    %158 = vector.extract_strided_slice %157 {offsets = [0, 0], sizes = [2, 64], strides = [1, 1]} : vector<2x192xf32> to vector<2x64xf32>
    %159 = vector.extract_strided_slice %157 {offsets = [0, 64], sizes = [2, 64], strides = [1, 1]} : vector<2x192xf32> to vector<2x64xf32>
    %160 = vector.extract_strided_slice %157 {offsets = [0, 128], sizes = [2, 64], strides = [1, 1]} : vector<2x192xf32> to vector<2x64xf32>
    %161 = vector.extract_strided_slice %149 {offsets = [0, 192], sizes = [2, 64], strides = [1, 1]} : vector<2x256xf32> to vector<2x64xf32>
    %162 = math.tanh %161 : vector<2x64xf32>
    %163 = arith.mulf %159, %142 : vector<2x64xf32>
    %164 = arith.mulf %158, %162 : vector<2x64xf32>
    %165 = arith.addf %163, %164 : vector<2x64xf32>
    %166 = math.tanh %165 : vector<2x64xf32>
    %167 = arith.mulf %160, %166 : vector<2x64xf32>
    %168 = vector.extract_strided_slice %167 {offsets = [0, 0], sizes = [2, 32], strides = [1, 1]} : vector<2x64xf32> to vector<2x32xf32>
    %169 = vector.extract_strided_slice %167 {offsets = [0, 32], sizes = [2, 32], strides = [1, 1]} : vector<2x64xf32> to vector<2x32xf32>
    %170 = vector.extract_strided_slice %5 {offsets = [14, 0], sizes = [2, 256], strides = [1, 1]} : vector<16x256xf32> to vector<2x256xf32>
    %cst_37 = arith.constant dense<0.000000e+00> : vector<2x256xf32>
    %171 = tpu.matmul %167, %6, %cst_37 {dimension_numbers = #tpu.dot_dimension_numbers<[1], [0], [0], [1], [0, 0, 1, 1], [], []>} : vector<2x64xf32>, vector<64x256xf32>, vector<2x256xf32> -> vector<2x256xf32>
    %172 = arith.addf %170, %171 : vector<2x256xf32>
    %173 = vector.extract_strided_slice %172 {offsets = [0, 0], sizes = [2, 192], strides = [1, 1]} : vector<2x256xf32> to vector<2x192xf32>
    %cst_38 = arith.constant 5.000000e-01 : f32
    %174 = vector.broadcast %cst_38 : f32 to vector<2x192xf32>
    %175 = arith.mulf %174, %173 : vector<2x192xf32>
    %176 = math.tanh %175 : vector<2x192xf32>
    %cst_39 = arith.constant 5.000000e-01 : f32
    %177 = vector.broadcast %cst_39 : f32 to vector<2x192xf32>
    %178 = arith.mulf %177, %176 : vector<2x192xf32>
    %cst_40 = arith.constant 5.000000e-01 : f32
    %179 = vector.broadcast %cst_40 : f32 to vector<2x192xf32>
    %180 = arith.addf %178, %179 : vector<2x192xf32>
    %181 = vector.extract_strided_slice %180 {offsets = [0, 0], sizes = [2, 64], strides = [1, 1]} : vector<2x192xf32> to vector<2x64xf32>
    %182 = vector.extract_strided_slice %180 {offsets = [0, 64], sizes = [2, 64], strides = [1, 1]} : vector<2x192xf32> to vector<2x64xf32>
    %183 = vector.extract_strided_slice %180 {offsets = [0, 128], sizes = [2, 64], strides = [1, 1]} : vector<2x192xf32> to vector<2x64xf32>
    %184 = vector.extract_strided_slice %172 {offsets = [0, 192], sizes = [2, 64], strides = [1, 1]} : vector<2x256xf32> to vector<2x64xf32>
    %185 = math.tanh %184 : vector<2x64xf32>
    %186 = arith.mulf %182, %165 : vector<2x64xf32>
    %187 = arith.mulf %181, %185 : vector<2x64xf32>
    %188 = arith.addf %186, %187 : vector<2x64xf32>
    %189 = math.tanh %188 : vector<2x64xf32>
    %190 = arith.mulf %183, %189 : vector<2x64xf32>
    %191 = vector.extract_strided_slice %190 {offsets = [0, 0], sizes = [2, 32], strides = [1, 1]} : vector<2x64xf32> to vector<2x32xf32>
    %192 = vector.extract_strided_slice %190 {offsets = [0, 32], sizes = [2, 32], strides = [1, 1]} : vector<2x64xf32> to vector<2x32xf32>
    %193 = tpu.concatenate %30, %192, %191, %31 in 1 : vector<2x32xf32>, vector<2x32xf32>, vector<2x32xf32>, vector<2x32xf32> -> vector<2x128xf32>
    %194 = tpu.concatenate %53, %169, %168, %54 in 1 : vector<2x32xf32>, vector<2x32xf32>, vector<2x32xf32>, vector<2x32xf32> -> vector<2x128xf32>
    %195 = tpu.concatenate %76, %146, %145, %77 in 1 : vector<2x32xf32>, vector<2x32xf32>, vector<2x32xf32>, vector<2x32xf32> -> vector<2x128xf32>
    %196 = tpu.concatenate %99, %123, %122, %100 in 1 : vector<2x32xf32>, vector<2x32xf32>, vector<2x32xf32>, vector<2x32xf32> -> vector<2x128xf32>
    %197 = tpu.concatenate %122, %100, %99, %123 in 1 : vector<2x32xf32>, vector<2x32xf32>, vector<2x32xf32>, vector<2x32xf32> -> vector<2x128xf32>
    %198 = tpu.concatenate %145, %77, %76, %146 in 1 : vector<2x32xf32>, vector<2x32xf32>, vector<2x32xf32>, vector<2x32xf32> -> vector<2x128xf32>
    %199 = tpu.concatenate %168, %54, %53, %169 in 1 : vector<2x32xf32>, vector<2x32xf32>, vector<2x32xf32>, vector<2x32xf32> -> vector<2x128xf32>
    %200 = tpu.concatenate %191, %31, %30, %192 in 1 : vector<2x32xf32>, vector<2x32xf32>, vector<2x32xf32>, vector<2x32xf32> -> vector<2x128xf32>
    %201 = tpu.concatenate %193, %194, %195, %196, %197, %198, %199, %200 in 0 : vector<2x128xf32>, vector<2x128xf32>, vector<2x128xf32>, vector<2x128xf32>, vector<2x128xf32>, vector<2x128xf32>, vector<2x128xf32>, vector<2x128xf32> -> vector<16x128xf32>
    %c0_41 = arith.constant 0 : index
    %c0_42 = arith.constant 0 : index
    %202 = vector.load %arg4[%c0_41, %c0_42] : memref<128x256xf32, #tpu.memory_space<vmem>>, vector<128x256xf32>
    %cst_43 = arith.constant dense<0.000000e+00> : vector<16x256xf32>
    %203 = tpu.matmul %201, %202, %cst_43 {dimension_numbers = #tpu.dot_dimension_numbers<[1], [0], [0], [1], [0, 0, 1, 1], [], []>} : vector<16x128xf32>, vector<128x256xf32>, vector<16x256xf32> -> vector<16x256xf32>
    %c0_44 = arith.constant 0 : index
    %c0_45 = arith.constant 0 : index
    %204 = vector.load %arg5[%c0_44, %c0_45] : memref<1x256xf32, #tpu.memory_space<vmem>>, vector<1x256xf32>
    %205 = vector.broadcast %204 : vector<1x256xf32> to vector<16x256xf32>
    %206 = arith.addf %203, %205 : vector<16x256xf32>
    %c0_46 = arith.constant 0 : index
    %c0_47 = arith.constant 0 : index
    %207 = vector.load %arg6[%c0_46, %c0_47] : memref<64x256xf32, #tpu.memory_space<vmem>>, vector<64x256xf32>
    %cst_48 = arith.constant 0.000000e+00 : f32
    %208 = vector.broadcast %cst_48 : f32 to vector<2x64xf32>
    %cst_49 = arith.constant 0.000000e+00 : f32
    %209 = vector.broadcast %cst_49 : f32 to vector<2x64xf32>
    %210 = vector.extract_strided_slice %206 {offsets = [0, 0], sizes = [2, 256], strides = [1, 1]} : vector<16x256xf32> to vector<2x256xf32>
    %cst_50 = arith.constant dense<0.000000e+00> : vector<2x256xf32>
    %211 = tpu.matmul %208, %207, %cst_50 {dimension_numbers = #tpu.dot_dimension_numbers<[1], [0], [0], [1], [0, 0, 1, 1], [], []>} : vector<2x64xf32>, vector<64x256xf32>, vector<2x256xf32> -> vector<2x256xf32>
    %212 = arith.addf %210, %211 : vector<2x256xf32>
    %213 = vector.extract_strided_slice %212 {offsets = [0, 0], sizes = [2, 192], strides = [1, 1]} : vector<2x256xf32> to vector<2x192xf32>
    %cst_51 = arith.constant 5.000000e-01 : f32
    %214 = vector.broadcast %cst_51 : f32 to vector<2x192xf32>
    %215 = arith.mulf %214, %213 : vector<2x192xf32>
    %216 = math.tanh %215 : vector<2x192xf32>
    %cst_52 = arith.constant 5.000000e-01 : f32
    %217 = vector.broadcast %cst_52 : f32 to vector<2x192xf32>
    %218 = arith.mulf %217, %216 : vector<2x192xf32>
    %cst_53 = arith.constant 5.000000e-01 : f32
    %219 = vector.broadcast %cst_53 : f32 to vector<2x192xf32>
    %220 = arith.addf %218, %219 : vector<2x192xf32>
    %221 = vector.extract_strided_slice %220 {offsets = [0, 0], sizes = [2, 64], strides = [1, 1]} : vector<2x192xf32> to vector<2x64xf32>
    %222 = vector.extract_strided_slice %220 {offsets = [0, 64], sizes = [2, 64], strides = [1, 1]} : vector<2x192xf32> to vector<2x64xf32>
    %223 = vector.extract_strided_slice %220 {offsets = [0, 128], sizes = [2, 64], strides = [1, 1]} : vector<2x192xf32> to vector<2x64xf32>
    %224 = vector.extract_strided_slice %212 {offsets = [0, 192], sizes = [2, 64], strides = [1, 1]} : vector<2x256xf32> to vector<2x64xf32>
    %225 = math.tanh %224 : vector<2x64xf32>
    %226 = arith.mulf %222, %209 : vector<2x64xf32>
    %227 = arith.mulf %221, %225 : vector<2x64xf32>
    %228 = arith.addf %226, %227 : vector<2x64xf32>
    %229 = math.tanh %228 : vector<2x64xf32>
    %230 = arith.mulf %223, %229 : vector<2x64xf32>
    %231 = vector.extract_strided_slice %230 {offsets = [0, 0], sizes = [2, 32], strides = [1, 1]} : vector<2x64xf32> to vector<2x32xf32>
    %232 = vector.extract_strided_slice %230 {offsets = [0, 32], sizes = [2, 32], strides = [1, 1]} : vector<2x64xf32> to vector<2x32xf32>
    %233 = vector.extract_strided_slice %206 {offsets = [2, 0], sizes = [2, 256], strides = [1, 1]} : vector<16x256xf32> to vector<2x256xf32>
    %cst_54 = arith.constant dense<0.000000e+00> : vector<2x256xf32>
    %234 = tpu.matmul %230, %207, %cst_54 {dimension_numbers = #tpu.dot_dimension_numbers<[1], [0], [0], [1], [0, 0, 1, 1], [], []>} : vector<2x64xf32>, vector<64x256xf32>, vector<2x256xf32> -> vector<2x256xf32>
    %235 = arith.addf %233, %234 : vector<2x256xf32>
    %236 = vector.extract_strided_slice %235 {offsets = [0, 0], sizes = [2, 192], strides = [1, 1]} : vector<2x256xf32> to vector<2x192xf32>
    %cst_55 = arith.constant 5.000000e-01 : f32
    %237 = vector.broadcast %cst_55 : f32 to vector<2x192xf32>
    %238 = arith.mulf %237, %236 : vector<2x192xf32>
    %239 = math.tanh %238 : vector<2x192xf32>
    %cst_56 = arith.constant 5.000000e-01 : f32
    %240 = vector.broadcast %cst_56 : f32 to vector<2x192xf32>
    %241 = arith.mulf %240, %239 : vector<2x192xf32>
    %cst_57 = arith.constant 5.000000e-01 : f32
    %242 = vector.broadcast %cst_57 : f32 to vector<2x192xf32>
    %243 = arith.addf %241, %242 : vector<2x192xf32>
    %244 = vector.extract_strided_slice %243 {offsets = [0, 0], sizes = [2, 64], strides = [1, 1]} : vector<2x192xf32> to vector<2x64xf32>
    %245 = vector.extract_strided_slice %243 {offsets = [0, 64], sizes = [2, 64], strides = [1, 1]} : vector<2x192xf32> to vector<2x64xf32>
    %246 = vector.extract_strided_slice %243 {offsets = [0, 128], sizes = [2, 64], strides = [1, 1]} : vector<2x192xf32> to vector<2x64xf32>
    %247 = vector.extract_strided_slice %235 {offsets = [0, 192], sizes = [2, 64], strides = [1, 1]} : vector<2x256xf32> to vector<2x64xf32>
    %248 = math.tanh %247 : vector<2x64xf32>
    %249 = arith.mulf %245, %228 : vector<2x64xf32>
    %250 = arith.mulf %244, %248 : vector<2x64xf32>
    %251 = arith.addf %249, %250 : vector<2x64xf32>
    %252 = math.tanh %251 : vector<2x64xf32>
    %253 = arith.mulf %246, %252 : vector<2x64xf32>
    %254 = vector.extract_strided_slice %253 {offsets = [0, 0], sizes = [2, 32], strides = [1, 1]} : vector<2x64xf32> to vector<2x32xf32>
    %255 = vector.extract_strided_slice %253 {offsets = [0, 32], sizes = [2, 32], strides = [1, 1]} : vector<2x64xf32> to vector<2x32xf32>
    %256 = vector.extract_strided_slice %206 {offsets = [4, 0], sizes = [2, 256], strides = [1, 1]} : vector<16x256xf32> to vector<2x256xf32>
    %cst_58 = arith.constant dense<0.000000e+00> : vector<2x256xf32>
    %257 = tpu.matmul %253, %207, %cst_58 {dimension_numbers = #tpu.dot_dimension_numbers<[1], [0], [0], [1], [0, 0, 1, 1], [], []>} : vector<2x64xf32>, vector<64x256xf32>, vector<2x256xf32> -> vector<2x256xf32>
    %258 = arith.addf %256, %257 : vector<2x256xf32>
    %259 = vector.extract_strided_slice %258 {offsets = [0, 0], sizes = [2, 192], strides = [1, 1]} : vector<2x256xf32> to vector<2x192xf32>
    %cst_59 = arith.constant 5.000000e-01 : f32
    %260 = vector.broadcast %cst_59 : f32 to vector<2x192xf32>
    %261 = arith.mulf %260, %259 : vector<2x192xf32>
    %262 = math.tanh %261 : vector<2x192xf32>
    %cst_60 = arith.constant 5.000000e-01 : f32
    %263 = vector.broadcast %cst_60 : f32 to vector<2x192xf32>
    %264 = arith.mulf %263, %262 : vector<2x192xf32>
    %cst_61 = arith.constant 5.000000e-01 : f32
    %265 = vector.broadcast %cst_61 : f32 to vector<2x192xf32>
    %266 = arith.addf %264, %265 : vector<2x192xf32>
    %267 = vector.extract_strided_slice %266 {offsets = [0, 0], sizes = [2, 64], strides = [1, 1]} : vector<2x192xf32> to vector<2x64xf32>
    %268 = vector.extract_strided_slice %266 {offsets = [0, 64], sizes = [2, 64], strides = [1, 1]} : vector<2x192xf32> to vector<2x64xf32>
    %269 = vector.extract_strided_slice %266 {offsets = [0, 128], sizes = [2, 64], strides = [1, 1]} : vector<2x192xf32> to vector<2x64xf32>
    %270 = vector.extract_strided_slice %258 {offsets = [0, 192], sizes = [2, 64], strides = [1, 1]} : vector<2x256xf32> to vector<2x64xf32>
    %271 = math.tanh %270 : vector<2x64xf32>
    %272 = arith.mulf %268, %251 : vector<2x64xf32>
    %273 = arith.mulf %267, %271 : vector<2x64xf32>
    %274 = arith.addf %272, %273 : vector<2x64xf32>
    %275 = math.tanh %274 : vector<2x64xf32>
    %276 = arith.mulf %269, %275 : vector<2x64xf32>
    %277 = vector.extract_strided_slice %276 {offsets = [0, 0], sizes = [2, 32], strides = [1, 1]} : vector<2x64xf32> to vector<2x32xf32>
    %278 = vector.extract_strided_slice %276 {offsets = [0, 32], sizes = [2, 32], strides = [1, 1]} : vector<2x64xf32> to vector<2x32xf32>
    %279 = vector.extract_strided_slice %206 {offsets = [6, 0], sizes = [2, 256], strides = [1, 1]} : vector<16x256xf32> to vector<2x256xf32>
    %cst_62 = arith.constant dense<0.000000e+00> : vector<2x256xf32>
    %280 = tpu.matmul %276, %207, %cst_62 {dimension_numbers = #tpu.dot_dimension_numbers<[1], [0], [0], [1], [0, 0, 1, 1], [], []>} : vector<2x64xf32>, vector<64x256xf32>, vector<2x256xf32> -> vector<2x256xf32>
    %281 = arith.addf %279, %280 : vector<2x256xf32>
    %282 = vector.extract_strided_slice %281 {offsets = [0, 0], sizes = [2, 192], strides = [1, 1]} : vector<2x256xf32> to vector<2x192xf32>
    %cst_63 = arith.constant 5.000000e-01 : f32
    %283 = vector.broadcast %cst_63 : f32 to vector<2x192xf32>
    %284 = arith.mulf %283, %282 : vector<2x192xf32>
    %285 = math.tanh %284 : vector<2x192xf32>
    %cst_64 = arith.constant 5.000000e-01 : f32
    %286 = vector.broadcast %cst_64 : f32 to vector<2x192xf32>
    %287 = arith.mulf %286, %285 : vector<2x192xf32>
    %cst_65 = arith.constant 5.000000e-01 : f32
    %288 = vector.broadcast %cst_65 : f32 to vector<2x192xf32>
    %289 = arith.addf %287, %288 : vector<2x192xf32>
    %290 = vector.extract_strided_slice %289 {offsets = [0, 0], sizes = [2, 64], strides = [1, 1]} : vector<2x192xf32> to vector<2x64xf32>
    %291 = vector.extract_strided_slice %289 {offsets = [0, 64], sizes = [2, 64], strides = [1, 1]} : vector<2x192xf32> to vector<2x64xf32>
    %292 = vector.extract_strided_slice %289 {offsets = [0, 128], sizes = [2, 64], strides = [1, 1]} : vector<2x192xf32> to vector<2x64xf32>
    %293 = vector.extract_strided_slice %281 {offsets = [0, 192], sizes = [2, 64], strides = [1, 1]} : vector<2x256xf32> to vector<2x64xf32>
    %294 = math.tanh %293 : vector<2x64xf32>
    %295 = arith.mulf %291, %274 : vector<2x64xf32>
    %296 = arith.mulf %290, %294 : vector<2x64xf32>
    %297 = arith.addf %295, %296 : vector<2x64xf32>
    %298 = math.tanh %297 : vector<2x64xf32>
    %299 = arith.mulf %292, %298 : vector<2x64xf32>
    %300 = vector.extract_strided_slice %299 {offsets = [0, 0], sizes = [2, 32], strides = [1, 1]} : vector<2x64xf32> to vector<2x32xf32>
    %301 = vector.extract_strided_slice %299 {offsets = [0, 32], sizes = [2, 32], strides = [1, 1]} : vector<2x64xf32> to vector<2x32xf32>
    %302 = vector.extract_strided_slice %206 {offsets = [8, 0], sizes = [2, 256], strides = [1, 1]} : vector<16x256xf32> to vector<2x256xf32>
    %cst_66 = arith.constant dense<0.000000e+00> : vector<2x256xf32>
    %303 = tpu.matmul %299, %207, %cst_66 {dimension_numbers = #tpu.dot_dimension_numbers<[1], [0], [0], [1], [0, 0, 1, 1], [], []>} : vector<2x64xf32>, vector<64x256xf32>, vector<2x256xf32> -> vector<2x256xf32>
    %304 = arith.addf %302, %303 : vector<2x256xf32>
    %305 = vector.extract_strided_slice %304 {offsets = [0, 0], sizes = [2, 192], strides = [1, 1]} : vector<2x256xf32> to vector<2x192xf32>
    %cst_67 = arith.constant 5.000000e-01 : f32
    %306 = vector.broadcast %cst_67 : f32 to vector<2x192xf32>
    %307 = arith.mulf %306, %305 : vector<2x192xf32>
    %308 = math.tanh %307 : vector<2x192xf32>
    %cst_68 = arith.constant 5.000000e-01 : f32
    %309 = vector.broadcast %cst_68 : f32 to vector<2x192xf32>
    %310 = arith.mulf %309, %308 : vector<2x192xf32>
    %cst_69 = arith.constant 5.000000e-01 : f32
    %311 = vector.broadcast %cst_69 : f32 to vector<2x192xf32>
    %312 = arith.addf %310, %311 : vector<2x192xf32>
    %313 = vector.extract_strided_slice %312 {offsets = [0, 0], sizes = [2, 64], strides = [1, 1]} : vector<2x192xf32> to vector<2x64xf32>
    %314 = vector.extract_strided_slice %312 {offsets = [0, 64], sizes = [2, 64], strides = [1, 1]} : vector<2x192xf32> to vector<2x64xf32>
    %315 = vector.extract_strided_slice %312 {offsets = [0, 128], sizes = [2, 64], strides = [1, 1]} : vector<2x192xf32> to vector<2x64xf32>
    %316 = vector.extract_strided_slice %304 {offsets = [0, 192], sizes = [2, 64], strides = [1, 1]} : vector<2x256xf32> to vector<2x64xf32>
    %317 = math.tanh %316 : vector<2x64xf32>
    %318 = arith.mulf %314, %297 : vector<2x64xf32>
    %319 = arith.mulf %313, %317 : vector<2x64xf32>
    %320 = arith.addf %318, %319 : vector<2x64xf32>
    %321 = math.tanh %320 : vector<2x64xf32>
    %322 = arith.mulf %315, %321 : vector<2x64xf32>
    %323 = vector.extract_strided_slice %322 {offsets = [0, 0], sizes = [2, 32], strides = [1, 1]} : vector<2x64xf32> to vector<2x32xf32>
    %324 = vector.extract_strided_slice %322 {offsets = [0, 32], sizes = [2, 32], strides = [1, 1]} : vector<2x64xf32> to vector<2x32xf32>
    %325 = vector.extract_strided_slice %206 {offsets = [10, 0], sizes = [2, 256], strides = [1, 1]} : vector<16x256xf32> to vector<2x256xf32>
    %cst_70 = arith.constant dense<0.000000e+00> : vector<2x256xf32>
    %326 = tpu.matmul %322, %207, %cst_70 {dimension_numbers = #tpu.dot_dimension_numbers<[1], [0], [0], [1], [0, 0, 1, 1], [], []>} : vector<2x64xf32>, vector<64x256xf32>, vector<2x256xf32> -> vector<2x256xf32>
    %327 = arith.addf %325, %326 : vector<2x256xf32>
    %328 = vector.extract_strided_slice %327 {offsets = [0, 0], sizes = [2, 192], strides = [1, 1]} : vector<2x256xf32> to vector<2x192xf32>
    %cst_71 = arith.constant 5.000000e-01 : f32
    %329 = vector.broadcast %cst_71 : f32 to vector<2x192xf32>
    %330 = arith.mulf %329, %328 : vector<2x192xf32>
    %331 = math.tanh %330 : vector<2x192xf32>
    %cst_72 = arith.constant 5.000000e-01 : f32
    %332 = vector.broadcast %cst_72 : f32 to vector<2x192xf32>
    %333 = arith.mulf %332, %331 : vector<2x192xf32>
    %cst_73 = arith.constant 5.000000e-01 : f32
    %334 = vector.broadcast %cst_73 : f32 to vector<2x192xf32>
    %335 = arith.addf %333, %334 : vector<2x192xf32>
    %336 = vector.extract_strided_slice %335 {offsets = [0, 0], sizes = [2, 64], strides = [1, 1]} : vector<2x192xf32> to vector<2x64xf32>
    %337 = vector.extract_strided_slice %335 {offsets = [0, 64], sizes = [2, 64], strides = [1, 1]} : vector<2x192xf32> to vector<2x64xf32>
    %338 = vector.extract_strided_slice %335 {offsets = [0, 128], sizes = [2, 64], strides = [1, 1]} : vector<2x192xf32> to vector<2x64xf32>
    %339 = vector.extract_strided_slice %327 {offsets = [0, 192], sizes = [2, 64], strides = [1, 1]} : vector<2x256xf32> to vector<2x64xf32>
    %340 = math.tanh %339 : vector<2x64xf32>
    %341 = arith.mulf %337, %320 : vector<2x64xf32>
    %342 = arith.mulf %336, %340 : vector<2x64xf32>
    %343 = arith.addf %341, %342 : vector<2x64xf32>
    %344 = math.tanh %343 : vector<2x64xf32>
    %345 = arith.mulf %338, %344 : vector<2x64xf32>
    %346 = vector.extract_strided_slice %345 {offsets = [0, 0], sizes = [2, 32], strides = [1, 1]} : vector<2x64xf32> to vector<2x32xf32>
    %347 = vector.extract_strided_slice %345 {offsets = [0, 32], sizes = [2, 32], strides = [1, 1]} : vector<2x64xf32> to vector<2x32xf32>
    %348 = vector.extract_strided_slice %206 {offsets = [12, 0], sizes = [2, 256], strides = [1, 1]} : vector<16x256xf32> to vector<2x256xf32>
    %cst_74 = arith.constant dense<0.000000e+00> : vector<2x256xf32>
    %349 = tpu.matmul %345, %207, %cst_74 {dimension_numbers = #tpu.dot_dimension_numbers<[1], [0], [0], [1], [0, 0, 1, 1], [], []>} : vector<2x64xf32>, vector<64x256xf32>, vector<2x256xf32> -> vector<2x256xf32>
    %350 = arith.addf %348, %349 : vector<2x256xf32>
    %351 = vector.extract_strided_slice %350 {offsets = [0, 0], sizes = [2, 192], strides = [1, 1]} : vector<2x256xf32> to vector<2x192xf32>
    %cst_75 = arith.constant 5.000000e-01 : f32
    %352 = vector.broadcast %cst_75 : f32 to vector<2x192xf32>
    %353 = arith.mulf %352, %351 : vector<2x192xf32>
    %354 = math.tanh %353 : vector<2x192xf32>
    %cst_76 = arith.constant 5.000000e-01 : f32
    %355 = vector.broadcast %cst_76 : f32 to vector<2x192xf32>
    %356 = arith.mulf %355, %354 : vector<2x192xf32>
    %cst_77 = arith.constant 5.000000e-01 : f32
    %357 = vector.broadcast %cst_77 : f32 to vector<2x192xf32>
    %358 = arith.addf %356, %357 : vector<2x192xf32>
    %359 = vector.extract_strided_slice %358 {offsets = [0, 0], sizes = [2, 64], strides = [1, 1]} : vector<2x192xf32> to vector<2x64xf32>
    %360 = vector.extract_strided_slice %358 {offsets = [0, 64], sizes = [2, 64], strides = [1, 1]} : vector<2x192xf32> to vector<2x64xf32>
    %361 = vector.extract_strided_slice %358 {offsets = [0, 128], sizes = [2, 64], strides = [1, 1]} : vector<2x192xf32> to vector<2x64xf32>
    %362 = vector.extract_strided_slice %350 {offsets = [0, 192], sizes = [2, 64], strides = [1, 1]} : vector<2x256xf32> to vector<2x64xf32>
    %363 = math.tanh %362 : vector<2x64xf32>
    %364 = arith.mulf %360, %343 : vector<2x64xf32>
    %365 = arith.mulf %359, %363 : vector<2x64xf32>
    %366 = arith.addf %364, %365 : vector<2x64xf32>
    %367 = math.tanh %366 : vector<2x64xf32>
    %368 = arith.mulf %361, %367 : vector<2x64xf32>
    %369 = vector.extract_strided_slice %368 {offsets = [0, 0], sizes = [2, 32], strides = [1, 1]} : vector<2x64xf32> to vector<2x32xf32>
    %370 = vector.extract_strided_slice %368 {offsets = [0, 32], sizes = [2, 32], strides = [1, 1]} : vector<2x64xf32> to vector<2x32xf32>
    %371 = vector.extract_strided_slice %206 {offsets = [14, 0], sizes = [2, 256], strides = [1, 1]} : vector<16x256xf32> to vector<2x256xf32>
    %cst_78 = arith.constant dense<0.000000e+00> : vector<2x256xf32>
    %372 = tpu.matmul %368, %207, %cst_78 {dimension_numbers = #tpu.dot_dimension_numbers<[1], [0], [0], [1], [0, 0, 1, 1], [], []>} : vector<2x64xf32>, vector<64x256xf32>, vector<2x256xf32> -> vector<2x256xf32>
    %373 = arith.addf %371, %372 : vector<2x256xf32>
    %374 = vector.extract_strided_slice %373 {offsets = [0, 0], sizes = [2, 192], strides = [1, 1]} : vector<2x256xf32> to vector<2x192xf32>
    %cst_79 = arith.constant 5.000000e-01 : f32
    %375 = vector.broadcast %cst_79 : f32 to vector<2x192xf32>
    %376 = arith.mulf %375, %374 : vector<2x192xf32>
    %377 = math.tanh %376 : vector<2x192xf32>
    %cst_80 = arith.constant 5.000000e-01 : f32
    %378 = vector.broadcast %cst_80 : f32 to vector<2x192xf32>
    %379 = arith.mulf %378, %377 : vector<2x192xf32>
    %cst_81 = arith.constant 5.000000e-01 : f32
    %380 = vector.broadcast %cst_81 : f32 to vector<2x192xf32>
    %381 = arith.addf %379, %380 : vector<2x192xf32>
    %382 = vector.extract_strided_slice %381 {offsets = [0, 0], sizes = [2, 64], strides = [1, 1]} : vector<2x192xf32> to vector<2x64xf32>
    %383 = vector.extract_strided_slice %381 {offsets = [0, 64], sizes = [2, 64], strides = [1, 1]} : vector<2x192xf32> to vector<2x64xf32>
    %384 = vector.extract_strided_slice %381 {offsets = [0, 128], sizes = [2, 64], strides = [1, 1]} : vector<2x192xf32> to vector<2x64xf32>
    %385 = vector.extract_strided_slice %373 {offsets = [0, 192], sizes = [2, 64], strides = [1, 1]} : vector<2x256xf32> to vector<2x64xf32>
    %386 = math.tanh %385 : vector<2x64xf32>
    %387 = arith.mulf %383, %366 : vector<2x64xf32>
    %388 = arith.mulf %382, %386 : vector<2x64xf32>
    %389 = arith.addf %387, %388 : vector<2x64xf32>
    %390 = math.tanh %389 : vector<2x64xf32>
    %391 = arith.mulf %384, %390 : vector<2x64xf32>
    %392 = vector.extract_strided_slice %391 {offsets = [0, 0], sizes = [2, 32], strides = [1, 1]} : vector<2x64xf32> to vector<2x32xf32>
    %393 = vector.extract_strided_slice %391 {offsets = [0, 32], sizes = [2, 32], strides = [1, 1]} : vector<2x64xf32> to vector<2x32xf32>
    %394 = tpu.concatenate %231, %393, %392, %232 in 1 : vector<2x32xf32>, vector<2x32xf32>, vector<2x32xf32>, vector<2x32xf32> -> vector<2x128xf32>
    %395 = tpu.concatenate %254, %370, %369, %255 in 1 : vector<2x32xf32>, vector<2x32xf32>, vector<2x32xf32>, vector<2x32xf32> -> vector<2x128xf32>
    %396 = tpu.concatenate %277, %347, %346, %278 in 1 : vector<2x32xf32>, vector<2x32xf32>, vector<2x32xf32>, vector<2x32xf32> -> vector<2x128xf32>
    %397 = tpu.concatenate %300, %324, %323, %301 in 1 : vector<2x32xf32>, vector<2x32xf32>, vector<2x32xf32>, vector<2x32xf32> -> vector<2x128xf32>
    %398 = tpu.concatenate %323, %301, %300, %324 in 1 : vector<2x32xf32>, vector<2x32xf32>, vector<2x32xf32>, vector<2x32xf32> -> vector<2x128xf32>
    %399 = tpu.concatenate %346, %278, %277, %347 in 1 : vector<2x32xf32>, vector<2x32xf32>, vector<2x32xf32>, vector<2x32xf32> -> vector<2x128xf32>
    %400 = tpu.concatenate %369, %255, %254, %370 in 1 : vector<2x32xf32>, vector<2x32xf32>, vector<2x32xf32>, vector<2x32xf32> -> vector<2x128xf32>
    %401 = tpu.concatenate %392, %232, %231, %393 in 1 : vector<2x32xf32>, vector<2x32xf32>, vector<2x32xf32>, vector<2x32xf32> -> vector<2x128xf32>
    %402 = tpu.concatenate %394, %395, %396, %397, %398, %399, %400, %401 in 0 : vector<2x128xf32>, vector<2x128xf32>, vector<2x128xf32>, vector<2x128xf32>, vector<2x128xf32>, vector<2x128xf32>, vector<2x128xf32>, vector<2x128xf32> -> vector<16x128xf32>
    %c0_82 = arith.constant 0 : index
    %c0_83 = arith.constant 0 : index
    %403 = vector.load %arg7[%c0_82, %c0_83] : memref<128x256xf32, #tpu.memory_space<vmem>>, vector<128x256xf32>
    %cst_84 = arith.constant dense<0.000000e+00> : vector<16x256xf32>
    %404 = tpu.matmul %402, %403, %cst_84 {dimension_numbers = #tpu.dot_dimension_numbers<[1], [0], [0], [1], [0, 0, 1, 1], [], []>} : vector<16x128xf32>, vector<128x256xf32>, vector<16x256xf32> -> vector<16x256xf32>
    %c0_85 = arith.constant 0 : index
    %c0_86 = arith.constant 0 : index
    %405 = vector.load %arg8[%c0_85, %c0_86] : memref<1x256xf32, #tpu.memory_space<vmem>>, vector<1x256xf32>
    %406 = vector.broadcast %405 : vector<1x256xf32> to vector<16x256xf32>
    %407 = arith.addf %404, %406 : vector<16x256xf32>
    %c0_87 = arith.constant 0 : index
    %c0_88 = arith.constant 0 : index
    %408 = vector.load %arg9[%c0_87, %c0_88] : memref<64x256xf32, #tpu.memory_space<vmem>>, vector<64x256xf32>
    %cst_89 = arith.constant 0.000000e+00 : f32
    %409 = vector.broadcast %cst_89 : f32 to vector<2x64xf32>
    %cst_90 = arith.constant 0.000000e+00 : f32
    %410 = vector.broadcast %cst_90 : f32 to vector<2x64xf32>
    %411 = vector.extract_strided_slice %407 {offsets = [0, 0], sizes = [2, 256], strides = [1, 1]} : vector<16x256xf32> to vector<2x256xf32>
    %cst_91 = arith.constant dense<0.000000e+00> : vector<2x256xf32>
    %412 = tpu.matmul %409, %408, %cst_91 {dimension_numbers = #tpu.dot_dimension_numbers<[1], [0], [0], [1], [0, 0, 1, 1], [], []>} : vector<2x64xf32>, vector<64x256xf32>, vector<2x256xf32> -> vector<2x256xf32>
    %413 = arith.addf %411, %412 : vector<2x256xf32>
    %414 = vector.extract_strided_slice %413 {offsets = [0, 0], sizes = [2, 192], strides = [1, 1]} : vector<2x256xf32> to vector<2x192xf32>
    %cst_92 = arith.constant 5.000000e-01 : f32
    %415 = vector.broadcast %cst_92 : f32 to vector<2x192xf32>
    %416 = arith.mulf %415, %414 : vector<2x192xf32>
    %417 = math.tanh %416 : vector<2x192xf32>
    %cst_93 = arith.constant 5.000000e-01 : f32
    %418 = vector.broadcast %cst_93 : f32 to vector<2x192xf32>
    %419 = arith.mulf %418, %417 : vector<2x192xf32>
    %cst_94 = arith.constant 5.000000e-01 : f32
    %420 = vector.broadcast %cst_94 : f32 to vector<2x192xf32>
    %421 = arith.addf %419, %420 : vector<2x192xf32>
    %422 = vector.extract_strided_slice %421 {offsets = [0, 0], sizes = [2, 64], strides = [1, 1]} : vector<2x192xf32> to vector<2x64xf32>
    %423 = vector.extract_strided_slice %421 {offsets = [0, 64], sizes = [2, 64], strides = [1, 1]} : vector<2x192xf32> to vector<2x64xf32>
    %424 = vector.extract_strided_slice %421 {offsets = [0, 128], sizes = [2, 64], strides = [1, 1]} : vector<2x192xf32> to vector<2x64xf32>
    %425 = vector.extract_strided_slice %413 {offsets = [0, 192], sizes = [2, 64], strides = [1, 1]} : vector<2x256xf32> to vector<2x64xf32>
    %426 = math.tanh %425 : vector<2x64xf32>
    %427 = arith.mulf %423, %410 : vector<2x64xf32>
    %428 = arith.mulf %422, %426 : vector<2x64xf32>
    %429 = arith.addf %427, %428 : vector<2x64xf32>
    %430 = math.tanh %429 : vector<2x64xf32>
    %431 = arith.mulf %424, %430 : vector<2x64xf32>
    %432 = vector.extract_strided_slice %407 {offsets = [2, 0], sizes = [2, 256], strides = [1, 1]} : vector<16x256xf32> to vector<2x256xf32>
    %cst_95 = arith.constant dense<0.000000e+00> : vector<2x256xf32>
    %433 = tpu.matmul %431, %408, %cst_95 {dimension_numbers = #tpu.dot_dimension_numbers<[1], [0], [0], [1], [0, 0, 1, 1], [], []>} : vector<2x64xf32>, vector<64x256xf32>, vector<2x256xf32> -> vector<2x256xf32>
    %434 = arith.addf %432, %433 : vector<2x256xf32>
    %435 = vector.extract_strided_slice %434 {offsets = [0, 0], sizes = [2, 192], strides = [1, 1]} : vector<2x256xf32> to vector<2x192xf32>
    %cst_96 = arith.constant 5.000000e-01 : f32
    %436 = vector.broadcast %cst_96 : f32 to vector<2x192xf32>
    %437 = arith.mulf %436, %435 : vector<2x192xf32>
    %438 = math.tanh %437 : vector<2x192xf32>
    %cst_97 = arith.constant 5.000000e-01 : f32
    %439 = vector.broadcast %cst_97 : f32 to vector<2x192xf32>
    %440 = arith.mulf %439, %438 : vector<2x192xf32>
    %cst_98 = arith.constant 5.000000e-01 : f32
    %441 = vector.broadcast %cst_98 : f32 to vector<2x192xf32>
    %442 = arith.addf %440, %441 : vector<2x192xf32>
    %443 = vector.extract_strided_slice %442 {offsets = [0, 0], sizes = [2, 64], strides = [1, 1]} : vector<2x192xf32> to vector<2x64xf32>
    %444 = vector.extract_strided_slice %442 {offsets = [0, 64], sizes = [2, 64], strides = [1, 1]} : vector<2x192xf32> to vector<2x64xf32>
    %445 = vector.extract_strided_slice %442 {offsets = [0, 128], sizes = [2, 64], strides = [1, 1]} : vector<2x192xf32> to vector<2x64xf32>
    %446 = vector.extract_strided_slice %434 {offsets = [0, 192], sizes = [2, 64], strides = [1, 1]} : vector<2x256xf32> to vector<2x64xf32>
    %447 = math.tanh %446 : vector<2x64xf32>
    %448 = arith.mulf %444, %429 : vector<2x64xf32>
    %449 = arith.mulf %443, %447 : vector<2x64xf32>
    %450 = arith.addf %448, %449 : vector<2x64xf32>
    %451 = math.tanh %450 : vector<2x64xf32>
    %452 = arith.mulf %445, %451 : vector<2x64xf32>
    %453 = vector.extract_strided_slice %407 {offsets = [4, 0], sizes = [2, 256], strides = [1, 1]} : vector<16x256xf32> to vector<2x256xf32>
    %cst_99 = arith.constant dense<0.000000e+00> : vector<2x256xf32>
    %454 = tpu.matmul %452, %408, %cst_99 {dimension_numbers = #tpu.dot_dimension_numbers<[1], [0], [0], [1], [0, 0, 1, 1], [], []>} : vector<2x64xf32>, vector<64x256xf32>, vector<2x256xf32> -> vector<2x256xf32>
    %455 = arith.addf %453, %454 : vector<2x256xf32>
    %456 = vector.extract_strided_slice %455 {offsets = [0, 0], sizes = [2, 192], strides = [1, 1]} : vector<2x256xf32> to vector<2x192xf32>
    %cst_100 = arith.constant 5.000000e-01 : f32
    %457 = vector.broadcast %cst_100 : f32 to vector<2x192xf32>
    %458 = arith.mulf %457, %456 : vector<2x192xf32>
    %459 = math.tanh %458 : vector<2x192xf32>
    %cst_101 = arith.constant 5.000000e-01 : f32
    %460 = vector.broadcast %cst_101 : f32 to vector<2x192xf32>
    %461 = arith.mulf %460, %459 : vector<2x192xf32>
    %cst_102 = arith.constant 5.000000e-01 : f32
    %462 = vector.broadcast %cst_102 : f32 to vector<2x192xf32>
    %463 = arith.addf %461, %462 : vector<2x192xf32>
    %464 = vector.extract_strided_slice %463 {offsets = [0, 0], sizes = [2, 64], strides = [1, 1]} : vector<2x192xf32> to vector<2x64xf32>
    %465 = vector.extract_strided_slice %463 {offsets = [0, 64], sizes = [2, 64], strides = [1, 1]} : vector<2x192xf32> to vector<2x64xf32>
    %466 = vector.extract_strided_slice %463 {offsets = [0, 128], sizes = [2, 64], strides = [1, 1]} : vector<2x192xf32> to vector<2x64xf32>
    %467 = vector.extract_strided_slice %455 {offsets = [0, 192], sizes = [2, 64], strides = [1, 1]} : vector<2x256xf32> to vector<2x64xf32>
    %468 = math.tanh %467 : vector<2x64xf32>
    %469 = arith.mulf %465, %450 : vector<2x64xf32>
    %470 = arith.mulf %464, %468 : vector<2x64xf32>
    %471 = arith.addf %469, %470 : vector<2x64xf32>
    %472 = math.tanh %471 : vector<2x64xf32>
    %473 = arith.mulf %466, %472 : vector<2x64xf32>
    %474 = vector.extract_strided_slice %407 {offsets = [6, 0], sizes = [2, 256], strides = [1, 1]} : vector<16x256xf32> to vector<2x256xf32>
    %cst_103 = arith.constant dense<0.000000e+00> : vector<2x256xf32>
    %475 = tpu.matmul %473, %408, %cst_103 {dimension_numbers = #tpu.dot_dimension_numbers<[1], [0], [0], [1], [0, 0, 1, 1], [], []>} : vector<2x64xf32>, vector<64x256xf32>, vector<2x256xf32> -> vector<2x256xf32>
    %476 = arith.addf %474, %475 : vector<2x256xf32>
    %477 = vector.extract_strided_slice %476 {offsets = [0, 0], sizes = [2, 192], strides = [1, 1]} : vector<2x256xf32> to vector<2x192xf32>
    %cst_104 = arith.constant 5.000000e-01 : f32
    %478 = vector.broadcast %cst_104 : f32 to vector<2x192xf32>
    %479 = arith.mulf %478, %477 : vector<2x192xf32>
    %480 = math.tanh %479 : vector<2x192xf32>
    %cst_105 = arith.constant 5.000000e-01 : f32
    %481 = vector.broadcast %cst_105 : f32 to vector<2x192xf32>
    %482 = arith.mulf %481, %480 : vector<2x192xf32>
    %cst_106 = arith.constant 5.000000e-01 : f32
    %483 = vector.broadcast %cst_106 : f32 to vector<2x192xf32>
    %484 = arith.addf %482, %483 : vector<2x192xf32>
    %485 = vector.extract_strided_slice %484 {offsets = [0, 0], sizes = [2, 64], strides = [1, 1]} : vector<2x192xf32> to vector<2x64xf32>
    %486 = vector.extract_strided_slice %484 {offsets = [0, 64], sizes = [2, 64], strides = [1, 1]} : vector<2x192xf32> to vector<2x64xf32>
    %487 = vector.extract_strided_slice %484 {offsets = [0, 128], sizes = [2, 64], strides = [1, 1]} : vector<2x192xf32> to vector<2x64xf32>
    %488 = vector.extract_strided_slice %476 {offsets = [0, 192], sizes = [2, 64], strides = [1, 1]} : vector<2x256xf32> to vector<2x64xf32>
    %489 = math.tanh %488 : vector<2x64xf32>
    %490 = arith.mulf %486, %471 : vector<2x64xf32>
    %491 = arith.mulf %485, %489 : vector<2x64xf32>
    %492 = arith.addf %490, %491 : vector<2x64xf32>
    %493 = math.tanh %492 : vector<2x64xf32>
    %494 = arith.mulf %487, %493 : vector<2x64xf32>
    %495 = vector.extract_strided_slice %407 {offsets = [8, 0], sizes = [2, 256], strides = [1, 1]} : vector<16x256xf32> to vector<2x256xf32>
    %cst_107 = arith.constant dense<0.000000e+00> : vector<2x256xf32>
    %496 = tpu.matmul %494, %408, %cst_107 {dimension_numbers = #tpu.dot_dimension_numbers<[1], [0], [0], [1], [0, 0, 1, 1], [], []>} : vector<2x64xf32>, vector<64x256xf32>, vector<2x256xf32> -> vector<2x256xf32>
    %497 = arith.addf %495, %496 : vector<2x256xf32>
    %498 = vector.extract_strided_slice %497 {offsets = [0, 0], sizes = [2, 192], strides = [1, 1]} : vector<2x256xf32> to vector<2x192xf32>
    %cst_108 = arith.constant 5.000000e-01 : f32
    %499 = vector.broadcast %cst_108 : f32 to vector<2x192xf32>
    %500 = arith.mulf %499, %498 : vector<2x192xf32>
    %501 = math.tanh %500 : vector<2x192xf32>
    %cst_109 = arith.constant 5.000000e-01 : f32
    %502 = vector.broadcast %cst_109 : f32 to vector<2x192xf32>
    %503 = arith.mulf %502, %501 : vector<2x192xf32>
    %cst_110 = arith.constant 5.000000e-01 : f32
    %504 = vector.broadcast %cst_110 : f32 to vector<2x192xf32>
    %505 = arith.addf %503, %504 : vector<2x192xf32>
    %506 = vector.extract_strided_slice %505 {offsets = [0, 0], sizes = [2, 64], strides = [1, 1]} : vector<2x192xf32> to vector<2x64xf32>
    %507 = vector.extract_strided_slice %505 {offsets = [0, 64], sizes = [2, 64], strides = [1, 1]} : vector<2x192xf32> to vector<2x64xf32>
    %508 = vector.extract_strided_slice %505 {offsets = [0, 128], sizes = [2, 64], strides = [1, 1]} : vector<2x192xf32> to vector<2x64xf32>
    %509 = vector.extract_strided_slice %497 {offsets = [0, 192], sizes = [2, 64], strides = [1, 1]} : vector<2x256xf32> to vector<2x64xf32>
    %510 = math.tanh %509 : vector<2x64xf32>
    %511 = arith.mulf %507, %492 : vector<2x64xf32>
    %512 = arith.mulf %506, %510 : vector<2x64xf32>
    %513 = arith.addf %511, %512 : vector<2x64xf32>
    %514 = math.tanh %513 : vector<2x64xf32>
    %515 = arith.mulf %508, %514 : vector<2x64xf32>
    %516 = vector.extract_strided_slice %407 {offsets = [10, 0], sizes = [2, 256], strides = [1, 1]} : vector<16x256xf32> to vector<2x256xf32>
    %cst_111 = arith.constant dense<0.000000e+00> : vector<2x256xf32>
    %517 = tpu.matmul %515, %408, %cst_111 {dimension_numbers = #tpu.dot_dimension_numbers<[1], [0], [0], [1], [0, 0, 1, 1], [], []>} : vector<2x64xf32>, vector<64x256xf32>, vector<2x256xf32> -> vector<2x256xf32>
    %518 = arith.addf %516, %517 : vector<2x256xf32>
    %519 = vector.extract_strided_slice %518 {offsets = [0, 0], sizes = [2, 192], strides = [1, 1]} : vector<2x256xf32> to vector<2x192xf32>
    %cst_112 = arith.constant 5.000000e-01 : f32
    %520 = vector.broadcast %cst_112 : f32 to vector<2x192xf32>
    %521 = arith.mulf %520, %519 : vector<2x192xf32>
    %522 = math.tanh %521 : vector<2x192xf32>
    %cst_113 = arith.constant 5.000000e-01 : f32
    %523 = vector.broadcast %cst_113 : f32 to vector<2x192xf32>
    %524 = arith.mulf %523, %522 : vector<2x192xf32>
    %cst_114 = arith.constant 5.000000e-01 : f32
    %525 = vector.broadcast %cst_114 : f32 to vector<2x192xf32>
    %526 = arith.addf %524, %525 : vector<2x192xf32>
    %527 = vector.extract_strided_slice %526 {offsets = [0, 0], sizes = [2, 64], strides = [1, 1]} : vector<2x192xf32> to vector<2x64xf32>
    %528 = vector.extract_strided_slice %526 {offsets = [0, 64], sizes = [2, 64], strides = [1, 1]} : vector<2x192xf32> to vector<2x64xf32>
    %529 = vector.extract_strided_slice %526 {offsets = [0, 128], sizes = [2, 64], strides = [1, 1]} : vector<2x192xf32> to vector<2x64xf32>
    %530 = vector.extract_strided_slice %518 {offsets = [0, 192], sizes = [2, 64], strides = [1, 1]} : vector<2x256xf32> to vector<2x64xf32>
    %531 = math.tanh %530 : vector<2x64xf32>
    %532 = arith.mulf %528, %513 : vector<2x64xf32>
    %533 = arith.mulf %527, %531 : vector<2x64xf32>
    %534 = arith.addf %532, %533 : vector<2x64xf32>
    %535 = math.tanh %534 : vector<2x64xf32>
    %536 = arith.mulf %529, %535 : vector<2x64xf32>
    %537 = vector.extract_strided_slice %407 {offsets = [12, 0], sizes = [2, 256], strides = [1, 1]} : vector<16x256xf32> to vector<2x256xf32>
    %cst_115 = arith.constant dense<0.000000e+00> : vector<2x256xf32>
    %538 = tpu.matmul %536, %408, %cst_115 {dimension_numbers = #tpu.dot_dimension_numbers<[1], [0], [0], [1], [0, 0, 1, 1], [], []>} : vector<2x64xf32>, vector<64x256xf32>, vector<2x256xf32> -> vector<2x256xf32>
    %539 = arith.addf %537, %538 : vector<2x256xf32>
    %540 = vector.extract_strided_slice %539 {offsets = [0, 0], sizes = [2, 192], strides = [1, 1]} : vector<2x256xf32> to vector<2x192xf32>
    %cst_116 = arith.constant 5.000000e-01 : f32
    %541 = vector.broadcast %cst_116 : f32 to vector<2x192xf32>
    %542 = arith.mulf %541, %540 : vector<2x192xf32>
    %543 = math.tanh %542 : vector<2x192xf32>
    %cst_117 = arith.constant 5.000000e-01 : f32
    %544 = vector.broadcast %cst_117 : f32 to vector<2x192xf32>
    %545 = arith.mulf %544, %543 : vector<2x192xf32>
    %cst_118 = arith.constant 5.000000e-01 : f32
    %546 = vector.broadcast %cst_118 : f32 to vector<2x192xf32>
    %547 = arith.addf %545, %546 : vector<2x192xf32>
    %548 = vector.extract_strided_slice %547 {offsets = [0, 0], sizes = [2, 64], strides = [1, 1]} : vector<2x192xf32> to vector<2x64xf32>
    %549 = vector.extract_strided_slice %547 {offsets = [0, 64], sizes = [2, 64], strides = [1, 1]} : vector<2x192xf32> to vector<2x64xf32>
    %550 = vector.extract_strided_slice %547 {offsets = [0, 128], sizes = [2, 64], strides = [1, 1]} : vector<2x192xf32> to vector<2x64xf32>
    %551 = vector.extract_strided_slice %539 {offsets = [0, 192], sizes = [2, 64], strides = [1, 1]} : vector<2x256xf32> to vector<2x64xf32>
    %552 = math.tanh %551 : vector<2x64xf32>
    %553 = arith.mulf %549, %534 : vector<2x64xf32>
    %554 = arith.mulf %548, %552 : vector<2x64xf32>
    %555 = arith.addf %553, %554 : vector<2x64xf32>
    %556 = math.tanh %555 : vector<2x64xf32>
    %557 = arith.mulf %550, %556 : vector<2x64xf32>
    %558 = vector.extract_strided_slice %407 {offsets = [14, 0], sizes = [2, 256], strides = [1, 1]} : vector<16x256xf32> to vector<2x256xf32>
    %cst_119 = arith.constant dense<0.000000e+00> : vector<2x256xf32>
    %559 = tpu.matmul %557, %408, %cst_119 {dimension_numbers = #tpu.dot_dimension_numbers<[1], [0], [0], [1], [0, 0, 1, 1], [], []>} : vector<2x64xf32>, vector<64x256xf32>, vector<2x256xf32> -> vector<2x256xf32>
    %560 = arith.addf %558, %559 : vector<2x256xf32>
    %561 = vector.extract_strided_slice %560 {offsets = [0, 0], sizes = [2, 192], strides = [1, 1]} : vector<2x256xf32> to vector<2x192xf32>
    %cst_120 = arith.constant 5.000000e-01 : f32
    %562 = vector.broadcast %cst_120 : f32 to vector<2x192xf32>
    %563 = arith.mulf %562, %561 : vector<2x192xf32>
    %564 = math.tanh %563 : vector<2x192xf32>
    %cst_121 = arith.constant 5.000000e-01 : f32
    %565 = vector.broadcast %cst_121 : f32 to vector<2x192xf32>
    %566 = arith.mulf %565, %564 : vector<2x192xf32>
    %cst_122 = arith.constant 5.000000e-01 : f32
    %567 = vector.broadcast %cst_122 : f32 to vector<2x192xf32>
    %568 = arith.addf %566, %567 : vector<2x192xf32>
    %569 = vector.extract_strided_slice %568 {offsets = [0, 0], sizes = [2, 64], strides = [1, 1]} : vector<2x192xf32> to vector<2x64xf32>
    %570 = vector.extract_strided_slice %568 {offsets = [0, 64], sizes = [2, 64], strides = [1, 1]} : vector<2x192xf32> to vector<2x64xf32>
    %571 = vector.extract_strided_slice %568 {offsets = [0, 128], sizes = [2, 64], strides = [1, 1]} : vector<2x192xf32> to vector<2x64xf32>
    %572 = vector.extract_strided_slice %560 {offsets = [0, 192], sizes = [2, 64], strides = [1, 1]} : vector<2x256xf32> to vector<2x64xf32>
    %573 = math.tanh %572 : vector<2x64xf32>
    %574 = arith.mulf %570, %555 : vector<2x64xf32>
    %575 = arith.mulf %569, %573 : vector<2x64xf32>
    %576 = arith.addf %574, %575 : vector<2x64xf32>
    %577 = math.tanh %576 : vector<2x64xf32>
    %578 = arith.mulf %571, %577 : vector<2x64xf32>
    %cst_123 = arith.constant dense<0.000000e+00> : vector<64xf32>
    %579 = vector.multi_reduction <add>, %578, %cst_123 [0] : vector<2x64xf32> to vector<64xf32>
    %580 = vector.shape_cast %579 : vector<64xf32> to vector<1x64xf32>
    %cst_124 = arith.constant 2.000000e+00 : f32
    %581 = vector.broadcast %cst_124 : f32 to vector<1x64xf32>
    %582 = arith.divf %580, %581 : vector<1x64xf32>
    %583 = vector.broadcast %582 : vector<1x64xf32> to vector<2x64xf32>
    %584 = arith.subf %578, %583 : vector<2x64xf32>
    %585 = arith.mulf %584, %584 : vector<2x64xf32>
    %cst_125 = arith.constant dense<0.000000e+00> : vector<64xf32>
    %586 = vector.multi_reduction <add>, %585, %cst_125 [0] : vector<2x64xf32> to vector<64xf32>
    %587 = vector.shape_cast %586 : vector<64xf32> to vector<1x64xf32>
    %cst_126 = arith.constant 2.000000e+00 : f32
    %588 = vector.broadcast %cst_126 : f32 to vector<1x64xf32>
    %589 = arith.divf %587, %588 : vector<1x64xf32>
    %cst_127 = arith.constant 9.99999974E-6 : f32
    %590 = vector.broadcast %cst_127 : f32 to vector<1x64xf32>
    %591 = arith.addf %589, %590 : vector<1x64xf32>
    %592 = math.rsqrt %591 : vector<1x64xf32>
    %593 = vector.broadcast %592 : vector<1x64xf32> to vector<2x64xf32>
    %594 = arith.mulf %584, %593 : vector<2x64xf32>
    %c0_128 = arith.constant 0 : index
    %c0_129 = arith.constant 0 : index
    %595 = vector.load %arg10[%c0_128, %c0_129] : memref<1x64xf32, #tpu.memory_space<vmem>>, vector<1x64xf32>
    %596 = vector.broadcast %595 : vector<1x64xf32> to vector<2x64xf32>
    %597 = arith.mulf %594, %596 : vector<2x64xf32>
    %c0_130 = arith.constant 0 : index
    %c0_131 = arith.constant 0 : index
    %598 = vector.load %arg11[%c0_130, %c0_131] : memref<1x64xf32, #tpu.memory_space<vmem>>, vector<1x64xf32>
    %599 = vector.broadcast %598 : vector<1x64xf32> to vector<2x64xf32>
    %600 = arith.addf %597, %599 : vector<2x64xf32>
    %c0_132 = arith.constant 0 : index
    %c0_133 = arith.constant 0 : index
    %601 = vector.load %arg12[%c0_132, %c0_133] : memref<64x64xf32, #tpu.memory_space<vmem>>, vector<64x64xf32>
    %cst_134 = arith.constant dense<0.000000e+00> : vector<2x64xf32>
    %602 = tpu.matmul %600, %601, %cst_134 {dimension_numbers = #tpu.dot_dimension_numbers<[1], [0], [0], [1], [0, 0, 1, 1], [], []>} : vector<2x64xf32>, vector<64x64xf32>, vector<2x64xf32> -> vector<2x64xf32>
    %c0_135 = arith.constant 0 : index
    %c0_136 = arith.constant 0 : index
    %603 = vector.load %arg13[%c0_135, %c0_136] : memref<1x64xf32, #tpu.memory_space<vmem>>, vector<1x64xf32>
    %604 = vector.broadcast %603 : vector<1x64xf32> to vector<2x64xf32>
    %605 = arith.addf %602, %604 : vector<2x64xf32>
    %606 = math.tanh %605 : vector<2x64xf32>
    %c0_137 = arith.constant 0 : index
    %c0_138 = arith.constant 0 : index
    %607 = vector.load %arg14[%c0_137, %c0_138] : memref<64x8xf32, #tpu.memory_space<vmem>>, vector<64x8xf32>
    %cst_139 = arith.constant dense<0.000000e+00> : vector<2x8xf32>
    %608 = tpu.matmul %606, %607, %cst_139 {dimension_numbers = #tpu.dot_dimension_numbers<[1], [0], [0], [1], [0, 0, 1, 1], [], []>} : vector<2x64xf32>, vector<64x8xf32>, vector<2x8xf32> -> vector<2x8xf32>
    %c0_140 = arith.constant 0 : index
    %c0_141 = arith.constant 0 : index
    %609 = vector.load %arg15[%c0_140, %c0_141] : memref<1x8xf32, #tpu.memory_space<vmem>>, vector<1x8xf32>
    %610 = vector.broadcast %609 : vector<1x8xf32> to vector<2x8xf32>
    %611 = arith.addf %608, %610 : vector<2x8xf32>
    %cst_142 = arith.constant dense<0xFF800000> : vector<2xf32>
    %612 = vector.multi_reduction <maximumf>, %611, %cst_142 [1] : vector<2x8xf32> to vector<2xf32>
    %613 = vector.shape_cast %612 : vector<2xf32> to vector<2x1xf32>
    %614 = vector.broadcast %613 : vector<2x1xf32> to vector<2x8xf32>
    %615 = arith.subf %611, %614 : vector<2x8xf32>
    %616 = math.exp %615 : vector<2x8xf32>
    %cst_143 = arith.constant dense<0.000000e+00> : vector<2xf32>
    %617 = vector.multi_reduction <add>, %616, %cst_143 [1] : vector<2x8xf32> to vector<2xf32>
    %618 = vector.shape_cast %617 : vector<2xf32> to vector<2x1xf32>
    %619 = tpu.reciprocal %618 {approx = true} : vector<2x1xf32> -> vector<2x1xf32>
    %620 = vector.broadcast %619 : vector<2x1xf32> to vector<2x8xf32>
    %621 = arith.mulf %616, %620 : vector<2x8xf32>
    %c0_144 = arith.constant 0 : index
    %c0_145 = arith.constant 0 : index
    %622 = vector.load %arg16[%c0_144, %c0_145] : memref<2x8xf32, #tpu.memory_space<vmem>>, vector<2x8xf32>
    tpu.vector_store %arg16[%c0_144, %c0_145], %621 {strides = array<i32>} : memref<2x8xf32, #tpu.memory_space<vmem>>, vector<2x8xf32>,
    return
  }
}

</mosaic_0001>

<llo_original>
// kernel: intent_detection_forward.1
$region0: #{intent_detection_forward.1}
  #allocation0 [shape = 'u32[]', space=smem, size = 0x4, offset = 0x4, fixed_abs, tag = 'smem constant byte address 0x4 - core index']
  #allocation1 [shape = 'u32[144,128]{1,0:T(1,128)}', space=vmem, size = 0x12000, scoped, tag = 'internal scratch']
  %s0 = inlined_call_operand.vmem [shape: f32[16,32], index: 0, kind: input, shape index: {}]
  %s1 = inlined_call_operand.hbm [shape: f32[32,256], index: 1, kind: input, shape index: {}]
  %s2 = inlined_call_operand.hbm [shape: f32[1,256], index: 2, kind: input, shape index: {}]
  %s3 = inlined_call_operand.hbm [shape: f32[64,256], index: 3, kind: input, shape index: {}]
  %s4 = inlined_call_operand.vmem [shape: f32[128,256], index: 4, kind: input, shape index: {}]
  %s5 = inlined_call_operand.hbm [shape: f32[1,256], index: 5, kind: input, shape index: {}]
  %s6 = inlined_call_operand.hbm [shape: f32[64,256], index: 6, kind: input, shape index: {}]
  %s7 = inlined_call_operand.hbm [shape: f32[128,256], index: 7, kind: input, shape index: {}]
  %s8 = inlined_call_operand.hbm [shape: f32[1,256], index: 8, kind: input, shape index: {}]
  %s9 = inlined_call_operand.hbm [shape: f32[64,256], index: 9, kind: input, shape index: {}]
  %s10 = inlined_call_operand.hbm [shape: f32[1,64], index: 10, kind: input, shape index: {}]
  %s11 = inlined_call_operand.hbm [shape: f32[1,64], index: 11, kind: input, shape index: {}]
  %s12 = inlined_call_operand.hbm [shape: f32[64,64], index: 12, kind: input, shape index: {}]
  %s13 = inlined_call_operand.hbm [shape: f32[1,64], index: 13, kind: input, shape index: {}]
  %s14 = inlined_call_operand.vmem [shape: f32[64,8], index: 14, kind: input, shape index: {}]
  %s15 = inlined_call_operand.hbm [shape: f32[1,8], index: 15, kind: input, shape index: {}]
  %s16 = inlined_call_operand.hbm [shape: f32[2,8], index: 16, kind: output, shape index: {}]
  %s17 = sld [smem:[#allocation0]]
  $region126: #{intent_detection_forward.1} parent=0
    _
  %s19 = ssub.s32 1, %s17
  %s20 = scalar_select 0, %s19, %s17
  $region1: #{intent_detection_forward.1} parent=0
    #allocation2 [shape = 'u8[32768]{0}', space=vmem, size = 0x8000, scoped, tag = 'input window, operand 1, single buffered']
    #allocation3 [shape = 's32[1]{0}', space=sflag, size = 0x4, scoped, tag = 'scoped memory for intent_detection_forward.1']
    #allocation4 [shape = 's32[1]{0}', space=sflag, size = 0x4, scoped, tag = 'scoped memory for intent_detection_forward.1']
    #allocation5 [shape = 'u8[1024]{0}', space=vmem, size = 0x400, scoped, tag = 'input window, operand 2, single buffered']
    #allocation6 [shape = 's32[1]{0}', space=sflag, size = 0x4, scoped, tag = 'scoped memory for intent_detection_forward.1']
    #allocation7 [shape = 'u8[65536]{0}', space=vmem, size = 0x10000, scoped, tag = 'input window, operand 3, single buffered']
    #allocation8 [shape = 'u8[1024]{0}', space=vmem, size = 0x400, scoped, tag = 'input window, operand 5, single buffered']
    #allocation9 [shape = 's32[1]{0}', space=sflag, size = 0x4, scoped, tag = 'scoped memory for intent_detection_forward.1']
    #allocation10 [shape = 'u8[65536]{0}', space=vmem, size = 0x10000, scoped, tag = 'input window, operand 6, single buffered']
    #allocation11 [shape = 'u8[131072]{0}', space=vmem, size = 0x20000, scoped, tag = 'input window, operand 7, single buffered']
    #allocation12 [shape = 's32[1]{0}', space=sflag, size = 0x4, scoped, tag = 'scoped memory for intent_detection_forward.1']
    #allocation13 [shape = 'u8[1024]{0}', space=vmem, size = 0x400, scoped, tag = 'input window, operand 8, single buffered']
    #allocation14 [shape = 'u8[65536]{0}', space=vmem, size = 0x10000, scoped, tag = 'input window, operand 9, single buffered']
    #allocation15 [shape = 's32[1]{0}', space=sflag, size = 0x4, scoped, tag = 'scoped memory for intent_detection_forward.1']
    #allocation16 [shape = 'u8[512]{0}', space=vmem, size = 0x400, scoped, tag = 'input window, operand 10, single buffered']
    #allocation17 [shape = 'u8[512]{0}', space=vmem, size = 0x400, scoped, tag = 'input window, operand 11, single buffered']
    #allocation18 [shape = 's32[1]{0}', space=sflag, size = 0x4, scoped, tag = 'scoped memory for intent_detection_forward.1']
    #allocation19 [shape = 'u8[32768]{0}', space=vmem, size = 0x8000, scoped, tag = 'input window, operand 12, single buffered']
    #allocation20 [shape = 'u8[512]{0}', space=vmem, size = 0x400, scoped, tag = 'input window, operand 13, single buffered']
    #allocation21 [shape = 's32[1]{0}', space=sflag, size = 0x4, scoped, tag = 'scoped memory for intent_detection_forward.1']
    #allocation22 [shape = 'u8[512]{0}', space=vmem, size = 0x400, scoped, tag = 'input window, operand 15, single buffered']
    #allocation23 [shape = 'u8[1024]{0}', space=vmem, size = 0x400, scoped, tag = 'output window, operand 0, single buffered']
    %21 = vsyncpa [#allocation3], 0
    %22 = vsyncpa [#allocation6], 0
    %23 = vsyncpa [#allocation9], 0
    %24 = vsyncpa [#allocation12], 0
    %25 = vsyncpa [#allocation15], 0
    %26 = vsyncpa [#allocation18], 0
    %27 = vsyncpa [#allocation21], 0
    %28 = vsyncpa [#allocation4], 0
    // Predicated region
    $region2: #{intent_detection_forward.1} parent=1 // pred_check
      _
    $region3: #{intent_detection_forward.1} parent=1 // pred_check_branch
      %30 = sbr.rel (0) target = $region5
    $region4: #{intent_detection_forward.1} parent=1 // pred_region
      _
    $region5: #{intent_detection_forward.1} parent=1 // pred_fallthru
      _
    // Predicated region
    $region6: #{intent_detection_forward.1} parent=1 // pred_check
      _
    $region7: #{intent_detection_forward.1} parent=1 // pred_check_branch
      %32 = sbr.rel (0) target = $region9
    $region8: #{intent_detection_forward.1} parent=1 // pred_region
      %s34 = ssub.s32 1024, 1024
      %35 = vsyncadd [#allocation3], %s34
      %s36 = sshll.u32 [#allocation2], 4
      %s37 = int_to_ptr.vmem [resolvable:$true] %s36
      %42 = dma.hbm_to_vmem [thread:$0]  %s1, 1024, %s37, [#allocation3], 256, 256, 16
    $region9: #{intent_detection_forward.1} parent=1 // pred_fallthru
      _
    // Predicated region
    $region10: #{intent_detection_forward.1} parent=1 // pred_check
      _
    $region11: #{intent_detection_forward.1} parent=1 // pred_check_branch
      %44 = sbr.rel (0) target = $region13
    $region12: #{intent_detection_forward.1} parent=1 // pred_region
      %s46 = ssub.s32 32, 32
      %47 = vsyncadd [#allocation6], %s46
      %s49 = sshll.u32 [#allocation5], 4
      %s50 = int_to_ptr.vmem [resolvable:$true] %s49
      %52 = dma.hbm_to_vmem [thread:$0]  %s2, 32, %s50, [#allocation6]
    $region13: #{intent_detection_forward.1} parent=1 // pred_fallthru
      _
    // Predicated region
    $region14: #{intent_detection_forward.1} parent=1 // pred_check
      _
    $region15: #{intent_detection_forward.1} parent=1 // pred_check_branch
      %54 = sbr.rel (0) target = $region17
    $region16: #{intent_detection_forward.1} parent=1 // pred_region
      %s56 = ssub.s32 2048, 2048
      %57 = vsyncadd [#allocation6], %s56
      %s58 = sshll.u32 [#allocation7], 4
      %s59 = int_to_ptr.vmem [resolvable:$true] %s58
      %64 = dma.hbm_to_vmem [thread:$0]  %s3, 2048, %s59, [#allocation6], 256, 256, 16
    $region17: #{intent_detection_forward.1} parent=1 // pred_fallthru
      _
    // Predicated region
    $region18: #{intent_detection_forward.1} parent=1 // pred_check
      _
    $region19: #{intent_detection_forward.1} parent=1 // pred_check_branch
      %66 = sbr.rel (0) target = $region21
    $region20: #{intent_detection_forward.1} parent=1 // pred_region
      _
    $region21: #{intent_detection_forward.1} parent=1 // pred_fallthru
      _
    // Predicated region
    $region22: #{intent_detection_forward.1} parent=1 // pred_check
      _
    $region23: #{intent_detection_forward.1} parent=1 // pred_check_branch
      %68 = sbr.rel (0) target = $region25
    $region24: #{intent_detection_forward.1} parent=1 // pred_region
      %s70 = ssub.s32 32, 32
      %71 = vsyncadd [#allocation9], %s70
      %s73 = sshll.u32 [#allocation8], 4
      %s74 = int_to_ptr.vmem [resolvable:$true] %s73
      %76 = dma.hbm_to_vmem [thread:$0]  %s5, 32, %s74, [#allocation9]
    $region25: #{intent_detection_forward.1} parent=1 // pred_fallthru
      _
    // Predicated region
    $region26: #{intent_detection_forward.1} parent=1 // pred_check
      _
    $region27: #{intent_detection_forward.1} parent=1 // pred_check_branch
      %78 = sbr.rel (0) target = $region29
    $region28: #{intent_detection_forward.1} parent=1 // pred_region
      %s80 = ssub.s32 2048, 2048
      %81 = vsyncadd [#allocation9], %s80
      %s82 = sshll.u32 [#allocation10], 4
      %s83 = int_to_ptr.vmem [resolvable:$true] %s82
      %88 = dma.hbm_to_vmem [thread:$0]  %s6, 2048, %s83, [#allocation9], 256, 256, 16
    $region29: #{intent_detection_forward.1} parent=1 // pred_fallthru
      _
    // Predicated region
    $region30: #{intent_detection_forward.1} parent=1 // pred_check
      _
    $region31: #{intent_detection_forward.1} parent=1 // pred_check_branch
      %90 = sbr.rel (0) target = $region33
    $region32: #{intent_detection_forward.1} parent=1 // pred_region
      %s92 = ssub.s32 4096, 4096
      %93 = vsyncadd [#allocation12], %s92
      %s94 = sshll.u32 [#allocation11], 4
      %s95 = int_to_ptr.vmem [resolvable:$true] %s94
      %100 = dma.hbm_to_vmem [thread:$0]  %s7, 4096, %s95, [#allocation12], 256, 256, 16
    $region33: #{intent_detection_forward.1} parent=1 // pred_fallthru
      _
    // Predicated region
    $region34: #{intent_detection_forward.1} parent=1 // pred_check
      _
    $region35: #{intent_detection_forward.1} parent=1 // pred_check_branch
      %102 = sbr.rel (0) target = $region37
    $region36: #{intent_detection_forward.1} parent=1 // pred_region
      %s104 = ssub.s32 32, 32
      %105 = vsyncadd [#allocation12], %s104
      %s107 = sshll.u32 [#allocation13], 4
      %s108 = int_to_ptr.vmem [resolvable:$true] %s107
      %110 = dma.hbm_to_vmem [thread:$0]  %s8, 32, %s108, [#allocation12]
    $region37: #{intent_detection_forward.1} parent=1 // pred_fallthru
      _
    // Predicated region
    $region38: #{intent_detection_forward.1} parent=1 // pred_check
      _
    $region39: #{intent_detection_forward.1} parent=1 // pred_check_branch
      %112 = sbr.rel (0) target = $region41
    $region40: #{intent_detection_forward.1} parent=1 // pred_region
      %s114 = ssub.s32 2048, 2048
      %115 = vsyncadd [#allocation15], %s114
      %s116 = sshll.u32 [#allocation14], 4
      %s117 = int_to_ptr.vmem [resolvable:$true] %s116
      %122 = dma.hbm_to_vmem [thread:$0]  %s9, 2048, %s117, [#allocation15], 256, 256, 16
    $region41: #{intent_detection_forward.1} parent=1 // pred_fallthru
      _
    // Predicated region
    $region42: #{intent_detection_forward.1} parent=1 // pred_check
      _
    $region43: #{intent_detection_forward.1} parent=1 // pred_check_branch
      %124 = sbr.rel (0) target = $region45
    $region44: #{intent_detection_forward.1} parent=1 // pred_region
      %s126 = ssub.s32 16, 16
      %127 = vsyncadd [#allocation15], %s126
      %s129 = sshll.u32 [#allocation16], 4
      %s130 = int_to_ptr.vmem [resolvable:$true] %s129
      %132 = dma.hbm_to_vmem [thread:$0]  %s10, 16, %s130, [#allocation15]
    $region45: #{intent_detection_forward.1} parent=1 // pred_fallthru
      _
    // Predicated region
    $region46: #{intent_detection_forward.1} parent=1 // pred_check
      _
    $region47: #{intent_detection_forward.1} parent=1 // pred_check_branch
      %134 = sbr.rel (0) target = $region49
    $region48: #{intent_detection_forward.1} parent=1 // pred_region
      %s136 = ssub.s32 16, 16
      %137 = vsyncadd [#allocation18], %s136
      %s139 = sshll.u32 [#allocation17], 4
      %s140 = int_to_ptr.vmem [resolvable:$true] %s139
      %142 = dma.hbm_to_vmem [thread:$0]  %s11, 16, %s140, [#allocation18]
    $region49: #{intent_detection_forward.1} parent=1 // pred_fallthru
      _
    // Predicated region
    $region50: #{intent_detection_forward.1} parent=1 // pred_check
      _
    $region51: #{intent_detection_forward.1} parent=1 // pred_check_branch
      %144 = sbr.rel (0) target = $region53
    $region52: #{intent_detection_forward.1} parent=1 // pred_region
      %s146 = ssub.s32 1024, 1024
      %147 = vsyncadd [#allocation18], %s146
      %s148 = sshll.u32 [#allocation19], 4
      %s149 = int_to_ptr.vmem [resolvable:$true] %s148
      %154 = dma.hbm_to_vmem [thread:$0]  %s12, 1024, %s149, [#allocation18], 128, 128, 8
    $region53: #{intent_detection_forward.1} parent=1 // pred_fallthru
      _
    // Predicated region
    $region54: #{intent_detection_forward.1} parent=1 // pred_check
      _
    $region55: #{intent_detection_forward.1} parent=1 // pred_check_branch
      %156 = sbr.rel (0) target = $region57
    $region56: #{intent_detection_forward.1} parent=1 // pred_region
      %s158 = ssub.s32 16, 16
      %159 = vsyncadd [#allocation21], %s158
      %s161 = sshll.u32 [#allocation20], 4
      %s162 = int_to_ptr.vmem [resolvable:$true] %s161
      %164 = dma.hbm_to_vmem [thread:$0]  %s13, 16, %s162, [#allocation21]
    $region57: #{intent_detection_forward.1} parent=1 // pred_fallthru
      _
    // Predicated region
    $region58: #{intent_detection_forward.1} parent=1 // pred_check
      _
    $region59: #{intent_detection_forward.1} parent=1 // pred_check_branch
      %166 = sbr.rel (0) target = $region61
    $region60: #{intent_detection_forward.1} parent=1 // pred_region
      _
    $region61: #{intent_detection_forward.1} parent=1 // pred_fallthru
      _
    // Predicated region
    $region62: #{intent_detection_forward.1} parent=1 // pred_check
      _
    $region63: #{intent_detection_forward.1} parent=1 // pred_check_branch
      %168 = sbr.rel (0) target = $region65
    $region64: #{intent_detection_forward.1} parent=1 // pred_region
      %s170 = ssub.s32 16, 16
      %171 = vsyncadd [#allocation21], %s170
      %s173 = sshll.u32 [#allocation22], 4
      %s174 = int_to_ptr.vmem [resolvable:$true] %s173
      %176 = dma.hbm_to_vmem [thread:$0]  %s15, 16, %s174, [#allocation21]
    $region65: #{intent_detection_forward.1} parent=1 // pred_fallthru
      _
    // Predicated region
    $region66: #{intent_detection_forward.1} parent=1 // pred_check
      _
    $region67: #{intent_detection_forward.1} parent=1 // pred_check_branch
      %178 = sbr.rel (0) target = $region69
    $region68: #{intent_detection_forward.1} parent=1 // pred_region
      %179 = dma.done [#allocation3], 1024
    $region69: #{intent_detection_forward.1} parent=1 // pred_fallthru
      _
    // Predicated region
    $region70: #{intent_detection_forward.1} parent=1 // pred_check
      _
    $region71: #{intent_detection_forward.1} parent=1 // pred_check_branch
      %181 = sbr.rel (0) target = $region73
    $region72: #{intent_detection_forward.1} parent=1 // pred_region
      %182 = dma.done [#allocation6], 32
    $region73: #{intent_detection_forward.1} parent=1 // pred_fallthru
      _
    // Predicated region
    $region74: #{intent_detection_forward.1} parent=1 // pred_check
      _
    $region75: #{intent_detection_forward.1} parent=1 // pred_check_branch
      %184 = sbr.rel (0) target = $region77
    $region76: #{intent_detection_forward.1} parent=1 // pred_region
      %185 = dma.done [#allocation6], 2048
    $region77: #{intent_detection_forward.1} parent=1 // pred_fallthru
      _
    // Predicated region
    $region78: #{intent_detection_forward.1} parent=1 // pred_check
      _
    $region79: #{intent_detection_forward.1} parent=1 // pred_check_branch
      %187 = sbr.rel (0) target = $region81
    $region80: #{intent_detection_forward.1} parent=1 // pred_region
      %188 = dma.done [#allocation9], 32
    $region81: #{intent_detection_forward.1} parent=1 // pred_fallthru
      _
    // Predicated region
    $region82: #{intent_detection_forward.1} parent=1 // pred_check
      _
    $region83: #{intent_detection_forward.1} parent=1 // pred_check_branch
      %190 = sbr.rel (0) target = $region85
    $region84: #{intent_detection_forward.1} parent=1 // pred_region
      %191 = dma.done [#allocation9], 2048
    $region85: #{intent_detection_forward.1} parent=1 // pred_fallthru
      _
    // Predicated region
    $region86: #{intent_detection_forward.1} parent=1 // pred_check
      _
    $region87: #{intent_detection_forward.1} parent=1 // pred_check_branch
      %193 = sbr.rel (0) target = $region89
    $region88: #{intent_detection_forward.1} parent=1 // pred_region
      %194 = dma.done [#allocation12], 4096
    $region89: #{intent_detection_forward.1} parent=1 // pred_fallthru
      _
    // Predicated region
    $region90: #{intent_detection_forward.1} parent=1 // pred_check
      _
    $region91: #{intent_detection_forward.1} parent=1 // pred_check_branch
      %196 = sbr.rel (0) target = $region93
    $region92: #{intent_detection_forward.1} parent=1 // pred_region
      %197 = dma.done [#allocation12], 32
    $region93: #{intent_detection_forward.1} parent=1 // pred_fallthru
      _
    // Predicated region
    $region94: #{intent_detection_forward.1} parent=1 // pred_check
      _
    $region95: #{intent_detection_forward.1} parent=1 // pred_check_branch
      %199 = sbr.rel (0) target = $region97
    $region96: #{intent_detection_forward.1} parent=1 // pred_region
      %200 = dma.done [#allocation15], 2048
    $region97: #{intent_detection_forward.1} parent=1 // pred_fallthru
      _
    // Predicated region
    $region98: #{intent_detection_forward.1} parent=1 // pred_check
      _
    $region99: #{intent_detection_forward.1} parent=1 // pred_check_branch
      %202 = sbr.rel (0) target = $region101
    $region100: #{intent_detection_forward.1} parent=1 // pred_region
      %203 = dma.done [#allocation15], 16
    $region101: #{intent_detection_forward.1} parent=1 // pred_fallthru
      _
    // Predicated region
    $region102: #{intent_detection_forward.1} parent=1 // pred_check
      _
    $region103: #{intent_detection_forward.1} parent=1 // pred_check_branch
      %205 = sbr.rel (0) target = $region105
    $region104: #{intent_detection_forward.1} parent=1 // pred_region
      %206 = dma.done [#allocation18], 16
    $region105: #{intent_detection_forward.1} parent=1 // pred_fallthru
      _
    // Predicated region
    $region106: #{intent_detection_forward.1} parent=1 // pred_check
      _
    $region107: #{intent_detection_forward.1} parent=1 // pred_check_branch
      %208 = sbr.rel (0) target = $region109
    $region108: #{intent_detection_forward.1} parent=1 // pred_region
      %209 = dma.done [#allocation18], 1024
    $region109: #{intent_detection_forward.1} parent=1 // pred_fallthru
      _
    // Predicated region
    $region110: #{intent_detection_forward.1} parent=1 // pred_check
      _
    $region111: #{intent_detection_forward.1} parent=1 // pred_check_branch
      %211 = sbr.rel (0) target = $region113
    $region112: #{intent_detection_forward.1} parent=1 // pred_region
      %212 = dma.done [#allocation21], 16
    $region113: #{intent_detection_forward.1} parent=1 // pred_fallthru
      _
    // Predicated region
    $region114: #{intent_detection_forward.1} parent=1 // pred_check
      _
    $region115: #{intent_detection_forward.1} parent=1 // pred_check_branch
      %214 = sbr.rel (0) target = $region117
    $region116: #{intent_detection_forward.1} parent=1 // pred_region
      %215 = dma.done [#allocation21], 16
    $region117: #{intent_detection_forward.1} parent=1 // pred_fallthru
      _
    %v216 = vld [vmem:[%s0] sm:$0xff]
    %v217 = vld [vmem:[%s0 + $0x8] sm:$0xff]
    %v218 = vld [vmem:[#allocation2] sm:$0xff]
    %v219 = vld [vmem:[#allocation2 + $0x8] sm:$0xff]
    %v220 = vld [vmem:[#allocation2 + $0x10] sm:$0xff]
    %v221 = vld [vmem:[#allocation2 + $0x18] sm:$0xff]
    %v222 = vld [vmem:[#allocation2 + $0x20] sm:$0xff]
    %v223 = vld [vmem:[#allocation2 + $0x28] sm:$0xff]
    %v224 = vld [vmem:[#allocation2 + $0x30] sm:$0xff]
    %v225 = vld [vmem:[#allocation2 + $0x38] sm:$0xff]
    %v226 = vld [vmem:[#allocation5] sm:$0x3]
    %v228 = vlaneseq
    %v229 = vshrl.u32 %v228, 7
    %v230 = vsub.s32 0, %v229
    %v231 = vrot.slane %v226, %v230
    %v232 = vlaneseq
    %v233 = vshrl.u32 %v232, 7
    %v234 = vsub.s32 1, %v233
    %v235 = vrot.slane %v226, %v234
    %vm238 = vcmask 261120
    %v240 = vsel %vm238, %v216, 0
    %v243 = vsel %vm238, %v217, 0
    %245 = vmatprep.subr.mxu0 %v219
    %246 = vmatpush1.msra.mxu0 %v218
    %247 = vmatprep.subr.mxu0 %v221
    %248 = vmatpush1.msra.mxu0 %v220
    %249 = vmatprep.subr.mxu0 %v223
    %250 = vmatpush1.msra.mxu0 %v222
    %251 = vmatprep.subr.mxu0 %v225
    %252 = vmatpush1.msra.mxu0 %v224
    %253 = vmatprep.subr.mxu0 0.0
    %254 = vmatpush1.msra.mxu0 0.0
    %255 = vmatprep.subr.mxu0 0.0
    %256 = vmatpush1.msra.mxu0 0.0
    %257 = vmatprep.subr.mxu0 0.0
    %258 = vmatpush1.msra.mxu0 0.0
    %259 = vmatprep.subr.mxu0 0.0
    %260 = vmatpush1.msra.mxu0 0.0
    %261 = vmatprep.subr.mxu0 0.0
    %262 = vmatpush1.msra.mxu0 0.0
    %263 = vmatprep.subr.mxu0 0.0
    %264 = vmatpush1.msra.mxu0 0.0
    %265 = vmatprep.subr.mxu0 0.0
    %266 = vmatpush1.msra.mxu0 0.0
    %267 = vmatprep.subr.mxu0 0.0
    %268 = vmatpush1.msra.mxu0 0.0
    %269 = vmatprep.subr.mxu0 0.0
    %270 = vmatpush1.msra.mxu0 0.0
    %271 = vmatprep.subr.mxu0 0.0
    %272 = vmatpush1.msra.mxu0 0.0
    %273 = vmatprep.subr.mxu0 0.0
    %274 = vmatpush1.msra.mxu0 0.0
    %275 = vmatprep.subr.mxu0 0.0
    %276 = vmatpush1.msra.mxu0 0.0
    %277 = vmatprep.subr.mxu0 0.0
    %278 = vmatpush1.msra.mxu0 0.0
    %279 = vmatprep.subr.mxu0 0.0
    %280 = vmatpush1.msra.mxu0 0.0
    %281 = vmatprep.subr.mxu0 0.0
    %282 = vmatpush1.msra.mxu0 0.0
    %283 = vmatprep.subr.mxu0 0.0
    %284 = vmatpush1.msra.mxu0 0.0
    %285 = vmatprep.subr.mxu0 0.0
    %286 = vmatpush1.msra.mxu0 0.0
    %287 = vmatprep.subr.mxu0 0.0
    %288 = vmatpush1.msra.mxu0 0.0
    %289 = vmatprep.subr.mxu0 0.0
    %290 = vmatpush1.msra.mxu0 0.0
    %291 = vmatprep.subr.mxu0 0.0
    %292 = vmatpush1.msra.mxu0 0.0
    %293 = vmatprep.subr.mxu0 0.0
    %294 = vmatpush1.msra.mxu0 0.0
    %295 = vmatprep.subr.mxu0 0.0
    %296 = vmatpush1.msra.mxu0 0.0
    %297 = vmatprep.subr.mxu0 0.0
    %298 = vmatpush1.msra.mxu0 0.0
    %299 = vmatprep.subr.mxu0 0.0
    %300 = vmatpush1.msra.mxu0 0.0
    %301 = vmatprep.subr.mxu0 0.0
    %302 = vmatpush1.msra.mxu0 0.0
    %303 = vmatprep.subr.mxu0 0.0
    %304 = vmatpush1.msra.mxu0 0.0
    %305 = vmatprep.subr.mxu0 0.0
    %306 = vmatpush1.msra.mxu0 0.0
    %307 = vmatprep.subr.mxu0 0.0
    %308 = vmatpush1.msra.mxu0 0.0
    %309 = vmatprep.mubr.f32.mxu0 0.0
    %310 = vmatmul.mubr.f32.gmra.mrb[0].mxu0 %v240
    %v311 = vpop.f32.mrb[0].mxu0
    %v312 = vadd.f32 %v231, %v311
    %v313 = vpop.f32.mrb[0].mxu0
    %v314 = vadd.f32 %v235, %v313
    %315 = vmatprep.mubr.f32.mxu0 0.0
    %316 = vmatmul.mubr.f32.gmra.mrb[0].mxu0 %v243
    %v317 = vpop.f32.mrb[0].mxu0
    %v318 = vadd.f32 %v231, %v317
    %v319 = vpop.f32.mrb[0].mxu0
    %v320 = vadd.f32 %v235, %v319
    %321 = vdwg.mxu0
    %v322 = vld [vmem:[#allocation7] sm:$0xff]
    %v323 = vld [vmem:[#allocation7 + $0x8] sm:$0xff]
    %v324 = vld [vmem:[#allocation7 + $0x10] sm:$0xff]
    %v325 = vld [vmem:[#allocation7 + $0x18] sm:$0xff]
    %v326 = vld [vmem:[#allocation7 + $0x20] sm:$0xff]
    %v327 = vld [vmem:[#allocation7 + $0x28] sm:$0xff]
    %v328 = vld [vmem:[#allocation7 + $0x30] sm:$0xff]
    %v329 = vld [vmem:[#allocation7 + $0x38] sm:$0xff]
    %v330 = vld [vmem:[#allocation7 + $0x40] sm:$0xff]
    %v331 = vld [vmem:[#allocation7 + $0x48] sm:$0xff]
    %v332 = vld [vmem:[#allocation7 + $0x50] sm:$0xff]
    %v333 = vld [vmem:[#allocation7 + $0x58] sm:$0xff]
    %v334 = vld [vmem:[#allocation7 + $0x60] sm:$0xff]
    %v335 = vld [vmem:[#allocation7 + $0x68] sm:$0xff]
    %v336 = vld [vmem:[#allocation7 + $0x70] sm:$0xff]
    %v337 = vld [vmem:[#allocation7 + $0x78] sm:$0xff]
    %vm338 = vcmask 523264
    %v340 = vsel %vm338, 0.0, 0
    %342 = vmatprep.subr.mxu0 %v323
    %343 = vmatpush1.msra.mxu0 %v322
    %344 = vmatprep.subr.mxu0 %v325
    %345 = vmatpush1.msra.mxu0 %v324
    %346 = vmatprep.subr.mxu0 %v327
    %347 = vmatpush1.msra.mxu0 %v326
    %348 = vmatprep.subr.mxu0 %v329
    %349 = vmatpush1.msra.mxu0 %v328
    %350 = vmatprep.subr.mxu0 %v331
    %351 = vmatpush1.msra.mxu0 %v330
    %352 = vmatprep.subr.mxu0 %v333
    %353 = vmatpush1.msra.mxu0 %v332
    %354 = vmatprep.subr.mxu0 %v335
    %355 = vmatpush1.msra.mxu0 %v334
    %356 = vmatprep.subr.mxu0 %v337
    %357 = vmatpush1.msra.mxu0 %v336
    %358 = vmatprep.subr.mxu0 0.0
    %359 = vmatpush1.msra.mxu0 0.0
    %360 = vmatprep.subr.mxu0 0.0
    %361 = vmatpush1.msra.mxu0 0.0
    %362 = vmatprep.subr.mxu0 0.0
    %363 = vmatpush1.msra.mxu0 0.0
    %364 = vmatprep.subr.mxu0 0.0
    %365 = vmatpush1.msra.mxu0 0.0
    %366 = vmatprep.subr.mxu0 0.0
    %367 = vmatpush1.msra.mxu0 0.0
    %368 = vmatprep.subr.mxu0 0.0
    %369 = vmatpush1.msra.mxu0 0.0
    %370 = vmatprep.subr.mxu0 0.0
    %371 = vmatpush1.msra.mxu0 0.0
    %372 = vmatprep.subr.mxu0 0.0
    %373 = vmatpush1.msra.mxu0 0.0
    %374 = vmatprep.subr.mxu0 0.0
    %375 = vmatpush1.msra.mxu0 0.0
    %376 = vmatprep.subr.mxu0 0.0
    %377 = vmatpush1.msra.mxu0 0.0
    %378 = vmatprep.subr.mxu0 0.0
    %379 = vmatpush1.msra.mxu0 0.0
    %380 = vmatprep.subr.mxu0 0.0
    %381 = vmatpush1.msra.mxu0 0.0
    %382 = vmatprep.subr.mxu0 0.0
    %383 = vmatpush1.msra.mxu0 0.0
    %384 = vmatprep.subr.mxu0 0.0
    %385 = vmatpush1.msra.mxu0 0.0
    %386 = vmatprep.subr.mxu0 0.0
    %387 = vmatpush1.msra.mxu0 0.0
    %388 = vmatprep.subr.mxu0 0.0
    %389 = vmatpush1.msra.mxu0 0.0
    %390 = vmatprep.subr.mxu0 0.0
    %391 = vmatpush1.msra.mxu0 0.0
    %392 = vmatprep.subr.mxu0 0.0
    %393 = vmatpush1.msra.mxu0 0.0
    %394 = vmatprep.subr.mxu0 0.0
    %395 = vmatpush1.msra.mxu0 0.0
    %396 = vmatprep.subr.mxu0 0.0
    %397 = vmatpush1.msra.mxu0 0.0
    %398 = vmatprep.subr.mxu0 0.0
    %399 = vmatpush1.msra.mxu0 0.0
    %400 = vmatprep.subr.mxu0 0.0
    %401 = vmatpush1.msra.mxu0 0.0
    %402 = vmatprep.subr.mxu0 0.0
    %403 = vmatpush1.msra.mxu0 0.0
    %404 = vmatprep.subr.mxu0 0.0
    %405 = vmatpush1.msra.mxu0 0.0
    %406 = vmatprep.mubr.f32.mxu0 0.0
    %407 = vmatmul.mubr.f32.gmra.mrb[0].mxu0 %v340
    %v408 = vpop.f32.mrb[0].mxu0
    %v409 = vadd.f32 0.0, %v408
    %v410 = vpop.f32.mrb[0].mxu0
    %v411 = vadd.f32 0.0, %v410
    %412 = vdwg.mxu0
    %v413 = vadd.f32 %v312, %v409
    %v414 = vadd.f32 %v314, %v411
    %v415 = vmul.f32 %v413, 0.5
    %v416 = vmul.f32 %v414, 0.5
    %v417 = vtanh.pop %v415
    %v418 = vtanh.pop %v416
    %v419 = vmul.f32 %v417, 0.5
    %v420 = vmul.f32 %v418, 0.5
    %v421 = vadd.f32 %v419, 0.5
    %v422 = vadd.f32 %v420, 0.5
    %v423 = vtanh.pop %v414
    %v424 = vmul.f32 %v421, 0.0
    %426 = vrot.lane.b32.xlu0 %v423, 64
    %v427 = vpop.permute.xlu0 %426
    %v429 = vmul.f32 %v421, %v427
    %431 = vrot.lane.b32.xlu0 %v429, 64
    %v432 = vpop.permute.xlu0 %431
    %v434 = vadd.f32 %v424, %v432
    %v435 = vtanh.pop %v434
    %437 = vrot.lane.b32.xlu0 %v435, 64
    %v438 = vpop.permute.xlu0 %437
    %v440 = vmul.f32 %v422, %v438
    %v442 = vsel %vm338, %v440, 0
    %444 = vmatprep.subr.mxu0 %v323
    %445 = vmatpush1.msra.mxu0 %v322
    %446 = vmatprep.subr.mxu0 %v325
    %447 = vmatpush1.msra.mxu0 %v324
    %448 = vmatprep.subr.mxu0 %v327
    %449 = vmatpush1.msra.mxu0 %v326
    %450 = vmatprep.subr.mxu0 %v329
    %451 = vmatpush1.msra.mxu0 %v328
    %452 = vmatprep.subr.mxu0 %v331
    %453 = vmatpush1.msra.mxu0 %v330
    %454 = vmatprep.subr.mxu0 %v333
    %455 = vmatpush1.msra.mxu0 %v332
    %456 = vmatprep.subr.mxu0 %v335
    %457 = vmatpush1.msra.mxu0 %v334
    %458 = vmatprep.subr.mxu0 %v337
    %459 = vmatpush1.msra.mxu0 %v336
    %460 = vmatprep.subr.mxu0 0.0
    %461 = vmatpush1.msra.mxu0 0.0
    %462 = vmatprep.subr.mxu0 0.0
    %463 = vmatpush1.msra.mxu0 0.0
    %464 = vmatprep.subr.mxu0 0.0
    %465 = vmatpush1.msra.mxu0 0.0
    %466 = vmatprep.subr.mxu0 0.0
    %467 = vmatpush1.msra.mxu0 0.0
    %468 = vmatprep.subr.mxu0 0.0
    %469 = vmatpush1.msra.mxu0 0.0
    %470 = vmatprep.subr.mxu0 0.0
    %471 = vmatpush1.msra.mxu0 0.0
    %472 = vmatprep.subr.mxu0 0.0
    %473 = vmatpush1.msra.mxu0 0.0
    %474 = vmatprep.subr.mxu0 0.0
    %475 = vmatpush1.msra.mxu0 0.0
    %476 = vmatprep.subr.mxu0 0.0
    %477 = vmatpush1.msra.mxu0 0.0
    %478 = vmatprep.subr.mxu0 0.0
    %479 = vmatpush1.msra.mxu0 0.0
    %480 = vmatprep.subr.mxu0 0.0
    %481 = vmatpush1.msra.mxu0 0.0
    %482 = vmatprep.subr.mxu0 0.0
    %483 = vmatpush1.msra.mxu0 0.0
    %484 = vmatprep.subr.mxu0 0.0
    %485 = vmatpush1.msra.mxu0 0.0
    %486 = vmatprep.subr.mxu0 0.0
    %487 = vmatpush1.msra.mxu0 0.0
    %488 = vmatprep.subr.mxu0 0.0
    %489 = vmatpush1.msra.mxu0 0.0
    %490 = vmatprep.subr.mxu0 0.0
    %491 = vmatpush1.msra.mxu0 0.0
    %492 = vmatprep.subr.mxu0 0.0
    %493 = vmatpush1.msra.mxu0 0.0
    %494 = vmatprep.subr.mxu0 0.0
    %495 = vmatpush1.msra.mxu0 0.0
    %496 = vmatprep.subr.mxu0 0.0
    %497 = vmatpush1.msra.mxu0 0.0
    %498 = vmatprep.subr.mxu0 0.0
    %499 = vmatpush1.msra.mxu0 0.0
    %500 = vmatprep.subr.mxu0 0.0
    %501 = vmatpush1.msra.mxu0 0.0
    %502 = vmatprep.subr.mxu0 0.0
    %503 = vmatpush1.msra.mxu0 0.0
    %504 = vmatprep.subr.mxu0 0.0
    %505 = vmatpush1.msra.mxu0 0.0
    %506 = vmatprep.subr.mxu0 0.0
    %507 = vmatpush1.msra.mxu0 0.0
    %508 = vmatprep.mubr.f32.mxu0 0.0
    %509 = vmatmul.mubr.f32.gmra.mrb[0].mxu0 %v442
    %v510 = vpop.f32.mrb[0].mxu0
    %v511 = vadd.f32 0.0, %v510
    %v512 = vpop.f32.mrb[0].mxu0
    %v513 = vadd.f32 0.0, %v512
    %514 = vdwg.mxu0
    %v517 = vrot.slane %v511, 6
    %v518 = vrot.slane %v513, 6
    %v521 = vadd.f32 %v312, %v517
    %v522 = vadd.f32 %v314, %v518
    %v523 = vmul.f32 %v521, 0.5
    %v524 = vmul.f32 %v522, 0.5
    %v525 = vtanh.pop %v523
    %v526 = vtanh.pop %v524
    %v527 = vmul.f32 %v525, 0.5
    %v528 = vmul.f32 %v526, 0.5
    %v529 = vadd.f32 %v527, 0.5
    %v530 = vadd.f32 %v528, 0.5
    %v531 = vtanh.pop %v522
    %v533 = vrot.slane %v434, 6
    %v535 = vmul.f32 %v529, %v533
    %537 = vrot.lane.b32.xlu0 %v531, 64
    %v538 = vpop.permute.xlu0 %537
    %v540 = vmul.f32 %v529, %v538
    %542 = vrot.lane.b32.xlu0 %v540, 64
    %v543 = vpop.permute.xlu0 %542
    %v545 = vadd.f32 %v535, %v543
    %v546 = vtanh.pop %v545
    %548 = vrot.lane.b32.xlu0 %v546, 64
    %v549 = vpop.permute.xlu0 %548
    %v551 = vmul.f32 %v530, %v549
    %v553 = vrot.slane %v551, 2
    %v554 = vsel %vm338, %v553, 0
    %556 = vmatprep.subr.mxu0 %v323
    %557 = vmatpush1.msra.mxu0 %v322
    %558 = vmatprep.subr.mxu0 %v325
    %559 = vmatpush1.msra.mxu0 %v324
    %560 = vmatprep.subr.mxu0 %v327
    %561 = vmatpush1.msra.mxu0 %v326
    %562 = vmatprep.subr.mxu0 %v329
    %563 = vmatpush1.msra.mxu0 %v328
    %564 = vmatprep.subr.mxu0 %v331
    %565 = vmatpush1.msra.mxu0 %v330
    %566 = vmatprep.subr.mxu0 %v333
    %567 = vmatpush1.msra.mxu0 %v332
    %568 = vmatprep.subr.mxu0 %v335
    %569 = vmatpush1.msra.mxu0 %v334
    %570 = vmatprep.subr.mxu0 %v337
    %571 = vmatpush1.msra.mxu0 %v336
    %572 = vmatprep.subr.mxu0 0.0
    %573 = vmatpush1.msra.mxu0 0.0
    %574 = vmatprep.subr.mxu0 0.0
    %575 = vmatpush1.msra.mxu0 0.0
    %576 = vmatprep.subr.mxu0 0.0
    %577 = vmatpush1.msra.mxu0 0.0
    %578 = vmatprep.subr.mxu0 0.0
    %579 = vmatpush1.msra.mxu0 0.0
    %580 = vmatprep.subr.mxu0 0.0
    %581 = vmatpush1.msra.mxu0 0.0
    %582 = vmatprep.subr.mxu0 0.0
    %583 = vmatpush1.msra.mxu0 0.0
    %584 = vmatprep.subr.mxu0 0.0
    %585 = vmatpush1.msra.mxu0 0.0
    %586 = vmatprep.subr.mxu0 0.0
    %587 = vmatpush1.msra.mxu0 0.0
    %588 = vmatprep.subr.mxu0 0.0
    %589 = vmatpush1.msra.mxu0 0.0
    %590 = vmatprep.subr.mxu0 0.0
    %591 = vmatpush1.msra.mxu0 0.0
    %592 = vmatprep.subr.mxu0 0.0
    %593 = vmatpush1.msra.mxu0 0.0
    %594 = vmatprep.subr.mxu0 0.0
    %595 = vmatpush1.msra.mxu0 0.0
    %596 = vmatprep.subr.mxu0 0.0
    %597 = vmatpush1.msra.mxu0 0.0
    %598 = vmatprep.subr.mxu0 0.0
    %599 = vmatpush1.msra.mxu0 0.0
    %600 = vmatprep.subr.mxu0 0.0
    %601 = vmatpush1.msra.mxu0 0.0
    %602 = vmatprep.subr.mxu0 0.0
    %603 = vmatpush1.msra.mxu0 0.0
    %604 = vmatprep.subr.mxu0 0.0
    %605 = vmatpush1.msra.mxu0 0.0
    %606 = vmatprep.subr.mxu0 0.0
    %607 = vmatpush1.msra.mxu0 0.0
    %608 = vmatprep.subr.mxu0 0.0
    %609 = vmatpush1.msra.mxu0 0.0
    %610 = vmatprep.subr.mxu0 0.0
    %611 = vmatpush1.msra.mxu0 0.0
    %612 = vmatprep.subr.mxu0 0.0
    %613 = vmatpush1.msra.mxu0 0.0
    %614 = vmatprep.subr.mxu0 0.0
    %615 = vmatpush1.msra.mxu0 0.0
    %616 = vmatprep.subr.mxu0 0.0
    %617 = vmatpush1.msra.mxu0 0.0
    %618 = vmatprep.subr.mxu0 0.0
    %619 = vmatpush1.msra.mxu0 0.0
    %620 = vmatprep.mubr.f32.mxu0 0.0
    %621 = vmatmul.mubr.f32.gmra.mrb[0].mxu0 %v554
    %v622 = vpop.f32.mrb[0].mxu0
    %v623 = vadd.f32 0.0, %v622
    %v624 = vpop.f32.mrb[0].mxu0
    %v625 = vadd.f32 0.0, %v624
    %626 = vdwg.mxu0
    %v629 = vrot.slane %v623, 4
    %v630 = vrot.slane %v625, 4
    %v633 = vadd.f32 %v312, %v629
    %v634 = vadd.f32 %v314, %v630
    %v635 = vmul.f32 %v633, 0.5
    %v636 = vmul.f32 %v634, 0.5
    %v637 = vtanh.pop %v635
    %v638 = vtanh.pop %v636
    %v639 = vmul.f32 %v637, 0.5
    %v640 = vmul.f32 %v638, 0.5
    %v641 = vadd.f32 %v639, 0.5
    %v642 = vadd.f32 %v640, 0.5
    %v643 = vtanh.pop %v634
    %v645 = vrot.slane %v545, 6
    %v647 = vmul.f32 %v641, %v645
    %649 = vrot.lane.b32.xlu0 %v643, 64
    %v650 = vpop.permute.xlu0 %649
    %v652 = vmul.f32 %v641, %v650
    %654 = vrot.lane.b32.xlu0 %v652, 64
    %v655 = vpop.permute.xlu0 %654
    %v657 = vadd.f32 %v647, %v655
    %v658 = vtanh.pop %v657
    %660 = vrot.lane.b32.xlu0 %v658, 64
    %v661 = vpop.permute.xlu0 %660
    %v663 = vmul.f32 %v642, %v661
    %v665 = vrot.slane %v663, 4
    %v666 = vsel %vm338, %v665, 0
    %668 = vmatprep.subr.mxu0 %v323
    %669 = vmatpush1.msra.mxu0 %v322
    %670 = vmatprep.subr.mxu0 %v325
    %671 = vmatpush1.msra.mxu0 %v324
    %672 = vmatprep.subr.mxu0 %v327
    %673 = vmatpush1.msra.mxu0 %v326
    %674 = vmatprep.subr.mxu0 %v329
    %675 = vmatpush1.msra.mxu0 %v328
    %676 = vmatprep.subr.mxu0 %v331
    %677 = vmatpush1.msra.mxu0 %v330
    %678 = vmatprep.subr.mxu0 %v333
    %679 = vmatpush1.msra.mxu0 %v332
    %680 = vmatprep.subr.mxu0 %v335
    %681 = vmatpush1.msra.mxu0 %v334
    %682 = vmatprep.subr.mxu0 %v337
    %683 = vmatpush1.msra.mxu0 %v336
    %684 = vmatprep.subr.mxu0 0.0
    %685 = vmatpush1.msra.mxu0 0.0
    %686 = vmatprep.subr.mxu0 0.0
    %687 = vmatpush1.msra.mxu0 0.0
    %688 = vmatprep.subr.mxu0 0.0
    %689 = vmatpush1.msra.mxu0 0.0
    %690 = vmatprep.subr.mxu0 0.0
    %691 = vmatpush1.msra.mxu0 0.0
    %692 = vmatprep.subr.mxu0 0.0
    %693 = vmatpush1.msra.mxu0 0.0
    %694 = vmatprep.subr.mxu0 0.0
    %695 = vmatpush1.msra.mxu0 0.0
    %696 = vmatprep.subr.mxu0 0.0
    %697 = vmatpush1.msra.mxu0 0.0
    %698 = vmatprep.subr.mxu0 0.0
    %699 = vmatpush1.msra.mxu0 0.0
    %700 = vmatprep.subr.mxu0 0.0
    %701 = vmatpush1.msra.mxu0 0.0
    %702 = vmatprep.subr.mxu0 0.0
    %703 = vmatpush1.msra.mxu0 0.0
    %704 = vmatprep.subr.mxu0 0.0
    %705 = vmatpush1.msra.mxu0 0.0
    %706 = vmatprep.subr.mxu0 0.0
    %707 = vmatpush1.msra.mxu0 0.0
    %708 = vmatprep.subr.mxu0 0.0
    %709 = vmatpush1.msra.mxu0 0.0
    %710 = vmatprep.subr.mxu0 0.0
    %711 = vmatpush1.msra.mxu0 0.0
    %712 = vmatprep.subr.mxu0 0.0
    %713 = vmatpush1.msra.mxu0 0.0
    %714 = vmatprep.subr.mxu0 0.0
    %715 = vmatpush1.msra.mxu0 0.0
    %716 = vmatprep.subr.mxu0 0.0
    %717 = vmatpush1.msra.mxu0 0.0
    %718 = vmatprep.subr.mxu0 0.0
    %719 = vmatpush1.msra.mxu0 0.0
    %720 = vmatprep.subr.mxu0 0.0
    %721 = vmatpush1.msra.mxu0 0.0
    %722 = vmatprep.subr.mxu0 0.0
    %723 = vmatpush1.msra.mxu0 0.0
    %724 = vmatprep.subr.mxu0 0.0
    %725 = vmatpush1.msra.mxu0 0.0
    %726 = vmatprep.subr.mxu0 0.0
    %727 = vmatpush1.msra.mxu0 0.0
    %728 = vmatprep.subr.mxu0 0.0
    %729 = vmatpush1.msra.mxu0 0.0
    %730 = vmatprep.subr.mxu0 0.0
    %731 = vmatpush1.msra.mxu0 0.0
    %732 = vmatprep.mubr.f32.mxu0 0.0
    %733 = vmatmul.mubr.f32.gmra.mrb[0].mxu0 %v666
    %v734 = vpop.f32.mrb[0].mxu0
    %v735 = vadd.f32 0.0, %v734
    %v736 = vpop.f32.mrb[0].mxu0
    %v737 = vadd.f32 0.0, %v736
    %738 = vdwg.mxu0
    %v741 = vrot.slane %v735, 2
    %v742 = vrot.slane %v737, 2
    %v745 = vadd.f32 %v312, %v741
    %v746 = vadd.f32 %v314, %v742
    %v747 = vmul.f32 %v745, 0.5
    %v748 = vmul.f32 %v746, 0.5
    %v749 = vtanh.pop %v747
    %v750 = vtanh.pop %v748
    %v751 = vmul.f32 %v749, 0.5
    %v752 = vmul.f32 %v750, 0.5
    %v753 = vadd.f32 %v751, 0.5
    %v754 = vadd.f32 %v752, 0.5
    %v755 = vtanh.pop %v746
    %v757 = vrot.slane %v657, 6
    %v759 = vmul.f32 %v753, %v757
    %761 = vrot.lane.b32.xlu0 %v755, 64
    %v762 = vpop.permute.xlu0 %761
    %v764 = vmul.f32 %v753, %v762
    %766 = vrot.lane.b32.xlu0 %v764, 64
    %v767 = vpop.permute.xlu0 %766
    %v769 = vadd.f32 %v759, %v767
    %v770 = vtanh.pop %v769
    %772 = vrot.lane.b32.xlu0 %v770, 64
    %v773 = vpop.permute.xlu0 %772
    %v775 = vmul.f32 %v754, %v773
    %v777 = vrot.slane %v775, 6
    %v778 = vsel %vm338, %v777, 0
    %780 = vmatprep.subr.mxu0 %v323
    %781 = vmatpush1.msra.mxu0 %v322
    %782 = vmatprep.subr.mxu0 %v325
    %783 = vmatpush1.msra.mxu0 %v324
    %784 = vmatprep.subr.mxu0 %v327
    %785 = vmatpush1.msra.mxu0 %v326
    %786 = vmatprep.subr.mxu0 %v329
    %787 = vmatpush1.msra.mxu0 %v328
    %788 = vmatprep.subr.mxu0 %v331
    %789 = vmatpush1.msra.mxu0 %v330
    %790 = vmatprep.subr.mxu0 %v333
    %791 = vmatpush1.msra.mxu0 %v332
    %792 = vmatprep.subr.mxu0 %v335
    %793 = vmatpush1.msra.mxu0 %v334
    %794 = vmatprep.subr.mxu0 %v337
    %795 = vmatpush1.msra.mxu0 %v336
    %796 = vmatprep.subr.mxu0 0.0
    %797 = vmatpush1.msra.mxu0 0.0
    %798 = vmatprep.subr.mxu0 0.0
    %799 = vmatpush1.msra.mxu0 0.0
    %800 = vmatprep.subr.mxu0 0.0
    %801 = vmatpush1.msra.mxu0 0.0
    %802 = vmatprep.subr.mxu0 0.0
    %803 = vmatpush1.msra.mxu0 0.0
    %804 = vmatprep.subr.mxu0 0.0
    %805 = vmatpush1.msra.mxu0 0.0
    %806 = vmatprep.subr.mxu0 0.0
    %807 = vmatpush1.msra.mxu0 0.0
    %808 = vmatprep.subr.mxu0 0.0
    %809 = vmatpush1.msra.mxu0 0.0
    %810 = vmatprep.subr.mxu0 0.0
    %811 = vmatpush1.msra.mxu0 0.0
    %812 = vmatprep.subr.mxu0 0.0
    %813 = vmatpush1.msra.mxu0 0.0
    %814 = vmatprep.subr.mxu0 0.0
    %815 = vmatpush1.msra.mxu0 0.0
    %816 = vmatprep.subr.mxu0 0.0
    %817 = vmatpush1.msra.mxu0 0.0
    %818 = vmatprep.subr.mxu0 0.0
    %819 = vmatpush1.msra.mxu0 0.0
    %820 = vmatprep.subr.mxu0 0.0
    %821 = vmatpush1.msra.mxu0 0.0
    %822 = vmatprep.subr.mxu0 0.0
    %823 = vmatpush1.msra.mxu0 0.0
    %824 = vmatprep.subr.mxu0 0.0
    %825 = vmatpush1.msra.mxu0 0.0
    %826 = vmatprep.subr.mxu0 0.0
    %827 = vmatpush1.msra.mxu0 0.0
    %828 = vmatprep.subr.mxu0 0.0
    %829 = vmatpush1.msra.mxu0 0.0
    %830 = vmatprep.subr.mxu0 0.0
    %831 = vmatpush1.msra.mxu0 0.0
    %832 = vmatprep.subr.mxu0 0.0
    %833 = vmatpush1.msra.mxu0 0.0
    %834 = vmatprep.subr.mxu0 0.0
    %835 = vmatpush1.msra.mxu0 0.0
    %836 = vmatprep.subr.mxu0 0.0
    %837 = vmatpush1.msra.mxu0 0.0
    %838 = vmatprep.subr.mxu0 0.0
    %839 = vmatpush1.msra.mxu0 0.0
    %840 = vmatprep.subr.mxu0 0.0
    %841 = vmatpush1.msra.mxu0 0.0
    %842 = vmatprep.subr.mxu0 0.0
    %843 = vmatpush1.msra.mxu0 0.0
    %844 = vmatprep.mubr.f32.mxu0 0.0
    %845 = vmatmul.mubr.f32.gmra.mrb[0].mxu0 %v778
    %v846 = vpop.f32.mrb[0].mxu0
    %v847 = vadd.f32 0.0, %v846
    %v848 = vpop.f32.mrb[0].mxu0
    %v849 = vadd.f32 0.0, %v848
    %850 = vdwg.mxu0
    %v851 = vadd.f32 %v318, %v847
    %v852 = vadd.f32 %v320, %v849
    %v853 = vmul.f32 %v851, 0.5
    %v854 = vmul.f32 %v852, 0.5
    %v855 = vtanh.pop %v853
    %v856 = vtanh.pop %v854
    %v857 = vmul.f32 %v855, 0.5
    %v858 = vmul.f32 %v856, 0.5
    %v859 = vadd.f32 %v857, 0.5
    %v860 = vadd.f32 %v858, 0.5
    %v861 = vtanh.pop %v852
    %v863 = vrot.slane %v769, 6
    %v865 = vmul.f32 %v859, %v863
    %867 = vrot.lane.b32.xlu0 %v861, 64
    %v868 = vpop.permute.xlu0 %867
    %v870 = vmul.f32 %v859, %v868
    %872 = vrot.lane.b32.xlu0 %v870, 64
    %v873 = vpop.permute.xlu0 %872
    %v875 = vadd.f32 %v865, %v873
    %v876 = vtanh.pop %v875
    %878 = vrot.lane.b32.xlu0 %v876, 64
    %v879 = vpop.permute.xlu0 %878
    %v881 = vmul.f32 %v860, %v879
    %v883 = vsel %vm338, %v881, 0
    %885 = vmatprep.subr.mxu0 %v323
    %886 = vmatpush1.msra.mxu0 %v322
    %887 = vmatprep.subr.mxu0 %v325
    %888 = vmatpush1.msra.mxu0 %v324
    %889 = vmatprep.subr.mxu0 %v327
    %890 = vmatpush1.msra.mxu0 %v326
    %891 = vmatprep.subr.mxu0 %v329
    %892 = vmatpush1.msra.mxu0 %v328
    %893 = vmatprep.subr.mxu0 %v331
    %894 = vmatpush1.msra.mxu0 %v330
    %895 = vmatprep.subr.mxu0 %v333
    %896 = vmatpush1.msra.mxu0 %v332
    %897 = vmatprep.subr.mxu0 %v335
    %898 = vmatpush1.msra.mxu0 %v334
    %899 = vmatprep.subr.mxu0 %v337
    %900 = vmatpush1.msra.mxu0 %v336
    %901 = vmatprep.subr.mxu0 0.0
    %902 = vmatpush1.msra.mxu0 0.0
    %903 = vmatprep.subr.mxu0 0.0
    %904 = vmatpush1.msra.mxu0 0.0
    %905 = vmatprep.subr.mxu0 0.0
    %906 = vmatpush1.msra.mxu0 0.0
    %907 = vmatprep.subr.mxu0 0.0
    %908 = vmatpush1.msra.mxu0 0.0
    %909 = vmatprep.subr.mxu0 0.0
    %910 = vmatpush1.msra.mxu0 0.0
    %911 = vmatprep.subr.mxu0 0.0
    %912 = vmatpush1.msra.mxu0 0.0
    %913 = vmatprep.subr.mxu0 0.0
    %914 = vmatpush1.msra.mxu0 0.0
    %915 = vmatprep.subr.mxu0 0.0
    %916 = vmatpush1.msra.mxu0 0.0
    %917 = vmatprep.subr.mxu0 0.0
    %918 = vmatpush1.msra.mxu0 0.0
    %919 = vmatprep.subr.mxu0 0.0
    %920 = vmatpush1.msra.mxu0 0.0
    %921 = vmatprep.subr.mxu0 0.0
    %922 = vmatpush1.msra.mxu0 0.0
    %923 = vmatprep.subr.mxu0 0.0
    %924 = vmatpush1.msra.mxu0 0.0
    %925 = vmatprep.subr.mxu0 0.0
    %926 = vmatpush1.msra.mxu0 0.0
    %927 = vmatprep.subr.mxu0 0.0
    %928 = vmatpush1.msra.mxu0 0.0
    %929 = vmatprep.subr.mxu0 0.0
    %930 = vmatpush1.msra.mxu0 0.0
    %931 = vmatprep.subr.mxu0 0.0
    %932 = vmatpush1.msra.mxu0 0.0
    %933 = vmatprep.subr.mxu0 0.0
    %934 = vmatpush1.msra.mxu0 0.0
    %935 = vmatprep.subr.mxu0 0.0
    %936 = vmatpush1.msra.mxu0 0.0
    %937 = vmatprep.subr.mxu0 0.0
    %938 = vmatpush1.msra.mxu0 0.0
    %939 = vmatprep.subr.mxu0 0.0
    %940 = vmatpush1.msra.mxu0 0.0
    %941 = vmatprep.subr.mxu0 0.0
    %942 = vmatpush1.msra.mxu0 0.0
    %943 = vmatprep.subr.mxu0 0.0
    %944 = vmatpush1.msra.mxu0 0.0
    %945 = vmatprep.subr.mxu0 0.0
    %946 = vmatpush1.msra.mxu0 0.0
    %947 = vmatprep.subr.mxu0 0.0
    %948 = vmatpush1.msra.mxu0 0.0
    %949 = vmatprep.mubr.f32.mxu0 0.0
    %950 = vmatmul.mubr.f32.gmra.mrb[0].mxu0 %v883
    %v951 = vpop.f32.mrb[0].mxu0
    %v952 = vadd.f32 0.0, %v951
    %v953 = vpop.f32.mrb[0].mxu0
    %v954 = vadd.f32 0.0, %v953
    %955 = vdwg.mxu0
    %v958 = vrot.slane %v952, 6
    %v959 = vrot.slane %v954, 6
    %v962 = vadd.f32 %v318, %v958
    %v963 = vadd.f32 %v320, %v959
    %v964 = vmul.f32 %v962, 0.5
    %v965 = vmul.f32 %v963, 0.5
    %v966 = vtanh.pop %v964
    %v967 = vtanh.pop %v965
    %v968 = vmul.f32 %v966, 0.5
    %v969 = vmul.f32 %v967, 0.5
    %v970 = vadd.f32 %v968, 0.5
    %v971 = vadd.f32 %v969, 0.5
    %v972 = vtanh.pop %v963
    %v974 = vrot.slane %v875, 6
    %v976 = vmul.f32 %v970, %v974
    %978 = vrot.lane.b32.xlu0 %v972, 64
    %v979 = vpop.permute.xlu0 %978
    %v981 = vmul.f32 %v970, %v979
    %983 = vrot.lane.b32.xlu0 %v981, 64
    %v984 = vpop.permute.xlu0 %983
    %v986 = vadd.f32 %v976, %v984
    %v987 = vtanh.pop %v986
    %989 = vrot.lane.b32.xlu0 %v987, 64
    %v990 = vpop.permute.xlu0 %989
    %v992 = vmul.f32 %v971, %v990
    %v994 = vrot.slane %v992, 2
    %v995 = vsel %vm338, %v994, 0
    %997 = vmatprep.subr.mxu0 %v323
    %998 = vmatpush1.msra.mxu0 %v322
    %999 = vmatprep.subr.mxu0 %v325
    %1000 = vmatpush1.msra.mxu0 %v324
    %1001 = vmatprep.subr.mxu0 %v327
    %1002 = vmatpush1.msra.mxu0 %v326
    %1003 = vmatprep.subr.mxu0 %v329
    %1004 = vmatpush1.msra.mxu0 %v328
    %1005 = vmatprep.subr.mxu0 %v331
    %1006 = vmatpush1.msra.mxu0 %v330
    %1007 = vmatprep.subr.mxu0 %v333
    %1008 = vmatpush1.msra.mxu0 %v332
    %1009 = vmatprep.subr.mxu0 %v335
    %1010 = vmatpush1.msra.mxu0 %v334
    %1011 = vmatprep.subr.mxu0 %v337
    %1012 = vmatpush1.msra.mxu0 %v336
    %1013 = vmatprep.subr.mxu0 0.0
    %1014 = vmatpush1.msra.mxu0 0.0
    %1015 = vmatprep.subr.mxu0 0.0
    %1016 = vmatpush1.msra.mxu0 0.0
    %1017 = vmatprep.subr.mxu0 0.0
    %1018 = vmatpush1.msra.mxu0 0.0
    %1019 = vmatprep.subr.mxu0 0.0
    %1020 = vmatpush1.msra.mxu0 0.0
    %1021 = vmatprep.subr.mxu0 0.0
    %1022 = vmatpush1.msra.mxu0 0.0
    %1023 = vmatprep.subr.mxu0 0.0
    %1024 = vmatpush1.msra.mxu0 0.0
    %1025 = vmatprep.subr.mxu0 0.0
    %1026 = vmatpush1.msra.mxu0 0.0
    %1027 = vmatprep.subr.mxu0 0.0
    %1028 = vmatpush1.msra.mxu0 0.0
    %1029 = vmatprep.subr.mxu0 0.0
    %1030 = vmatpush1.msra.mxu0 0.0
    %1031 = vmatprep.subr.mxu0 0.0
    %1032 = vmatpush1.msra.mxu0 0.0
    %1033 = vmatprep.subr.mxu0 0.0
    %1034 = vmatpush1.msra.mxu0 0.0
    %1035 = vmatprep.subr.mxu0 0.0
    %1036 = vmatpush1.msra.mxu0 0.0
    %1037 = vmatprep.subr.mxu0 0.0
    %1038 = vmatpush1.msra.mxu0 0.0
    %1039 = vmatprep.subr.mxu0 0.0
    %1040 = vmatpush1.msra.mxu0 0.0
    %1041 = vmatprep.subr.mxu0 0.0
    %1042 = vmatpush1.msra.mxu0 0.0
    %1043 = vmatprep.subr.mxu0 0.0
    %1044 = vmatpush1.msra.mxu0 0.0
    %1045 = vmatprep.subr.mxu0 0.0
    %1046 = vmatpush1.msra.mxu0 0.0
    %1047 = vmatprep.subr.mxu0 0.0
    %1048 = vmatpush1.msra.mxu0 0.0
    %1049 = vmatprep.subr.mxu0 0.0
    %1050 = vmatpush1.msra.mxu0 0.0
    %1051 = vmatprep.subr.mxu0 0.0
    %1052 = vmatpush1.msra.mxu0 0.0
    %1053 = vmatprep.subr.mxu0 0.0
    %1054 = vmatpush1.msra.mxu0 0.0
    %1055 = vmatprep.subr.mxu0 0.0
    %1056 = vmatpush1.msra.mxu0 0.0
    %1057 = vmatprep.subr.mxu0 0.0
    %1058 = vmatpush1.msra.mxu0 0.0
    %1059 = vmatprep.subr.mxu0 0.0
    %1060 = vmatpush1.msra.mxu0 0.0
    %1061 = vmatprep.mubr.f32.mxu0 0.0
    %1062 = vmatmul.mubr.f32.gmra.mrb[0].mxu0 %v995
    %v1063 = vpop.f32.mrb[0].mxu0
    %v1064 = vadd.f32 0.0, %v1063
    %v1065 = vpop.f32.mrb[0].mxu0
    %v1066 = vadd.f32 0.0, %v1065
    %1067 = vdwg.mxu0
    %v1070 = vrot.slane %v1064, 4
    %v1071 = vrot.slane %v1066, 4
    %v1074 = vadd.f32 %v318, %v1070
    %v1075 = vadd.f32 %v320, %v1071
    %v1076 = vmul.f32 %v1074, 0.5
    %v1077 = vmul.f32 %v1075, 0.5
    %v1078 = vtanh.pop %v1076
    %v1079 = vtanh.pop %v1077
    %v1080 = vmul.f32 %v1078, 0.5
    %v1081 = vmul.f32 %v1079, 0.5
    %v1082 = vadd.f32 %v1080, 0.5
    %v1083 = vadd.f32 %v1081, 0.5
    %v1084 = vtanh.pop %v1075
    %v1086 = vrot.slane %v986, 6
    %v1088 = vmul.f32 %v1082, %v1086
    %1090 = vrot.lane.b32.xlu0 %v1084, 64
    %v1091 = vpop.permute.xlu0 %1090
    %v1093 = vmul.f32 %v1082, %v1091
    %1095 = vrot.lane.b32.xlu0 %v1093, 64
    %v1096 = vpop.permute.xlu0 %1095
    %v1098 = vadd.f32 %v1088, %v1096
    %v1099 = vtanh.pop %v1098
    %1101 = vrot.lane.b32.xlu0 %v1099, 64
    %v1102 = vpop.permute.xlu0 %1101
    %v1104 = vmul.f32 %v1083, %v1102
    %v1106 = vrot.slane %v1104, 4
    %v1107 = vsel %vm338, %v1106, 0
    %1109 = vmatprep.subr.mxu0 %v323
    %1110 = vmatpush1.msra.mxu0 %v322
    %1111 = vmatprep.subr.mxu0 %v325
    %1112 = vmatpush1.msra.mxu0 %v324
    %1113 = vmatprep.subr.mxu0 %v327
    %1114 = vmatpush1.msra.mxu0 %v326
    %1115 = vmatprep.subr.mxu0 %v329
    %1116 = vmatpush1.msra.mxu0 %v328
    %1117 = vmatprep.subr.mxu0 %v331
    %1118 = vmatpush1.msra.mxu0 %v330
    %1119 = vmatprep.subr.mxu0 %v333
    %1120 = vmatpush1.msra.mxu0 %v332
    %1121 = vmatprep.subr.mxu0 %v335
    %1122 = vmatpush1.msra.mxu0 %v334
    %1123 = vmatprep.subr.mxu0 %v337
    %1124 = vmatpush1.msra.mxu0 %v336
    %1125 = vmatprep.subr.mxu0 0.0
    %1126 = vmatpush1.msra.mxu0 0.0
    %1127 = vmatprep.subr.mxu0 0.0
    %1128 = vmatpush1.msra.mxu0 0.0
    %1129 = vmatprep.subr.mxu0 0.0
    %1130 = vmatpush1.msra.mxu0 0.0
    %1131 = vmatprep.subr.mxu0 0.0
    %1132 = vmatpush1.msra.mxu0 0.0
    %1133 = vmatprep.subr.mxu0 0.0
    %1134 = vmatpush1.msra.mxu0 0.0
    %1135 = vmatprep.subr.mxu0 0.0
    %1136 = vmatpush1.msra.mxu0 0.0
    %1137 = vmatprep.subr.mxu0 0.0
    %1138 = vmatpush1.msra.mxu0 0.0
    %1139 = vmatprep.subr.mxu0 0.0
    %1140 = vmatpush1.msra.mxu0 0.0
    %1141 = vmatprep.subr.mxu0 0.0
    %1142 = vmatpush1.msra.mxu0 0.0
    %1143 = vmatprep.subr.mxu0 0.0
    %1144 = vmatpush1.msra.mxu0 0.0
    %1145 = vmatprep.subr.mxu0 0.0
    %1146 = vmatpush1.msra.mxu0 0.0
    %1147 = vmatprep.subr.mxu0 0.0
    %1148 = vmatpush1.msra.mxu0 0.0
    %1149 = vmatprep.subr.mxu0 0.0
    %1150 = vmatpush1.msra.mxu0 0.0
    %1151 = vmatprep.subr.mxu0 0.0
    %1152 = vmatpush1.msra.mxu0 0.0
    %1153 = vmatprep.subr.mxu0 0.0
    %1154 = vmatpush1.msra.mxu0 0.0
    %1155 = vmatprep.subr.mxu0 0.0
    %1156 = vmatpush1.msra.mxu0 0.0
    %1157 = vmatprep.subr.mxu0 0.0
    %1158 = vmatpush1.msra.mxu0 0.0
    %1159 = vmatprep.subr.mxu0 0.0
    %1160 = vmatpush1.msra.mxu0 0.0
    %1161 = vmatprep.subr.mxu0 0.0
    %1162 = vmatpush1.msra.mxu0 0.0
    %1163 = vmatprep.subr.mxu0 0.0
    %1164 = vmatpush1.msra.mxu0 0.0
    %1165 = vmatprep.subr.mxu0 0.0
    %1166 = vmatpush1.msra.mxu0 0.0
    %1167 = vmatprep.subr.mxu0 0.0
    %1168 = vmatpush1.msra.mxu0 0.0
    %1169 = vmatprep.subr.mxu0 0.0
    %1170 = vmatpush1.msra.mxu0 0.0
    %1171 = vmatprep.subr.mxu0 0.0
    %1172 = vmatpush1.msra.mxu0 0.0
    %1173 = vmatprep.mubr.f32.mxu0 0.0
    %1174 = vmatmul.mubr.f32.gmra.mrb[0].mxu0 %v1107
    %v1175 = vpop.f32.mrb[0].mxu0
    %v1176 = vadd.f32 0.0, %v1175
    %v1177 = vpop.f32.mrb[0].mxu0
    %v1178 = vadd.f32 0.0, %v1177
    %1179 = vdwg.mxu0
    %v1182 = vrot.slane %v1176, 2
    %v1183 = vrot.slane %v1178, 2
    %v1186 = vadd.f32 %v318, %v1182
    %v1187 = vadd.f32 %v320, %v1183
    %v1188 = vmul.f32 %v1186, 0.5
    %v1189 = vmul.f32 %v1187, 0.5
    %v1190 = vtanh.pop %v1188
    %v1191 = vtanh.pop %v1189
    %v1192 = vmul.f32 %v1190, 0.5
    %v1193 = vmul.f32 %v1191, 0.5
    %v1194 = vadd.f32 %v1192, 0.5
    %v1195 = vadd.f32 %v1193, 0.5
    %v1196 = vtanh.pop %v1187
    %v1198 = vrot.slane %v1098, 6
    %v1200 = vmul.f32 %v1194, %v1198
    %1202 = vrot.lane.b32.xlu0 %v1196, 64
    %v1203 = vpop.permute.xlu0 %1202
    %v1205 = vmul.f32 %v1194, %v1203
    %1207 = vrot.lane.b32.xlu0 %v1205, 64
    %v1208 = vpop.permute.xlu0 %1207
    %v1210 = vadd.f32 %v1200, %v1208
    %v1211 = vtanh.pop %v1210
    %1213 = vrot.lane.b32.xlu0 %v1211, 64
    %v1214 = vpop.permute.xlu0 %1213
    %v1216 = vmul.f32 %v1195, %v1214
    %v1218 = vrot.slane %v1216, 6
    %1220 = vrot.lane.b32.xlu0 %v1218, 64
    %v1221 = vpop.permute.xlu0 %1220
    %1223 = vrot.lane.b32.xlu0 %v440, 64
    %v1224 = vpop.permute.xlu0 %1223
    %v1226 = vsel %vm238, %v440, %v1218
    %v1227 = vsel %vm338, %v1226, %v1221
    %vm1228 = vcmask 785408
    %v1229 = vsel %vm1228, %v1227, %v1224
    %v1230 = vrot.slane %v1104, 2
    %1232 = vrot.lane.b32.xlu0 %v1230, 64
    %v1233 = vpop.permute.xlu0 %1232
    %1235 = vrot.lane.b32.xlu0 %v551, 64
    %v1236 = vpop.permute.xlu0 %1235
    %v1238 = vsel %vm238, %v551, %v1230
    %v1239 = vsel %vm338, %v1238, %v1233
    %v1240 = vsel %vm1228, %v1239, %v1236
    %v1241 = vrot.slane %v992, 6
    %1243 = vrot.lane.b32.xlu0 %v1241, 64
    %v1244 = vpop.permute.xlu0 %1243
    %1246 = vrot.lane.b32.xlu0 %v663, 64
    %v1247 = vpop.permute.xlu0 %1246
    %v1249 = vsel %vm238, %v663, %v1241
    %v1250 = vsel %vm338, %v1249, %v1244
    %v1251 = vsel %vm1228, %v1250, %v1247
    %v1252 = vrot.slane %v881, 2
    %1254 = vrot.lane.b32.xlu0 %v1252, 64
    %v1255 = vpop.permute.xlu0 %1254
    %1257 = vrot.lane.b32.xlu0 %v775, 64
    %v1258 = vpop.permute.xlu0 %1257
    %v1260 = vsel %vm238, %v775, %v1252
    %v1261 = vsel %vm338, %v1260, %v1255
    %v1262 = vsel %vm1228, %v1261, %v1258
    %1264 = vrot.lane.b32.xlu0 %v777, 64
    %v1265 = vpop.permute.xlu0 %1264
    %1267 = vrot.lane.b32.xlu0 %v881, 64
    %v1268 = vpop.permute.xlu0 %1267
    %v1270 = vsel %vm238, %v881, %v777
    %v1271 = vsel %vm338, %v1270, %v1265
    %v1272 = vsel %vm1228, %v1271, %v1268
    %v1273 = vrot.slane %v663, 2
    %1275 = vrot.lane.b32.xlu0 %v1273, 64
    %v1276 = vpop.permute.xlu0 %1275
    %1278 = vrot.lane.b32.xlu0 %v992, 64
    %v1279 = vpop.permute.xlu0 %1278
    %v1281 = vsel %vm238, %v992, %v1273
    %v1282 = vsel %vm338, %v1281, %v1276
    %v1283 = vsel %vm1228, %v1282, %v1279
    %v1284 = vrot.slane %v551, 6
    %1286 = vrot.lane.b32.xlu0 %v1284, 64
    %v1287 = vpop.permute.xlu0 %1286
    %1289 = vrot.lane.b32.xlu0 %v1104, 64
    %v1290 = vpop.permute.xlu0 %1289
    %v1292 = vsel %vm238, %v1104, %v1284
    %v1293 = vsel %vm338, %v1292, %v1287
    %v1294 = vsel %vm1228, %v1293, %v1290
    %v1295 = vrot.slane %v440, 2
    %1297 = vrot.lane.b32.xlu0 %v1295, 64
    %v1298 = vpop.permute.xlu0 %1297
    %1300 = vrot.lane.b32.xlu0 %v1216, 64
    %v1301 = vpop.permute.xlu0 %1300
    %v1303 = vsel %vm238, %v1216, %v1295
    %v1304 = vsel %vm338, %v1303, %v1298
    %v1305 = vsel %vm1228, %v1304, %v1301
    %vm1306 = vcmask 1041408
    %v1307 = vsel %vm1306, %v1229, %v1240
    %vm1308 = vcmask 1043456
    %v1309 = vsel %vm1308, %v1307, %v1251
    %vm1310 = vcmask 1045504
    %v1311 = vsel %vm1310, %v1309, %v1262
    %v1312 = vsel %vm1306, %v1272, %v1283
    %v1313 = vsel %vm1308, %v1312, %v1294
    %v1314 = vsel %vm1310, %v1313, %v1305
    %v1315 = vld [vmem:[%s4] sm:$0xff]
    %v1316 = vld [vmem:[%s4 + $0x8] sm:$0xff]
    %v1317 = vld [vmem:[%s4 + $0x10] sm:$0xff]
    %v1318 = vld [vmem:[%s4 + $0x18] sm:$0xff]
    %v1319 = vld [vmem:[%s4 + $0x20] sm:$0xff]
    %v1320 = vld [vmem:[%s4 + $0x28] sm:$0xff]
    %v1321 = vld [vmem:[%s4 + $0x30] sm:$0xff]
    %v1322 = vld [vmem:[%s4 + $0x38] sm:$0xff]
    %v1323 = vld [vmem:[%s4 + $0x40] sm:$0xff]
    %v1324 = vld [vmem:[%s4 + $0x48] sm:$0xff]
    %v1325 = vld [vmem:[%s4 + $0x50] sm:$0xff]
    %v1326 = vld [vmem:[%s4 + $0x58] sm:$0xff]
    %v1327 = vld [vmem:[%s4 + $0x60] sm:$0xff]
    %v1328 = vld [vmem:[%s4 + $0x68] sm:$0xff]
    %v1329 = vld [vmem:[%s4 + $0x70] sm:$0xff]
    %v1330 = vld [vmem:[%s4 + $0x78] sm:$0xff]
    %v1331 = vld [vmem:[%s4 + $0x80] sm:$0xff]
    %v1332 = vld [vmem:[%s4 + $0x88] sm:$0xff]
    %v1333 = vld [vmem:[%s4 + $0x90] sm:$0xff]
    %v1334 = vld [vmem:[%s4 + $0x98] sm:$0xff]
    %v1335 = vld [vmem:[%s4 + $0xa0] sm:$0xff]
    %v1336 = vld [vmem:[%s4 + $0xa8] sm:$0xff]
    %v1337 = vld [vmem:[%s4 + $0xb0] sm:$0xff]
    %v1338 = vld [vmem:[%s4 + $0xb8] sm:$0xff]
    %v1339 = vld [vmem:[%s4 + $0xc0] sm:$0xff]
    %v1340 = vld [vmem:[%s4 + $0xc8] sm:$0xff]
    %v1341 = vld [vmem:[%s4 + $0xd0] sm:$0xff]
    %v1342 = vld [vmem:[%s4 + $0xd8] sm:$0xff]
    %v1343 = vld [vmem:[%s4 + $0xe0] sm:$0xff]
    %v1344 = vld [vmem:[%s4 + $0xe8] sm:$0xff]
    %v1345 = vld [vmem:[%s4 + $0xf0] sm:$0xff]
    %v1346 = vld [vmem:[%s4 + $0xf8] sm:$0xff]
    %v1347 = vld [vmem:[#allocation8] sm:$0x3]
    %v1349 = vlaneseq
    %v1350 = vshrl.u32 %v1349, 7
    %v1351 = vsub.s32 0, %v1350
    %v1352 = vrot.slane %v1347, %v1351
    %v1353 = vlaneseq
    %v1354 = vshrl.u32 %v1353, 7
    %v1355 = vsub.s32 1, %v1354
    %v1356 = vrot.slane %v1347, %v1355
    %1359 = vmatprep.subr.mxu0 %v1316
    %1360 = vmatpush1.msra.mxu0 %v1315
    %1361 = vmatprep.subr.mxu0 %v1318
    %1362 = vmatpush1.msra.mxu0 %v1317
    %1363 = vmatprep.subr.mxu0 %v1320
    %1364 = vmatpush1.msra.mxu0 %v1319
    %1365 = vmatprep.subr.mxu0 %v1322
    %1366 = vmatpush1.msra.mxu0 %v1321
    %1367 = vmatprep.subr.mxu0 %v1324
    %1368 = vmatpush1.msra.mxu0 %v1323
    %1369 = vmatprep.subr.mxu0 %v1326
    %1370 = vmatpush1.msra.mxu0 %v1325
    %1371 = vmatprep.subr.mxu0 %v1328
    %1372 = vmatpush1.msra.mxu0 %v1327
    %1373 = vmatprep.subr.mxu0 %v1330
    %1374 = vmatpush1.msra.mxu0 %v1329
    %1375 = vmatprep.subr.mxu0 %v1332
    %1376 = vmatpush1.msra.mxu0 %v1331
    %1377 = vmatprep.subr.mxu0 %v1334
    %1378 = vmatpush1.msra.mxu0 %v1333
    %1379 = vmatprep.subr.mxu0 %v1336
    %1380 = vmatpush1.msra.mxu0 %v1335
    %1381 = vmatprep.subr.mxu0 %v1338
    %1382 = vmatpush1.msra.mxu0 %v1337
    %1383 = vmatprep.subr.mxu0 %v1340
    %1384 = vmatpush1.msra.mxu0 %v1339
    %1385 = vmatprep.subr.mxu0 %v1342
    %1386 = vmatpush1.msra.mxu0 %v1341
    %1387 = vmatprep.subr.mxu0 %v1344
    %1388 = vmatpush1.msra.mxu0 %v1343
    %1389 = vmatprep.subr.mxu0 %v1346
    %1390 = vmatpush1.msra.mxu0 %v1345
    %1391 = vmatprep.subr.mxu0 0.0
    %1392 = vmatpush1.msra.mxu0 0.0
    %1393 = vmatprep.subr.mxu0 0.0
    %1394 = vmatpush1.msra.mxu0 0.0
    %1395 = vmatprep.subr.mxu0 0.0
    %1396 = vmatpush1.msra.mxu0 0.0
    %1397 = vmatprep.subr.mxu0 0.0
    %1398 = vmatpush1.msra.mxu0 0.0
    %1399 = vmatprep.subr.mxu0 0.0
    %1400 = vmatpush1.msra.mxu0 0.0
    %1401 = vmatprep.subr.mxu0 0.0
    %1402 = vmatpush1.msra.mxu0 0.0
    %1403 = vmatprep.subr.mxu0 0.0
    %1404 = vmatpush1.msra.mxu0 0.0
    %1405 = vmatprep.subr.mxu0 0.0
    %1406 = vmatpush1.msra.mxu0 0.0
    %1407 = vmatprep.subr.mxu0 0.0
    %1408 = vmatpush1.msra.mxu0 0.0
    %1409 = vmatprep.subr.mxu0 0.0
    %1410 = vmatpush1.msra.mxu0 0.0
    %1411 = vmatprep.subr.mxu0 0.0
    %1412 = vmatpush1.msra.mxu0 0.0
    %1413 = vmatprep.subr.mxu0 0.0
    %1414 = vmatpush1.msra.mxu0 0.0
    %1415 = vmatprep.subr.mxu0 0.0
    %1416 = vmatpush1.msra.mxu0 0.0
    %1417 = vmatprep.subr.mxu0 0.0
    %1418 = vmatpush1.msra.mxu0 0.0
    %1419 = vmatprep.subr.mxu0 0.0
    %1420 = vmatpush1.msra.mxu0 0.0
    %1421 = vmatprep.subr.mxu0 0.0
    %1422 = vmatpush1.msra.mxu0 0.0
    %1423 = vmatprep.mubr.f32.mxu0 0.0
    %1424 = vmatmul.mubr.f32.gmra.mrb[0].mxu0 %v1311
    %v1425 = vpop.f32.mrb[0].mxu0
    %v1426 = vadd.f32 %v1352, %v1425
    %v1427 = vpop.f32.mrb[0].mxu0
    %v1428 = vadd.f32 %v1356, %v1427
    %1429 = vmatprep.mubr.f32.mxu0 0.0
    %1430 = vmatmul.mubr.f32.gmra.mrb[0].mxu0 %v1314
    %v1431 = vpop.f32.mrb[0].mxu0
    %v1432 = vadd.f32 %v1352, %v1431
    %v1433 = vpop.f32.mrb[0].mxu0
    %v1434 = vadd.f32 %v1356, %v1433
    %1435 = vdwg.mxu0
    %v1436 = vld [vmem:[#allocation10] sm:$0xff]
    %v1437 = vld [vmem:[#allocation10 + $0x8] sm:$0xff]
    %v1438 = vld [vmem:[#allocation10 + $0x10] sm:$0xff]
    %v1439 = vld [vmem:[#allocation10 + $0x18] sm:$0xff]
    %v1440 = vld [vmem:[#allocation10 + $0x20] sm:$0xff]
    %v1441 = vld [vmem:[#allocation10 + $0x28] sm:$0xff]
    %v1442 = vld [vmem:[#allocation10 + $0x30] sm:$0xff]
    %v1443 = vld [vmem:[#allocation10 + $0x38] sm:$0xff]
    %v1444 = vld [vmem:[#allocation10 + $0x40] sm:$0xff]
    %v1445 = vld [vmem:[#allocation10 + $0x48] sm:$0xff]
    %v1446 = vld [vmem:[#allocation10 + $0x50] sm:$0xff]
    %v1447 = vld [vmem:[#allocation10 + $0x58] sm:$0xff]
    %v1448 = vld [vmem:[#allocation10 + $0x60] sm:$0xff]
    %v1449 = vld [vmem:[#allocation10 + $0x68] sm:$0xff]
    %v1450 = vld [vmem:[#allocation10 + $0x70] sm:$0xff]
    %v1451 = vld [vmem:[#allocation10 + $0x78] sm:$0xff]
    %1452 = vmatprep.subr.mxu0 %v1437
    %1453 = vmatpush1.msra.mxu0 %v1436
    %1454 = vmatprep.subr.mxu0 %v1439
    %1455 = vmatpush1.msra.mxu0 %v1438
    %1456 = vmatprep.subr.mxu0 %v1441
    %1457 = vmatpush1.msra.mxu0 %v1440
    %1458 = vmatprep.subr.mxu0 %v1443
    %1459 = vmatpush1.msra.mxu0 %v1442
    %1460 = vmatprep.subr.mxu0 %v1445
    %1461 = vmatpush1.msra.mxu0 %v1444
    %1462 = vmatprep.subr.mxu0 %v1447
    %1463 = vmatpush1.msra.mxu0 %v1446
    %1464 = vmatprep.subr.mxu0 %v1449
    %1465 = vmatpush1.msra.mxu0 %v1448
    %1466 = vmatprep.subr.mxu0 %v1451
    %1467 = vmatpush1.msra.mxu0 %v1450
    %1468 = vmatprep.subr.mxu0 0.0
    %1469 = vmatpush1.msra.mxu0 0.0
    %1470 = vmatprep.subr.mxu0 0.0
    %1471 = vmatpush1.msra.mxu0 0.0
    %1472 = vmatprep.subr.mxu0 0.0
    %1473 = vmatpush1.msra.mxu0 0.0
    %1474 = vmatprep.subr.mxu0 0.0
    %1475 = vmatpush1.msra.mxu0 0.0
    %1476 = vmatprep.subr.mxu0 0.0
    %1477 = vmatpush1.msra.mxu0 0.0
    %1478 = vmatprep.subr.mxu0 0.0
    %1479 = vmatpush1.msra.mxu0 0.0
    %1480 = vmatprep.subr.mxu0 0.0
    %1481 = vmatpush1.msra.mxu0 0.0
    %1482 = vmatprep.subr.mxu0 0.0
    %1483 = vmatpush1.msra.mxu0 0.0
    %1484 = vmatprep.subr.mxu0 0.0
    %1485 = vmatpush1.msra.mxu0 0.0
    %1486 = vmatprep.subr.mxu0 0.0
    %1487 = vmatpush1.msra.mxu0 0.0
    %1488 = vmatprep.subr.mxu0 0.0
    %1489 = vmatpush1.msra.mxu0 0.0
    %1490 = vmatprep.subr.mxu0 0.0
    %1491 = vmatpush1.msra.mxu0 0.0
    %1492 = vmatprep.subr.mxu0 0.0
    %1493 = vmatpush1.msra.mxu0 0.0
    %1494 = vmatprep.subr.mxu0 0.0
    %1495 = vmatpush1.msra.mxu0 0.0
    %1496 = vmatprep.subr.mxu0 0.0
    %1497 = vmatpush1.msra.mxu0 0.0
    %1498 = vmatprep.subr.mxu0 0.0
    %1499 = vmatpush1.msra.mxu0 0.0
    %1500 = vmatprep.subr.mxu0 0.0
    %1501 = vmatpush1.msra.mxu0 0.0
    %1502 = vmatprep.subr.mxu0 0.0
    %1503 = vmatpush1.msra.mxu0 0.0
    %1504 = vmatprep.subr.mxu0 0.0
    %1505 = vmatpush1.msra.mxu0 0.0
    %1506 = vmatprep.subr.mxu0 0.0
    %1507 = vmatpush1.msra.mxu0 0.0
    %1508 = vmatprep.subr.mxu0 0.0
    %1509 = vmatpush1.msra.mxu0 0.0
    %1510 = vmatprep.subr.mxu0 0.0
    %1511 = vmatpush1.msra.mxu0 0.0
    %1512 = vmatprep.subr.mxu0 0.0
    %1513 = vmatpush1.msra.mxu0 0.0
    %1514 = vmatprep.subr.mxu0 0.0
    %1515 = vmatpush1.msra.mxu0 0.0
    %1516 = vmatprep.mubr.f32.mxu0 0.0
    %1517 = vmatmul.mubr.f32.gmra.mrb[0].mxu0 %v340
    %v1518 = vpop.f32.mrb[0].mxu0
    %v1519 = vadd.f32 0.0, %v1518
    %v1520 = vpop.f32.mrb[0].mxu0
    %v1521 = vadd.f32 0.0, %v1520
    %1522 = vdwg.mxu0
    %v1523 = vadd.f32 %v1426, %v1519
    %v1524 = vadd.f32 %v1428, %v1521
    %v1525 = vmul.f32 %v1523, 0.5
    %v1526 = vmul.f32 %v1524, 0.5
    %v1527 = vtanh.pop %v1525
    %v1528 = vtanh.pop %v1526
    %v1529 = vmul.f32 %v1527, 0.5
    %v1530 = vmul.f32 %v1528, 0.5
    %v1531 = vadd.f32 %v1529, 0.5
    %v1532 = vadd.f32 %v1530, 0.5
    %v1533 = vtanh.pop %v1524
    %v1534 = vmul.f32 %v1531, 0.0
    %1536 = vrot.lane.b32.xlu0 %v1533, 64
    %v1537 = vpop.permute.xlu0 %1536
    %v1539 = vmul.f32 %v1531, %v1537
    %1541 = vrot.lane.b32.xlu0 %v1539, 64
    %v1542 = vpop.permute.xlu0 %1541
    %v1544 = vadd.f32 %v1534, %v1542
    %v1545 = vtanh.pop %v1544
    %1547 = vrot.lane.b32.xlu0 %v1545, 64
    %v1548 = vpop.permute.xlu0 %1547
    %v1550 = vmul.f32 %v1532, %v1548
    %v1552 = vsel %vm338, %v1550, 0
    %1554 = vmatprep.subr.mxu0 %v1437
    %1555 = vmatpush1.msra.mxu0 %v1436
    %1556 = vmatprep.subr.mxu0 %v1439
    %1557 = vmatpush1.msra.mxu0 %v1438
    %1558 = vmatprep.subr.mxu0 %v1441
    %1559 = vmatpush1.msra.mxu0 %v1440
    %1560 = vmatprep.subr.mxu0 %v1443
    %1561 = vmatpush1.msra.mxu0 %v1442
    %1562 = vmatprep.subr.mxu0 %v1445
    %1563 = vmatpush1.msra.mxu0 %v1444
    %1564 = vmatprep.subr.mxu0 %v1447
    %1565 = vmatpush1.msra.mxu0 %v1446
    %1566 = vmatprep.subr.mxu0 %v1449
    %1567 = vmatpush1.msra.mxu0 %v1448
    %1568 = vmatprep.subr.mxu0 %v1451
    %1569 = vmatpush1.msra.mxu0 %v1450
    %1570 = vmatprep.subr.mxu0 0.0
    %1571 = vmatpush1.msra.mxu0 0.0
    %1572 = vmatprep.subr.mxu0 0.0
    %1573 = vmatpush1.msra.mxu0 0.0
    %1574 = vmatprep.subr.mxu0 0.0
    %1575 = vmatpush1.msra.mxu0 0.0
    %1576 = vmatprep.subr.mxu0 0.0
    %1577 = vmatpush1.msra.mxu0 0.0
    %1578 = vmatprep.subr.mxu0 0.0
    %1579 = vmatpush1.msra.mxu0 0.0
    %1580 = vmatprep.subr.mxu0 0.0
    %1581 = vmatpush1.msra.mxu0 0.0
    %1582 = vmatprep.subr.mxu0 0.0
    %1583 = vmatpush1.msra.mxu0 0.0
    %1584 = vmatprep.subr.mxu0 0.0
    %1585 = vmatpush1.msra.mxu0 0.0
    %1586 = vmatprep.subr.mxu0 0.0
    %1587 = vmatpush1.msra.mxu0 0.0
    %1588 = vmatprep.subr.mxu0 0.0
    %1589 = vmatpush1.msra.mxu0 0.0
    %1590 = vmatprep.subr.mxu0 0.0
    %1591 = vmatpush1.msra.mxu0 0.0
    %1592 = vmatprep.subr.mxu0 0.0
    %1593 = vmatpush1.msra.mxu0 0.0
    %1594 = vmatprep.subr.mxu0 0.0
    %1595 = vmatpush1.msra.mxu0 0.0
    %1596 = vmatprep.subr.mxu0 0.0
    %1597 = vmatpush1.msra.mxu0 0.0
    %1598 = vmatprep.subr.mxu0 0.0
    %1599 = vmatpush1.msra.mxu0 0.0
    %1600 = vmatprep.subr.mxu0 0.0
    %1601 = vmatpush1.msra.mxu0 0.0
    %1602 = vmatprep.subr.mxu0 0.0
    %1603 = vmatpush1.msra.mxu0 0.0
    %1604 = vmatprep.subr.mxu0 0.0
    %1605 = vmatpush1.msra.mxu0 0.0
    %1606 = vmatprep.subr.mxu0 0.0
    %1607 = vmatpush1.msra.mxu0 0.0
    %1608 = vmatprep.subr.mxu0 0.0
    %1609 = vmatpush1.msra.mxu0 0.0
    %1610 = vmatprep.subr.mxu0 0.0
    %1611 = vmatpush1.msra.mxu0 0.0
    %1612 = vmatprep.subr.mxu0 0.0
    %1613 = vmatpush1.msra.mxu0 0.0
    %1614 = vmatprep.subr.mxu0 0.0
    %1615 = vmatpush1.msra.mxu0 0.0
    %1616 = vmatprep.subr.mxu0 0.0
    %1617 = vmatpush1.msra.mxu0 0.0
    %1618 = vmatprep.mubr.f32.mxu0 0.0
    %1619 = vmatmul.mubr.f32.gmra.mrb[0].mxu0 %v1552
    %v1620 = vpop.f32.mrb[0].mxu0
    %v1621 = vadd.f32 0.0, %v1620
    %v1622 = vpop.f32.mrb[0].mxu0
    %v1623 = vadd.f32 0.0, %v1622
    %1624 = vdwg.mxu0
    %v1627 = vrot.slane %v1621, 6
    %v1628 = vrot.slane %v1623, 6
    %v1631 = vadd.f32 %v1426, %v1627
    %v1632 = vadd.f32 %v1428, %v1628
    %v1633 = vmul.f32 %v1631, 0.5
    %v1634 = vmul.f32 %v1632, 0.5
    %v1635 = vtanh.pop %v1633
    %v1636 = vtanh.pop %v1634
    %v1637 = vmul.f32 %v1635, 0.5
    %v1638 = vmul.f32 %v1636, 0.5
    %v1639 = vadd.f32 %v1637, 0.5
    %v1640 = vadd.f32 %v1638, 0.5
    %v1641 = vtanh.pop %v1632
    %v1643 = vrot.slane %v1544, 6
    %v1645 = vmul.f32 %v1639, %v1643
    %1647 = vrot.lane.b32.xlu0 %v1641, 64
    %v1648 = vpop.permute.xlu0 %1647
    %v1650 = vmul.f32 %v1639, %v1648
    %1652 = vrot.lane.b32.xlu0 %v1650, 64
    %v1653 = vpop.permute.xlu0 %1652
    %v1655 = vadd.f32 %v1645, %v1653
    %v1656 = vtanh.pop %v1655
    %1658 = vrot.lane.b32.xlu0 %v1656, 64
    %v1659 = vpop.permute.xlu0 %1658
    %v1661 = vmul.f32 %v1640, %v1659
    %v1663 = vrot.slane %v1661, 2
    %v1664 = vsel %vm338, %v1663, 0
    %1666 = vmatprep.subr.mxu0 %v1437
    %1667 = vmatpush1.msra.mxu0 %v1436
    %1668 = vmatprep.subr.mxu0 %v1439
    %1669 = vmatpush1.msra.mxu0 %v1438
    %1670 = vmatprep.subr.mxu0 %v1441
    %1671 = vmatpush1.msra.mxu0 %v1440
    %1672 = vmatprep.subr.mxu0 %v1443
    %1673 = vmatpush1.msra.mxu0 %v1442
    %1674 = vmatprep.subr.mxu0 %v1445
    %1675 = vmatpush1.msra.mxu0 %v1444
    %1676 = vmatprep.subr.mxu0 %v1447
    %1677 = vmatpush1.msra.mxu0 %v1446
    %1678 = vmatprep.subr.mxu0 %v1449
    %1679 = vmatpush1.msra.mxu0 %v1448
    %1680 = vmatprep.subr.mxu0 %v1451
    %1681 = vmatpush1.msra.mxu0 %v1450
    %1682 = vmatprep.subr.mxu0 0.0
    %1683 = vmatpush1.msra.mxu0 0.0
    %1684 = vmatprep.subr.mxu0 0.0
    %1685 = vmatpush1.msra.mxu0 0.0
    %1686 = vmatprep.subr.mxu0 0.0
    %1687 = vmatpush1.msra.mxu0 0.0
    %1688 = vmatprep.subr.mxu0 0.0
    %1689 = vmatpush1.msra.mxu0 0.0
    %1690 = vmatprep.subr.mxu0 0.0
    %1691 = vmatpush1.msra.mxu0 0.0
    %1692 = vmatprep.subr.mxu0 0.0
    %1693 = vmatpush1.msra.mxu0 0.0
    %1694 = vmatprep.subr.mxu0 0.0
    %1695 = vmatpush1.msra.mxu0 0.0
    %1696 = vmatprep.subr.mxu0 0.0
    %1697 = vmatpush1.msra.mxu0 0.0
    %1698 = vmatprep.subr.mxu0 0.0
    %1699 = vmatpush1.msra.mxu0 0.0
    %1700 = vmatprep.subr.mxu0 0.0
    %1701 = vmatpush1.msra.mxu0 0.0
    %1702 = vmatprep.subr.mxu0 0.0
    %1703 = vmatpush1.msra.mxu0 0.0
    %1704 = vmatprep.subr.mxu0 0.0
    %1705 = vmatpush1.msra.mxu0 0.0
    %1706 = vmatprep.subr.mxu0 0.0
    %1707 = vmatpush1.msra.mxu0 0.0
    %1708 = vmatprep.subr.mxu0 0.0
    %1709 = vmatpush1.msra.mxu0 0.0
    %1710 = vmatprep.subr.mxu0 0.0
    %1711 = vmatpush1.msra.mxu0 0.0
    %1712 = vmatprep.subr.mxu0 0.0
    %1713 = vmatpush1.msra.mxu0 0.0
    %1714 = vmatprep.subr.mxu0 0.0
    %1715 = vmatpush1.msra.mxu0 0.0
    %1716 = vmatprep.subr.mxu0 0.0
    %1717 = vmatpush1.msra.mxu0 0.0
    %1718 = vmatprep.subr.mxu0 0.0
    %1719 = vmatpush1.msra.mxu0 0.0
    %1720 = vmatprep.subr.mxu0 0.0
    %1721 = vmatpush1.msra.mxu0 0.0
    %1722 = vmatprep.subr.mxu0 0.0
    %1723 = vmatpush1.msra.mxu0 0.0
    %1724 = vmatprep.subr.mxu0 0.0
    %1725 = vmatpush1.msra.mxu0 0.0
    %1726 = vmatprep.subr.mxu0 0.0
    %1727 = vmatpush1.msra.mxu0 0.0
    %1728 = vmatprep.subr.mxu0 0.0
    %1729 = vmatpush1.msra.mxu0 0.0
    %1730 = vmatprep.mubr.f32.mxu0 0.0
    %1731 = vmatmul.mubr.f32.gmra.mrb[0].mxu0 %v1664
    %v1732 = vpop.f32.mrb[0].mxu0
    %v1733 = vadd.f32 0.0, %v1732
    %v1734 = vpop.f32.mrb[0].mxu0
    %v1735 = vadd.f32 0.0, %v1734
    %1736 = vdwg.mxu0
    %v1739 = vrot.slane %v1733, 4
    %v1740 = vrot.slane %v1735, 4
    %v1743 = vadd.f32 %v1426, %v1739
    %v1744 = vadd.f32 %v1428, %v1740
    %v1745 = vmul.f32 %v1743, 0.5
    %v1746 = vmul.f32 %v1744, 0.5
    %v1747 = vtanh.pop %v1745
    %v1748 = vtanh.pop %v1746
    %v1749 = vmul.f32 %v1747, 0.5
    %v1750 = vmul.f32 %v1748, 0.5
    %v1751 = vadd.f32 %v1749, 0.5
    %v1752 = vadd.f32 %v1750, 0.5
    %v1753 = vtanh.pop %v1744
    %v1755 = vrot.slane %v1655, 6
    %v1757 = vmul.f32 %v1751, %v1755
    %1759 = vrot.lane.b32.xlu0 %v1753, 64
    %v1760 = vpop.permute.xlu0 %1759
    %v1762 = vmul.f32 %v1751, %v1760
    %1764 = vrot.lane.b32.xlu0 %v1762, 64
    %v1765 = vpop.permute.xlu0 %1764
    %v1767 = vadd.f32 %v1757, %v1765
    %v1768 = vtanh.pop %v1767
    %1770 = vrot.lane.b32.xlu0 %v1768, 64
    %v1771 = vpop.permute.xlu0 %1770
    %v1773 = vmul.f32 %v1752, %v1771
    %v1775 = vrot.slane %v1773, 4
    %v1776 = vsel %vm338, %v1775, 0
    %1778 = vmatprep.subr.mxu0 %v1437
    %1779 = vmatpush1.msra.mxu0 %v1436
    %1780 = vmatprep.subr.mxu0 %v1439
    %1781 = vmatpush1.msra.mxu0 %v1438
    %1782 = vmatprep.subr.mxu0 %v1441
    %1783 = vmatpush1.msra.mxu0 %v1440
    %1784 = vmatprep.subr.mxu0 %v1443
    %1785 = vmatpush1.msra.mxu0 %v1442
    %1786 = vmatprep.subr.mxu0 %v1445
    %1787 = vmatpush1.msra.mxu0 %v1444
    %1788 = vmatprep.subr.mxu0 %v1447
    %1789 = vmatpush1.msra.mxu0 %v1446
    %1790 = vmatprep.subr.mxu0 %v1449
    %1791 = vmatpush1.msra.mxu0 %v1448
    %1792 = vmatprep.subr.mxu0 %v1451
    %1793 = vmatpush1.msra.mxu0 %v1450
    %1794 = vmatprep.subr.mxu0 0.0
    %1795 = vmatpush1.msra.mxu0 0.0
    %1796 = vmatprep.subr.mxu0 0.0
    %1797 = vmatpush1.msra.mxu0 0.0
    %1798 = vmatprep.subr.mxu0 0.0
    %1799 = vmatpush1.msra.mxu0 0.0
    %1800 = vmatprep.subr.mxu0 0.0
    %1801 = vmatpush1.msra.mxu0 0.0
    %1802 = vmatprep.subr.mxu0 0.0
    %1803 = vmatpush1.msra.mxu0 0.0
    %1804 = vmatprep.subr.mxu0 0.0
    %1805 = vmatpush1.msra.mxu0 0.0
    %1806 = vmatprep.subr.mxu0 0.0
    %1807 = vmatpush1.msra.mxu0 0.0
    %1808 = vmatprep.subr.mxu0 0.0
    %1809 = vmatpush1.msra.mxu0 0.0
    %1810 = vmatprep.subr.mxu0 0.0
    %1811 = vmatpush1.msra.mxu0 0.0
    %1812 = vmatprep.subr.mxu0 0.0
    %1813 = vmatpush1.msra.mxu0 0.0
    %1814 = vmatprep.subr.mxu0 0.0
    %1815 = vmatpush1.msra.mxu0 0.0
    %1816 = vmatprep.subr.mxu0 0.0
    %1817 = vmatpush1.msra.mxu0 0.0
    %1818 = vmatprep.subr.mxu0 0.0
    %1819 = vmatpush1.msra.mxu0 0.0
    %1820 = vmatprep.subr.mxu0 0.0
    %1821 = vmatpush1.msra.mxu0 0.0
    %1822 = vmatprep.subr.mxu0 0.0
    %1823 = vmatpush1.msra.mxu0 0.0
    %1824 = vmatprep.subr.mxu0 0.0
    %1825 = vmatpush1.msra.mxu0 0.0
    %1826 = vmatprep.subr.mxu0 0.0
    %1827 = vmatpush1.msra.mxu0 0.0
    %1828 = vmatprep.subr.mxu0 0.0
    %1829 = vmatpush1.msra.mxu0 0.0
    %1830 = vmatprep.subr.mxu0 0.0
    %1831 = vmatpush1.msra.mxu0 0.0
    %1832 = vmatprep.subr.mxu0 0.0
    %1833 = vmatpush1.msra.mxu0 0.0
    %1834 = vmatprep.subr.mxu0 0.0
    %1835 = vmatpush1.msra.mxu0 0.0
    %1836 = vmatprep.subr.mxu0 0.0
    %1837 = vmatpush1.msra.mxu0 0.0
    %1838 = vmatprep.subr.mxu0 0.0
    %1839 = vmatpush1.msra.mxu0 0.0
    %1840 = vmatprep.subr.mxu0 0.0
    %1841 = vmatpush1.msra.mxu0 0.0
    %1842 = vmatprep.mubr.f32.mxu0 0.0
    %1843 = vmatmul.mubr.f32.gmra.mrb[0].mxu0 %v1776
    %v1844 = vpop.f32.mrb[0].mxu0
    %v1845 = vadd.f32 0.0, %v1844
    %v1846 = vpop.f32.mrb[0].mxu0
    %v1847 = vadd.f32 0.0, %v1846
    %1848 = vdwg.mxu0
    %v1851 = vrot.slane %v1845, 2
    %v1852 = vrot.slane %v1847, 2
    %v1855 = vadd.f32 %v1426, %v1851
    %v1856 = vadd.f32 %v1428, %v1852
    %v1857 = vmul.f32 %v1855, 0.5
    %v1858 = vmul.f32 %v1856, 0.5
    %v1859 = vtanh.pop %v1857
    %v1860 = vtanh.pop %v1858
    %v1861 = vmul.f32 %v1859, 0.5
    %v1862 = vmul.f32 %v1860, 0.5
    %v1863 = vadd.f32 %v1861, 0.5
    %v1864 = vadd.f32 %v1862, 0.5
    %v1865 = vtanh.pop %v1856
    %v1867 = vrot.slane %v1767, 6
    %v1869 = vmul.f32 %v1863, %v1867
    %1871 = vrot.lane.b32.xlu0 %v1865, 64
    %v1872 = vpop.permute.xlu0 %1871
    %v1874 = vmul.f32 %v1863, %v1872
    %1876 = vrot.lane.b32.xlu0 %v1874, 64
    %v1877 = vpop.permute.xlu0 %1876
    %v1879 = vadd.f32 %v1869, %v1877
    %v1880 = vtanh.pop %v1879
    %1882 = vrot.lane.b32.xlu0 %v1880, 64
    %v1883 = vpop.permute.xlu0 %1882
    %v1885 = vmul.f32 %v1864, %v1883
    %v1887 = vrot.slane %v1885, 6
    %v1888 = vsel %vm338, %v1887, 0
    %1890 = vmatprep.subr.mxu0 %v1437
    %1891 = vmatpush1.msra.mxu0 %v1436
    %1892 = vmatprep.subr.mxu0 %v1439
    %1893 = vmatpush1.msra.mxu0 %v1438
    %1894 = vmatprep.subr.mxu0 %v1441
    %1895 = vmatpush1.msra.mxu0 %v1440
    %1896 = vmatprep.subr.mxu0 %v1443
    %1897 = vmatpush1.msra.mxu0 %v1442
    %1898 = vmatprep.subr.mxu0 %v1445
    %1899 = vmatpush1.msra.mxu0 %v1444
    %1900 = vmatprep.subr.mxu0 %v1447
    %1901 = vmatpush1.msra.mxu0 %v1446
    %1902 = vmatprep.subr.mxu0 %v1449
    %1903 = vmatpush1.msra.mxu0 %v1448
    %1904 = vmatprep.subr.mxu0 %v1451
    %1905 = vmatpush1.msra.mxu0 %v1450
    %1906 = vmatprep.subr.mxu0 0.0
    %1907 = vmatpush1.msra.mxu0 0.0
    %1908 = vmatprep.subr.mxu0 0.0
    %1909 = vmatpush1.msra.mxu0 0.0
    %1910 = vmatprep.subr.mxu0 0.0
    %1911 = vmatpush1.msra.mxu0 0.0
    %1912 = vmatprep.subr.mxu0 0.0
    %1913 = vmatpush1.msra.mxu0 0.0
    %1914 = vmatprep.subr.mxu0 0.0
    %1915 = vmatpush1.msra.mxu0 0.0
    %1916 = vmatprep.subr.mxu0 0.0
    %1917 = vmatpush1.msra.mxu0 0.0
    %1918 = vmatprep.subr.mxu0 0.0
    %1919 = vmatpush1.msra.mxu0 0.0
    %1920 = vmatprep.subr.mxu0 0.0
    %1921 = vmatpush1.msra.mxu0 0.0
    %1922 = vmatprep.subr.mxu0 0.0
    %1923 = vmatpush1.msra.mxu0 0.0
    %1924 = vmatprep.subr.mxu0 0.0
    %1925 = vmatpush1.msra.mxu0 0.0
    %1926 = vmatprep.subr.mxu0 0.0
    %1927 = vmatpush1.msra.mxu0 0.0
    %1928 = vmatprep.subr.mxu0 0.0
    %1929 = vmatpush1.msra.mxu0 0.0
    %1930 = vmatprep.subr.mxu0 0.0
    %1931 = vmatpush1.msra.mxu0 0.0
    %1932 = vmatprep.subr.mxu0 0.0
    %1933 = vmatpush1.msra.mxu0 0.0
    %1934 = vmatprep.subr.mxu0 0.0
    %1935 = vmatpush1.msra.mxu0 0.0
    %1936 = vmatprep.subr.mxu0 0.0
    %1937 = vmatpush1.msra.mxu0 0.0
    %1938 = vmatprep.subr.mxu0 0.0
    %1939 = vmatpush1.msra.mxu0 0.0
    %1940 = vmatprep.subr.mxu0 0.0
    %1941 = vmatpush1.msra.mxu0 0.0
    %1942 = vmatprep.subr.mxu0 0.0
    %1943 = vmatpush1.msra.mxu0 0.0
    %1944 = vmatprep.subr.mxu0 0.0
    %1945 = vmatpush1.msra.mxu0 0.0
    %1946 = vmatprep.subr.mxu0 0.0
    %1947 = vmatpush1.msra.mxu0 0.0
    %1948 = vmatprep.subr.mxu0 0.0
    %1949 = vmatpush1.msra.mxu0 0.0
    %1950 = vmatprep.subr.mxu0 0.0
    %1951 = vmatpush1.msra.mxu0 0.0
    %1952 = vmatprep.subr.mxu0 0.0
    %1953 = vmatpush1.msra.mxu0 0.0
    %1954 = vmatprep.mubr.f32.mxu0 0.0
    %1955 = vmatmul.mubr.f32.gmra.mrb[0].mxu0 %v1888
    %v1956 = vpop.f32.mrb[0].mxu0
    %v1957 = vadd.f32 0.0, %v1956
    %v1958 = vpop.f32.mrb[0].mxu0
    %v1959 = vadd.f32 0.0, %v1958
    %1960 = vdwg.mxu0
    %v1961 = vadd.f32 %v1432, %v1957
    %v1962 = vadd.f32 %v1434, %v1959
    %v1963 = vmul.f32 %v1961, 0.5
    %v1964 = vmul.f32 %v1962, 0.5
    %v1965 = vtanh.pop %v1963
    %v1966 = vtanh.pop %v1964
    %v1967 = vmul.f32 %v1965, 0.5
    %v1968 = vmul.f32 %v1966, 0.5
    %v1969 = vadd.f32 %v1967, 0.5
    %v1970 = vadd.f32 %v1968, 0.5
    %v1971 = vtanh.pop %v1962
    %v1973 = vrot.slane %v1879, 6
    %v1975 = vmul.f32 %v1969, %v1973
    %1977 = vrot.lane.b32.xlu0 %v1971, 64
    %v1978 = vpop.permute.xlu0 %1977
    %v1980 = vmul.f32 %v1969, %v1978
    %1982 = vrot.lane.b32.xlu0 %v1980, 64
    %v1983 = vpop.permute.xlu0 %1982
    %v1985 = vadd.f32 %v1975, %v1983
    %v1986 = vtanh.pop %v1985
    %1988 = vrot.lane.b32.xlu0 %v1986, 64
    %v1989 = vpop.permute.xlu0 %1988
    %v1991 = vmul.f32 %v1970, %v1989
    %v1993 = vsel %vm338, %v1991, 0
    %1995 = vmatprep.subr.mxu0 %v1437
    %1996 = vmatpush1.msra.mxu0 %v1436
    %1997 = vmatprep.subr.mxu0 %v1439
    %1998 = vmatpush1.msra.mxu0 %v1438
    %1999 = vmatprep.subr.mxu0 %v1441
    %2000 = vmatpush1.msra.mxu0 %v1440
    %2001 = vmatprep.subr.mxu0 %v1443
    %2002 = vmatpush1.msra.mxu0 %v1442
    %2003 = vmatprep.subr.mxu0 %v1445
    %2004 = vmatpush1.msra.mxu0 %v1444
    %2005 = vmatprep.subr.mxu0 %v1447
    %2006 = vmatpush1.msra.mxu0 %v1446
    %2007 = vmatprep.subr.mxu0 %v1449
    %2008 = vmatpush1.msra.mxu0 %v1448
    %2009 = vmatprep.subr.mxu0 %v1451
    %2010 = vmatpush1.msra.mxu0 %v1450
    %2011 = vmatprep.subr.mxu0 0.0
    %2012 = vmatpush1.msra.mxu0 0.0
    %2013 = vmatprep.subr.mxu0 0.0
    %2014 = vmatpush1.msra.mxu0 0.0
    %2015 = vmatprep.subr.mxu0 0.0
    %2016 = vmatpush1.msra.mxu0 0.0
    %2017 = vmatprep.subr.mxu0 0.0
    %2018 = vmatpush1.msra.mxu0 0.0
    %2019 = vmatprep.subr.mxu0 0.0
    %2020 = vmatpush1.msra.mxu0 0.0
    %2021 = vmatprep.subr.mxu0 0.0
    %2022 = vmatpush1.msra.mxu0 0.0
    %2023 = vmatprep.subr.mxu0 0.0
    %2024 = vmatpush1.msra.mxu0 0.0
    %2025 = vmatprep.subr.mxu0 0.0
    %2026 = vmatpush1.msra.mxu0 0.0
    %2027 = vmatprep.subr.mxu0 0.0
    %2028 = vmatpush1.msra.mxu0 0.0
    %2029 = vmatprep.subr.mxu0 0.0
    %2030 = vmatpush1.msra.mxu0 0.0
    %2031 = vmatprep.subr.mxu0 0.0
    %2032 = vmatpush1.msra.mxu0 0.0
    %2033 = vmatprep.subr.mxu0 0.0
    %2034 = vmatpush1.msra.mxu0 0.0
    %2035 = vmatprep.subr.mxu0 0.0
    %2036 = vmatpush1.msra.mxu0 0.0
    %2037 = vmatprep.subr.mxu0 0.0
    %2038 = vmatpush1.msra.mxu0 0.0
    %2039 = vmatprep.subr.mxu0 0.0
    %2040 = vmatpush1.msra.mxu0 0.0
    %2041 = vmatprep.subr.mxu0 0.0
    %2042 = vmatpush1.msra.mxu0 0.0
    %2043 = vmatprep.subr.mxu0 0.0
    %2044 = vmatpush1.msra.mxu0 0.0
    %2045 = vmatprep.subr.mxu0 0.0
    %2046 = vmatpush1.msra.mxu0 0.0
    %2047 = vmatprep.subr.mxu0 0.0
    %2048 = vmatpush1.msra.mxu0 0.0
    %2049 = vmatprep.subr.mxu0 0.0
    %2050 = vmatpush1.msra.mxu0 0.0
    %2051 = vmatprep.subr.mxu0 0.0
    %2052 = vmatpush1.msra.mxu0 0.0
    %2053 = vmatprep.subr.mxu0 0.0
    %2054 = vmatpush1.msra.mxu0 0.0
    %2055 = vmatprep.subr.mxu0 0.0
    %2056 = vmatpush1.msra.mxu0 0.0
    %2057 = vmatprep.subr.mxu0 0.0
    %2058 = vmatpush1.msra.mxu0 0.0
    %2059 = vmatprep.mubr.f32.mxu0 0.0
    %2060 = vmatmul.mubr.f32.gmra.mrb[0].mxu0 %v1993
    %v2061 = vpop.f32.mrb[0].mxu0
    %v2062 = vadd.f32 0.0, %v2061
    %v2063 = vpop.f32.mrb[0].mxu0
    %v2064 = vadd.f32 0.0, %v2063
    %2065 = vdwg.mxu0
    %v2068 = vrot.slane %v2062, 6
    %v2069 = vrot.slane %v2064, 6
    %v2072 = vadd.f32 %v1432, %v2068
    %v2073 = vadd.f32 %v1434, %v2069
    %v2074 = vmul.f32 %v2072, 0.5
    %v2075 = vmul.f32 %v2073, 0.5
    %v2076 = vtanh.pop %v2074
    %v2077 = vtanh.pop %v2075
    %v2078 = vmul.f32 %v2076, 0.5
    %v2079 = vmul.f32 %v2077, 0.5
    %v2080 = vadd.f32 %v2078, 0.5
    %v2081 = vadd.f32 %v2079, 0.5
    %v2082 = vtanh.pop %v2073
    %v2084 = vrot.slane %v1985, 6
    %v2086 = vmul.f32 %v2080, %v2084
    %2088 = vrot.lane.b32.xlu0 %v2082, 64
    %v2089 = vpop.permute.xlu0 %2088
    %v2091 = vmul.f32 %v2080, %v2089
    %2093 = vrot.lane.b32.xlu0 %v2091, 64
    %v2094 = vpop.permute.xlu0 %2093
    %v2096 = vadd.f32 %v2086, %v2094
    %v2097 = vtanh.pop %v2096
    %2099 = vrot.lane.b32.xlu0 %v2097, 64
    %v2100 = vpop.permute.xlu0 %2099
    %v2102 = vmul.f32 %v2081, %v2100
    %v2104 = vrot.slane %v2102, 2
    %v2105 = vsel %vm338, %v2104, 0
    %2107 = vmatprep.subr.mxu0 %v1437
    %2108 = vmatpush1.msra.mxu0 %v1436
    %2109 = vmatprep.subr.mxu0 %v1439
    %2110 = vmatpush1.msra.mxu0 %v1438
    %2111 = vmatprep.subr.mxu0 %v1441
    %2112 = vmatpush1.msra.mxu0 %v1440
    %2113 = vmatprep.subr.mxu0 %v1443
    %2114 = vmatpush1.msra.mxu0 %v1442
    %2115 = vmatprep.subr.mxu0 %v1445
    %2116 = vmatpush1.msra.mxu0 %v1444
    %2117 = vmatprep.subr.mxu0 %v1447
    %2118 = vmatpush1.msra.mxu0 %v1446
    %2119 = vmatprep.subr.mxu0 %v1449
    %2120 = vmatpush1.msra.mxu0 %v1448
    %2121 = vmatprep.subr.mxu0 %v1451
    %2122 = vmatpush1.msra.mxu0 %v1450
    %2123 = vmatprep.subr.mxu0 0.0
    %2124 = vmatpush1.msra.mxu0 0.0
    %2125 = vmatprep.subr.mxu0 0.0
    %2126 = vmatpush1.msra.mxu0 0.0
    %2127 = vmatprep.subr.mxu0 0.0
    %2128 = vmatpush1.msra.mxu0 0.0
    %2129 = vmatprep.subr.mxu0 0.0
    %2130 = vmatpush1.msra.mxu0 0.0
    %2131 = vmatprep.subr.mxu0 0.0
    %2132 = vmatpush1.msra.mxu0 0.0
    %2133 = vmatprep.subr.mxu0 0.0
    %2134 = vmatpush1.msra.mxu0 0.0
    %2135 = vmatprep.subr.mxu0 0.0
    %2136 = vmatpush1.msra.mxu0 0.0
    %2137 = vmatprep.subr.mxu0 0.0
    %2138 = vmatpush1.msra.mxu0 0.0
    %2139 = vmatprep.subr.mxu0 0.0
    %2140 = vmatpush1.msra.mxu0 0.0
    %2141 = vmatprep.subr.mxu0 0.0
    %2142 = vmatpush1.msra.mxu0 0.0
    %2143 = vmatprep.subr.mxu0 0.0
    %2144 = vmatpush1.msra.mxu0 0.0
    %2145 = vmatprep.subr.mxu0 0.0
    %2146 = vmatpush1.msra.mxu0 0.0
    %2147 = vmatprep.subr.mxu0 0.0
    %2148 = vmatpush1.msra.mxu0 0.0
    %2149 = vmatprep.subr.mxu0 0.0
    %2150 = vmatpush1.msra.mxu0 0.0
    %2151 = vmatprep.subr.mxu0 0.0
    %2152 = vmatpush1.msra.mxu0 0.0
    %2153 = vmatprep.subr.mxu0 0.0
    %2154 = vmatpush1.msra.mxu0 0.0
    %2155 = vmatprep.subr.mxu0 0.0
    %2156 = vmatpush1.msra.mxu0 0.0
    %2157 = vmatprep.subr.mxu0 0.0
    %2158 = vmatpush1.msra.mxu0 0.0
    %2159 = vmatprep.subr.mxu0 0.0
    %2160 = vmatpush1.msra.mxu0 0.0
    %2161 = vmatprep.subr.mxu0 0.0
    %2162 = vmatpush1.msra.mxu0 0.0
    %2163 = vmatprep.subr.mxu0 0.0
    %2164 = vmatpush1.msra.mxu0 0.0
    %2165 = vmatprep.subr.mxu0 0.0
    %2166 = vmatpush1.msra.mxu0 0.0
    %2167 = vmatprep.subr.mxu0 0.0
    %2168 = vmatpush1.msra.mxu0 0.0
    %2169 = vmatprep.subr.mxu0 0.0
    %2170 = vmatpush1.msra.mxu0 0.0
    %2171 = vmatprep.mubr.f32.mxu0 0.0
    %2172 = vmatmul.mubr.f32.gmra.mrb[0].mxu0 %v2105
    %v2173 = vpop.f32.mrb[0].mxu0
    %v2174 = vadd.f32 0.0, %v2173
    %v2175 = vpop.f32.mrb[0].mxu0
    %v2176 = vadd.f32 0.0, %v2175
    %2177 = vdwg.mxu0
    %v2180 = vrot.slane %v2174, 4
    %v2181 = vrot.slane %v2176, 4
    %v2184 = vadd.f32 %v1432, %v2180
    %v2185 = vadd.f32 %v1434, %v2181
    %v2186 = vmul.f32 %v2184, 0.5
    %v2187 = vmul.f32 %v2185, 0.5
    %v2188 = vtanh.pop %v2186
    %v2189 = vtanh.pop %v2187
    %v2190 = vmul.f32 %v2188, 0.5
    %v2191 = vmul.f32 %v2189, 0.5
    %v2192 = vadd.f32 %v2190, 0.5
    %v2193 = vadd.f32 %v2191, 0.5
    %v2194 = vtanh.pop %v2185
    %v2196 = vrot.slane %v2096, 6
    %v2198 = vmul.f32 %v2192, %v2196
    %2200 = vrot.lane.b32.xlu0 %v2194, 64
    %v2201 = vpop.permute.xlu0 %2200
    %v2203 = vmul.f32 %v2192, %v2201
    %2205 = vrot.lane.b32.xlu0 %v2203, 64
    %v2206 = vpop.permute.xlu0 %2205
    %v2208 = vadd.f32 %v2198, %v2206
    %v2209 = vtanh.pop %v2208
    %2211 = vrot.lane.b32.xlu0 %v2209, 64
    %v2212 = vpop.permute.xlu0 %2211
    %v2214 = vmul.f32 %v2193, %v2212
    %v2216 = vrot.slane %v2214, 4
    %v2217 = vsel %vm338, %v2216, 0
    %2219 = vmatprep.subr.mxu0 %v1437
    %2220 = vmatpush1.msra.mxu0 %v1436
    %2221 = vmatprep.subr.mxu0 %v1439
    %2222 = vmatpush1.msra.mxu0 %v1438
    %2223 = vmatprep.subr.mxu0 %v1441
    %2224 = vmatpush1.msra.mxu0 %v1440
    %2225 = vmatprep.subr.mxu0 %v1443
    %2226 = vmatpush1.msra.mxu0 %v1442
    %2227 = vmatprep.subr.mxu0 %v1445
    %2228 = vmatpush1.msra.mxu0 %v1444
    %2229 = vmatprep.subr.mxu0 %v1447
    %2230 = vmatpush1.msra.mxu0 %v1446
    %2231 = vmatprep.subr.mxu0 %v1449
    %2232 = vmatpush1.msra.mxu0 %v1448
    %2233 = vmatprep.subr.mxu0 %v1451
    %2234 = vmatpush1.msra.mxu0 %v1450
    %2235 = vmatprep.subr.mxu0 0.0
    %2236 = vmatpush1.msra.mxu0 0.0
    %2237 = vmatprep.subr.mxu0 0.0
    %2238 = vmatpush1.msra.mxu0 0.0
    %2239 = vmatprep.subr.mxu0 0.0
    %2240 = vmatpush1.msra.mxu0 0.0
    %2241 = vmatprep.subr.mxu0 0.0
    %2242 = vmatpush1.msra.mxu0 0.0
    %2243 = vmatprep.subr.mxu0 0.0
    %2244 = vmatpush1.msra.mxu0 0.0
    %2245 = vmatprep.subr.mxu0 0.0
    %2246 = vmatpush1.msra.mxu0 0.0
    %2247 = vmatprep.subr.mxu0 0.0
    %2248 = vmatpush1.msra.mxu0 0.0
    %2249 = vmatprep.subr.mxu0 0.0
    %2250 = vmatpush1.msra.mxu0 0.0
    %2251 = vmatprep.subr.mxu0 0.0
    %2252 = vmatpush1.msra.mxu0 0.0
    %2253 = vmatprep.subr.mxu0 0.0
    %2254 = vmatpush1.msra.mxu0 0.0
    %2255 = vmatprep.subr.mxu0 0.0
    %2256 = vmatpush1.msra.mxu0 0.0
    %2257 = vmatprep.subr.mxu0 0.0
    %2258 = vmatpush1.msra.mxu0 0.0
    %2259 = vmatprep.subr.mxu0 0.0
    %2260 = vmatpush1.msra.mxu0 0.0
    %2261 = vmatprep.subr.mxu0 0.0
    %2262 = vmatpush1.msra.mxu0 0.0
    %2263 = vmatprep.subr.mxu0 0.0
    %2264 = vmatpush1.msra.mxu0 0.0
    %2265 = vmatprep.subr.mxu0 0.0
    %2266 = vmatpush1.msra.mxu0 0.0
    %2267 = vmatprep.subr.mxu0 0.0
    %2268 = vmatpush1.msra.mxu0 0.0
    %2269 = vmatprep.subr.mxu0 0.0
    %2270 = vmatpush1.msra.mxu0 0.0
    %2271 = vmatprep.subr.mxu0 0.0
    %2272 = vmatpush1.msra.mxu0 0.0
    %2273 = vmatprep.subr.mxu0 0.0
    %2274 = vmatpush1.msra.mxu0 0.0
    %2275 = vmatprep.subr.mxu0 0.0
    %2276 = vmatpush1.msra.mxu0 0.0
    %2277 = vmatprep.subr.mxu0 0.0
    %2278 = vmatpush1.msra.mxu0 0.0
    %2279 = vmatprep.subr.mxu0 0.0
    %2280 = vmatpush1.msra.mxu0 0.0
    %2281 = vmatprep.subr.mxu0 0.0
    %2282 = vmatpush1.msra.mxu0 0.0
    %2283 = vmatprep.mubr.f32.mxu0 0.0
    %2284 = vmatmul.mubr.f32.gmra.mrb[0].mxu0 %v2217
    %v2285 = vpop.f32.mrb[0].mxu0
    %v2286 = vadd.f32 0.0, %v2285
    %v2287 = vpop.f32.mrb[0].mxu0
    %v2288 = vadd.f32 0.0, %v2287
    %2289 = vdwg.mxu0
    %v2292 = vrot.slane %v2286, 2
    %v2293 = vrot.slane %v2288, 2
    %v2296 = vadd.f32 %v1432, %v2292
    %v2297 = vadd.f32 %v1434, %v2293
    %v2298 = vmul.f32 %v2296, 0.5
    %v2299 = vmul.f32 %v2297, 0.5
    %v2300 = vtanh.pop %v2298
    %v2301 = vtanh.pop %v2299
    %v2302 = vmul.f32 %v2300, 0.5
    %v2303 = vmul.f32 %v2301, 0.5
    %v2304 = vadd.f32 %v2302, 0.5
    %v2305 = vadd.f32 %v2303, 0.5
    %v2306 = vtanh.pop %v2297
    %v2308 = vrot.slane %v2208, 6
    %v2310 = vmul.f32 %v2304, %v2308
    %2312 = vrot.lane.b32.xlu0 %v2306, 64
    %v2313 = vpop.permute.xlu0 %2312
    %v2315 = vmul.f32 %v2304, %v2313
    %2317 = vrot.lane.b32.xlu0 %v2315, 64
    %v2318 = vpop.permute.xlu0 %2317
    %v2320 = vadd.f32 %v2310, %v2318
    %v2321 = vtanh.pop %v2320
    %2323 = vrot.lane.b32.xlu0 %v2321, 64
    %v2324 = vpop.permute.xlu0 %2323
    %v2326 = vmul.f32 %v2305, %v2324
    %v2328 = vrot.slane %v2326, 6
    %2330 = vrot.lane.b32.xlu0 %v2328, 64
    %v2331 = vpop.permute.xlu0 %2330
    %2333 = vrot.lane.b32.xlu0 %v1550, 64
    %v2334 = vpop.permute.xlu0 %2333
    %v2336 = vsel %vm238, %v1550, %v2328
    %v2337 = vsel %vm338, %v2336, %v2331
    %v2338 = vsel %vm1228, %v2337, %v2334
    %v2339 = vrot.slane %v2214, 2
    %2341 = vrot.lane.b32.xlu0 %v2339, 64
    %v2342 = vpop.permute.xlu0 %2341
    %2344 = vrot.lane.b32.xlu0 %v1661, 64
    %v2345 = vpop.permute.xlu0 %2344
    %v2347 = vsel %vm238, %v1661, %v2339
    %v2348 = vsel %vm338, %v2347, %v2342
    %v2349 = vsel %vm1228, %v2348, %v2345
    %v2350 = vrot.slane %v2102, 6
    %2352 = vrot.lane.b32.xlu0 %v2350, 64
    %v2353 = vpop.permute.xlu0 %2352
    %2355 = vrot.lane.b32.xlu0 %v1773, 64
    %v2356 = vpop.permute.xlu0 %2355
    %v2358 = vsel %vm238, %v1773, %v2350
    %v2359 = vsel %vm338, %v2358, %v2353
    %v2360 = vsel %vm1228, %v2359, %v2356
    %v2361 = vrot.slane %v1991, 2
    %2363 = vrot.lane.b32.xlu0 %v2361, 64
    %v2364 = vpop.permute.xlu0 %2363
    %2366 = vrot.lane.b32.xlu0 %v1885, 64
    %v2367 = vpop.permute.xlu0 %2366
    %v2369 = vsel %vm238, %v1885, %v2361
    %v2370 = vsel %vm338, %v2369, %v2364
    %v2371 = vsel %vm1228, %v2370, %v2367
    %2373 = vrot.lane.b32.xlu0 %v1887, 64
    %v2374 = vpop.permute.xlu0 %2373
    %2376 = vrot.lane.b32.xlu0 %v1991, 64
    %v2377 = vpop.permute.xlu0 %2376
    %v2379 = vsel %vm238, %v1991, %v1887
    %v2380 = vsel %vm338, %v2379, %v2374
    %v2381 = vsel %vm1228, %v2380, %v2377
    %v2382 = vrot.slane %v1773, 2
    %2384 = vrot.lane.b32.xlu0 %v2382, 64
    %v2385 = vpop.permute.xlu0 %2384
    %2387 = vrot.lane.b32.xlu0 %v2102, 64
    %v2388 = vpop.permute.xlu0 %2387
    %v2390 = vsel %vm238, %v2102, %v2382
    %v2391 = vsel %vm338, %v2390, %v2385
    %v2392 = vsel %vm1228, %v2391, %v2388
    %v2393 = vrot.slane %v1661, 6
    %2395 = vrot.lane.b32.xlu0 %v2393, 64
    %v2396 = vpop.permute.xlu0 %2395
    %2398 = vrot.lane.b32.xlu0 %v2214, 64
    %v2399 = vpop.permute.xlu0 %2398
    %v2401 = vsel %vm238, %v2214, %v2393
    %v2402 = vsel %vm338, %v2401, %v2396
    %v2403 = vsel %vm1228, %v2402, %v2399
    %v2404 = vrot.slane %v1550, 2
    %2406 = vrot.lane.b32.xlu0 %v2404, 64
    %v2407 = vpop.permute.xlu0 %2406
    %2409 = vrot.lane.b32.xlu0 %v2326, 64
    %v2410 = vpop.permute.xlu0 %2409
    %v2412 = vsel %vm238, %v2326, %v2404
    %v2413 = vsel %vm338, %v2412, %v2407
    %v2414 = vsel %vm1228, %v2413, %v2410
    %v2415 = vsel %vm1306, %v2338, %v2349
    %v2416 = vsel %vm1308, %v2415, %v2360
    %v2417 = vsel %vm1310, %v2416, %v2371
    %v2418 = vsel %vm1306, %v2381, %v2392
    %v2419 = vsel %vm1308, %v2418, %v2403
    %v2420 = vsel %vm1310, %v2419, %v2414
    %v2421 = vld [vmem:[#allocation11] sm:$0xff]
    %v2422 = vld [vmem:[#allocation11 + $0x8] sm:$0xff]
    %v2423 = vld [vmem:[#allocation11 + $0x10] sm:$0xff]
    %v2424 = vld [vmem:[#allocation11 + $0x18] sm:$0xff]
    %v2425 = vld [vmem:[#allocation11 + $0x20] sm:$0xff]
    %v2426 = vld [vmem:[#allocation11 + $0x28] sm:$0xff]
    %v2427 = vld [vmem:[#allocation11 + $0x30] sm:$0xff]
    %v2428 = vld [vmem:[#allocation11 + $0x38] sm:$0xff]
    %v2429 = vld [vmem:[#allocation11 + $0x40] sm:$0xff]
    %v2430 = vld [vmem:[#allocation11 + $0x48] sm:$0xff]
    %v2431 = vld [vmem:[#allocation11 + $0x50] sm:$0xff]
    %v2432 = vld [vmem:[#allocation11 + $0x58] sm:$0xff]
    %v2433 = vld [vmem:[#allocation11 + $0x60] sm:$0xff]
    %v2434 = vld [vmem:[#allocation11 + $0x68] sm:$0xff]
    %v2435 = vld [vmem:[#allocation11 + $0x70] sm:$0xff]
    %v2436 = vld [vmem:[#allocation11 + $0x78] sm:$0xff]
    %v2437 = vld [vmem:[#allocation11 + $0x80] sm:$0xff]
    %v2438 = vld [vmem:[#allocation11 + $0x88] sm:$0xff]
    %v2439 = vld [vmem:[#allocation11 + $0x90] sm:$0xff]
    %v2440 = vld [vmem:[#allocation11 + $0x98] sm:$0xff]
    %v2441 = vld [vmem:[#allocation11 + $0xa0] sm:$0xff]
    %v2442 = vld [vmem:[#allocation11 + $0xa8] sm:$0xff]
    %v2443 = vld [vmem:[#allocation11 + $0xb0] sm:$0xff]
    %v2444 = vld [vmem:[#allocation11 + $0xb8] sm:$0xff]
    %v2445 = vld [vmem:[#allocation11 + $0xc0] sm:$0xff]
    %v2446 = vld [vmem:[#allocation11 + $0xc8] sm:$0xff]
    %v2447 = vld [vmem:[#allocation11 + $0xd0] sm:$0xff]
    %v2448 = vld [vmem:[#allocation11 + $0xd8] sm:$0xff]
    %v2449 = vld [vmem:[#allocation11 + $0xe0] sm:$0xff]
    %v2450 = vld [vmem:[#allocation11 + $0xe8] sm:$0xff]
    %v2451 = vld [vmem:[#allocation11 + $0xf0] sm:$0xff]
    %v2452 = vld [vmem:[#allocation11 + $0xf8] sm:$0xff]
    %v2453 = vld [vmem:[#allocation13] sm:$0x3]
    %v2455 = vlaneseq
    %v2456 = vshrl.u32 %v2455, 7
    %v2457 = vsub.s32 0, %v2456
    %v2458 = vrot.slane %v2453, %v2457
    %v2459 = vlaneseq
    %v2460 = vshrl.u32 %v2459, 7
    %v2461 = vsub.s32 1, %v2460
    %v2462 = vrot.slane %v2453, %v2461
    %2465 = vmatprep.subr.mxu0 %v2422
    %2466 = vmatpush1.msra.mxu0 %v2421
    %2467 = vmatprep.subr.mxu0 %v2424
    %2468 = vmatpush1.msra.mxu0 %v2423
    %2469 = vmatprep.subr.mxu0 %v2426
    %2470 = vmatpush1.msra.mxu0 %v2425
    %2471 = vmatprep.subr.mxu0 %v2428
    %2472 = vmatpush1.msra.mxu0 %v2427
    %2473 = vmatprep.subr.mxu0 %v2430
    %2474 = vmatpush1.msra.mxu0 %v2429
    %2475 = vmatprep.subr.mxu0 %v2432
    %2476 = vmatpush1.msra.mxu0 %v2431
    %2477 = vmatprep.subr.mxu0 %v2434
    %2478 = vmatpush1.msra.mxu0 %v2433
    %2479 = vmatprep.subr.mxu0 %v2436
    %2480 = vmatpush1.msra.mxu0 %v2435
    %2481 = vmatprep.subr.mxu0 %v2438
    %2482 = vmatpush1.msra.mxu0 %v2437
    %2483 = vmatprep.subr.mxu0 %v2440
    %2484 = vmatpush1.msra.mxu0 %v2439
    %2485 = vmatprep.subr.mxu0 %v2442
    %2486 = vmatpush1.msra.mxu0 %v2441
    %2487 = vmatprep.subr.mxu0 %v2444
    %2488 = vmatpush1.msra.mxu0 %v2443
    %2489 = vmatprep.subr.mxu0 %v2446
    %2490 = vmatpush1.msra.mxu0 %v2445
    %2491 = vmatprep.subr.mxu0 %v2448
    %2492 = vmatpush1.msra.mxu0 %v2447
    %2493 = vmatprep.subr.mxu0 %v2450
    %2494 = vmatpush1.msra.mxu0 %v2449
    %2495 = vmatprep.subr.mxu0 %v2452
    %2496 = vmatpush1.msra.mxu0 %v2451
    %2497 = vmatprep.subr.mxu0 0.0
    %2498 = vmatpush1.msra.mxu0 0.0
    %2499 = vmatprep.subr.mxu0 0.0
    %2500 = vmatpush1.msra.mxu0 0.0
    %2501 = vmatprep.subr.mxu0 0.0
    %2502 = vmatpush1.msra.mxu0 0.0
    %2503 = vmatprep.subr.mxu0 0.0
    %2504 = vmatpush1.msra.mxu0 0.0
    %2505 = vmatprep.subr.mxu0 0.0
    %2506 = vmatpush1.msra.mxu0 0.0
    %2507 = vmatprep.subr.mxu0 0.0
    %2508 = vmatpush1.msra.mxu0 0.0
    %2509 = vmatprep.subr.mxu0 0.0
    %2510 = vmatpush1.msra.mxu0 0.0
    %2511 = vmatprep.subr.mxu0 0.0
    %2512 = vmatpush1.msra.mxu0 0.0
    %2513 = vmatprep.subr.mxu0 0.0
    %2514 = vmatpush1.msra.mxu0 0.0
    %2515 = vmatprep.subr.mxu0 0.0
    %2516 = vmatpush1.msra.mxu0 0.0
    %2517 = vmatprep.subr.mxu0 0.0
    %2518 = vmatpush1.msra.mxu0 0.0
    %2519 = vmatprep.subr.mxu0 0.0
    %2520 = vmatpush1.msra.mxu0 0.0
    %2521 = vmatprep.subr.mxu0 0.0
    %2522 = vmatpush1.msra.mxu0 0.0
    %2523 = vmatprep.subr.mxu0 0.0
    %2524 = vmatpush1.msra.mxu0 0.0
    %2525 = vmatprep.subr.mxu0 0.0
    %2526 = vmatpush1.msra.mxu0 0.0
    %2527 = vmatprep.subr.mxu0 0.0
    %2528 = vmatpush1.msra.mxu0 0.0
    %2529 = vmatprep.mubr.f32.mxu0 0.0
    %2530 = vmatmul.mubr.f32.gmra.mrb[0].mxu0 %v2417
    %v2531 = vpop.f32.mrb[0].mxu0
    %v2532 = vadd.f32 %v2458, %v2531
    %v2533 = vpop.f32.mrb[0].mxu0
    %v2534 = vadd.f32 %v2462, %v2533
    %2535 = vmatprep.mubr.f32.mxu0 0.0
    %2536 = vmatmul.mubr.f32.gmra.mrb[0].mxu0 %v2420
    %v2537 = vpop.f32.mrb[0].mxu0
    %v2538 = vadd.f32 %v2458, %v2537
    %v2539 = vpop.f32.mrb[0].mxu0
    %v2540 = vadd.f32 %v2462, %v2539
    %2541 = vdwg.mxu0
    %v2542 = vld [vmem:[#allocation14] sm:$0xff]
    %v2543 = vld [vmem:[#allocation14 + $0x8] sm:$0xff]
    %v2544 = vld [vmem:[#allocation14 + $0x10] sm:$0xff]
    %v2545 = vld [vmem:[#allocation14 + $0x18] sm:$0xff]
    %v2546 = vld [vmem:[#allocation14 + $0x20] sm:$0xff]
    %v2547 = vld [vmem:[#allocation14 + $0x28] sm:$0xff]
    %v2548 = vld [vmem:[#allocation14 + $0x30] sm:$0xff]
    %v2549 = vld [vmem:[#allocation14 + $0x38] sm:$0xff]
    %v2550 = vld [vmem:[#allocation14 + $0x40] sm:$0xff]
    %v2551 = vld [vmem:[#allocation14 + $0x48] sm:$0xff]
    %v2552 = vld [vmem:[#allocation14 + $0x50] sm:$0xff]
    %v2553 = vld [vmem:[#allocation14 + $0x58] sm:$0xff]
    %v2554 = vld [vmem:[#allocation14 + $0x60] sm:$0xff]
    %v2555 = vld [vmem:[#allocation14 + $0x68] sm:$0xff]
    %v2556 = vld [vmem:[#allocation14 + $0x70] sm:$0xff]
    %v2557 = vld [vmem:[#allocation14 + $0x78] sm:$0xff]
    %2558 = vmatprep.subr.mxu0 %v2543
    %2559 = vmatpush1.msra.mxu0 %v2542
    %2560 = vmatprep.subr.mxu0 %v2545
    %2561 = vmatpush1.msra.mxu0 %v2544
    %2562 = vmatprep.subr.mxu0 %v2547
    %2563 = vmatpush1.msra.mxu0 %v2546
    %2564 = vmatprep.subr.mxu0 %v2549
    %2565 = vmatpush1.msra.mxu0 %v2548
    %2566 = vmatprep.subr.mxu0 %v2551
    %2567 = vmatpush1.msra.mxu0 %v2550
    %2568 = vmatprep.subr.mxu0 %v2553
    %2569 = vmatpush1.msra.mxu0 %v2552
    %2570 = vmatprep.subr.mxu0 %v2555
    %2571 = vmatpush1.msra.mxu0 %v2554
    %2572 = vmatprep.subr.mxu0 %v2557
    %2573 = vmatpush1.msra.mxu0 %v2556
    %2574 = vmatprep.subr.mxu0 0.0
    %2575 = vmatpush1.msra.mxu0 0.0
    %2576 = vmatprep.subr.mxu0 0.0
    %2577 = vmatpush1.msra.mxu0 0.0
    %2578 = vmatprep.subr.mxu0 0.0
    %2579 = vmatpush1.msra.mxu0 0.0
    %2580 = vmatprep.subr.mxu0 0.0
    %2581 = vmatpush1.msra.mxu0 0.0
    %2582 = vmatprep.subr.mxu0 0.0
    %2583 = vmatpush1.msra.mxu0 0.0
    %2584 = vmatprep.subr.mxu0 0.0
    %2585 = vmatpush1.msra.mxu0 0.0
    %2586 = vmatprep.subr.mxu0 0.0
    %2587 = vmatpush1.msra.mxu0 0.0
    %2588 = vmatprep.subr.mxu0 0.0
    %2589 = vmatpush1.msra.mxu0 0.0
    %2590 = vmatprep.subr.mxu0 0.0
    %2591 = vmatpush1.msra.mxu0 0.0
    %2592 = vmatprep.subr.mxu0 0.0
    %2593 = vmatpush1.msra.mxu0 0.0
    %2594 = vmatprep.subr.mxu0 0.0
    %2595 = vmatpush1.msra.mxu0 0.0
    %2596 = vmatprep.subr.mxu0 0.0
    %2597 = vmatpush1.msra.mxu0 0.0
    %2598 = vmatprep.subr.mxu0 0.0
    %2599 = vmatpush1.msra.mxu0 0.0
    %2600 = vmatprep.subr.mxu0 0.0
    %2601 = vmatpush1.msra.mxu0 0.0
    %2602 = vmatprep.subr.mxu0 0.0
    %2603 = vmatpush1.msra.mxu0 0.0
    %2604 = vmatprep.subr.mxu0 0.0
    %2605 = vmatpush1.msra.mxu0 0.0
    %2606 = vmatprep.subr.mxu0 0.0
    %2607 = vmatpush1.msra.mxu0 0.0
    %2608 = vmatprep.subr.mxu0 0.0
    %2609 = vmatpush1.msra.mxu0 0.0
    %2610 = vmatprep.subr.mxu0 0.0
    %2611 = vmatpush1.msra.mxu0 0.0
    %2612 = vmatprep.subr.mxu0 0.0
    %2613 = vmatpush1.msra.mxu0 0.0
    %2614 = vmatprep.subr.mxu0 0.0
    %2615 = vmatpush1.msra.mxu0 0.0
    %2616 = vmatprep.subr.mxu0 0.0
    %2617 = vmatpush1.msra.mxu0 0.0
    %2618 = vmatprep.subr.mxu0 0.0
    %2619 = vmatpush1.msra.mxu0 0.0
    %2620 = vmatprep.subr.mxu0 0.0
    %2621 = vmatpush1.msra.mxu0 0.0
    %2622 = vmatprep.mubr.f32.mxu0 0.0
    %2623 = vmatmul.mubr.f32.gmra.mrb[0].mxu0 %v340
    %v2624 = vpop.f32.mrb[0].mxu0
    %v2625 = vadd.f32 0.0, %v2624
    %v2626 = vpop.f32.mrb[0].mxu0
    %v2627 = vadd.f32 0.0, %v2626
    %2628 = vdwg.mxu0
    %v2629 = vadd.f32 %v2532, %v2625
    %v2630 = vadd.f32 %v2534, %v2627
    %v2631 = vmul.f32 %v2629, 0.5
    %v2632 = vmul.f32 %v2630, 0.5
    %v2633 = vtanh.pop %v2631
    %v2634 = vtanh.pop %v2632
    %v2635 = vmul.f32 %v2633, 0.5
    %v2636 = vmul.f32 %v2634, 0.5
    %v2637 = vadd.f32 %v2635, 0.5
    %v2638 = vadd.f32 %v2636, 0.5
    %v2639 = vtanh.pop %v2630
    %v2640 = vmul.f32 %v2637, 0.0
    %2642 = vrot.lane.b32.xlu0 %v2639, 64
    %v2643 = vpop.permute.xlu0 %2642
    %v2645 = vmul.f32 %v2637, %v2643
    %2647 = vrot.lane.b32.xlu0 %v2645, 64
    %v2648 = vpop.permute.xlu0 %2647
    %v2650 = vadd.f32 %v2640, %v2648
    %v2651 = vtanh.pop %v2650
    %2653 = vrot.lane.b32.xlu0 %v2651, 64
    %v2654 = vpop.permute.xlu0 %2653
    %v2656 = vmul.f32 %v2638, %v2654
    %v2658 = vsel %vm338, %v2656, 0
    %2660 = vmatprep.subr.mxu0 %v2543
    %2661 = vmatpush1.msra.mxu0 %v2542
    %2662 = vmatprep.subr.mxu0 %v2545
    %2663 = vmatpush1.msra.mxu0 %v2544
    %2664 = vmatprep.subr.mxu0 %v2547
    %2665 = vmatpush1.msra.mxu0 %v2546
    %2666 = vmatprep.subr.mxu0 %v2549
    %2667 = vmatpush1.msra.mxu0 %v2548
    %2668 = vmatprep.subr.mxu0 %v2551
    %2669 = vmatpush1.msra.mxu0 %v2550
    %2670 = vmatprep.subr.mxu0 %v2553
    %2671 = vmatpush1.msra.mxu0 %v2552
    %2672 = vmatprep.subr.mxu0 %v2555
    %2673 = vmatpush1.msra.mxu0 %v2554
    %2674 = vmatprep.subr.mxu0 %v2557
    %2675 = vmatpush1.msra.mxu0 %v2556
    %2676 = vmatprep.subr.mxu0 0.0
    %2677 = vmatpush1.msra.mxu0 0.0
    %2678 = vmatprep.subr.mxu0 0.0
    %2679 = vmatpush1.msra.mxu0 0.0
    %2680 = vmatprep.subr.mxu0 0.0
    %2681 = vmatpush1.msra.mxu0 0.0
    %2682 = vmatprep.subr.mxu0 0.0
    %2683 = vmatpush1.msra.mxu0 0.0
    %2684 = vmatprep.subr.mxu0 0.0
    %2685 = vmatpush1.msra.mxu0 0.0
    %2686 = vmatprep.subr.mxu0 0.0
    %2687 = vmatpush1.msra.mxu0 0.0
    %2688 = vmatprep.subr.mxu0 0.0
    %2689 = vmatpush1.msra.mxu0 0.0
    %2690 = vmatprep.subr.mxu0 0.0
    %2691 = vmatpush1.msra.mxu0 0.0
    %2692 = vmatprep.subr.mxu0 0.0
    %2693 = vmatpush1.msra.mxu0 0.0
    %2694 = vmatprep.subr.mxu0 0.0
    %2695 = vmatpush1.msra.mxu0 0.0
    %2696 = vmatprep.subr.mxu0 0.0
    %2697 = vmatpush1.msra.mxu0 0.0
    %2698 = vmatprep.subr.mxu0 0.0
    %2699 = vmatpush1.msra.mxu0 0.0
    %2700 = vmatprep.subr.mxu0 0.0
    %2701 = vmatpush1.msra.mxu0 0.0
    %2702 = vmatprep.subr.mxu0 0.0
    %2703 = vmatpush1.msra.mxu0 0.0
    %2704 = vmatprep.subr.mxu0 0.0
    %2705 = vmatpush1.msra.mxu0 0.0
    %2706 = vmatprep.subr.mxu0 0.0
    %2707 = vmatpush1.msra.mxu0 0.0
    %2708 = vmatprep.subr.mxu0 0.0
    %2709 = vmatpush1.msra.mxu0 0.0
    %2710 = vmatprep.subr.mxu0 0.0
    %2711 = vmatpush1.msra.mxu0 0.0
    %2712 = vmatprep.subr.mxu0 0.0
    %2713 = vmatpush1.msra.mxu0 0.0
    %2714 = vmatprep.subr.mxu0 0.0
    %2715 = vmatpush1.msra.mxu0 0.0
    %2716 = vmatprep.subr.mxu0 0.0
    %2717 = vmatpush1.msra.mxu0 0.0
    %2718 = vmatprep.subr.mxu0 0.0
    %2719 = vmatpush1.msra.mxu0 0.0
    %2720 = vmatprep.subr.mxu0 0.0
    %2721 = vmatpush1.msra.mxu0 0.0
    %2722 = vmatprep.subr.mxu0 0.0
    %2723 = vmatpush1.msra.mxu0 0.0
    %2724 = vmatprep.mubr.f32.mxu0 0.0
    %2725 = vmatmul.mubr.f32.gmra.mrb[0].mxu0 %v2658
    %v2726 = vpop.f32.mrb[0].mxu0
    %v2727 = vadd.f32 0.0, %v2726
    %v2728 = vpop.f32.mrb[0].mxu0
    %v2729 = vadd.f32 0.0, %v2728
    %2730 = vdwg.mxu0
    %v2733 = vrot.slane %v2727, 6
    %v2734 = vrot.slane %v2729, 6
    %v2737 = vadd.f32 %v2532, %v2733
    %v2738 = vadd.f32 %v2534, %v2734
    %v2739 = vmul.f32 %v2737, 0.5
    %v2740 = vmul.f32 %v2738, 0.5
    %v2741 = vtanh.pop %v2739
    %v2742 = vtanh.pop %v2740
    %v2743 = vmul.f32 %v2741, 0.5
    %v2744 = vmul.f32 %v2742, 0.5
    %v2745 = vadd.f32 %v2743, 0.5
    %v2746 = vadd.f32 %v2744, 0.5
    %v2747 = vtanh.pop %v2738
    %v2749 = vrot.slane %v2650, 6
    %v2751 = vmul.f32 %v2745, %v2749
    %2753 = vrot.lane.b32.xlu0 %v2747, 64
    %v2754 = vpop.permute.xlu0 %2753
    %v2756 = vmul.f32 %v2745, %v2754
    %2758 = vrot.lane.b32.xlu0 %v2756, 64
    %v2759 = vpop.permute.xlu0 %2758
    %v2761 = vadd.f32 %v2751, %v2759
    %v2762 = vtanh.pop %v2761
    %2764 = vrot.lane.b32.xlu0 %v2762, 64
    %v2765 = vpop.permute.xlu0 %2764
    %v2767 = vmul.f32 %v2746, %v2765
    %v2769 = vrot.slane %v2767, 2
    %v2770 = vsel %vm338, %v2769, 0
    %2772 = vmatprep.subr.mxu0 %v2543
    %2773 = vmatpush1.msra.mxu0 %v2542
    %2774 = vmatprep.subr.mxu0 %v2545
    %2775 = vmatpush1.msra.mxu0 %v2544
    %2776 = vmatprep.subr.mxu0 %v2547
    %2777 = vmatpush1.msra.mxu0 %v2546
    %2778 = vmatprep.subr.mxu0 %v2549
    %2779 = vmatpush1.msra.mxu0 %v2548
    %2780 = vmatprep.subr.mxu0 %v2551
    %2781 = vmatpush1.msra.mxu0 %v2550
    %2782 = vmatprep.subr.mxu0 %v2553
    %2783 = vmatpush1.msra.mxu0 %v2552
    %2784 = vmatprep.subr.mxu0 %v2555
    %2785 = vmatpush1.msra.mxu0 %v2554
    %2786 = vmatprep.subr.mxu0 %v2557
    %2787 = vmatpush1.msra.mxu0 %v2556
    %2788 = vmatprep.subr.mxu0 0.0
    %2789 = vmatpush1.msra.mxu0 0.0
    %2790 = vmatprep.subr.mxu0 0.0
    %2791 = vmatpush1.msra.mxu0 0.0
    %2792 = vmatprep.subr.mxu0 0.0
    %2793 = vmatpush1.msra.mxu0 0.0
    %2794 = vmatprep.subr.mxu0 0.0
    %2795 = vmatpush1.msra.mxu0 0.0
    %2796 = vmatprep.subr.mxu0 0.0
    %2797 = vmatpush1.msra.mxu0 0.0
    %2798 = vmatprep.subr.mxu0 0.0
    %2799 = vmatpush1.msra.mxu0 0.0
    %2800 = vmatprep.subr.mxu0 0.0
    %2801 = vmatpush1.msra.mxu0 0.0
    %2802 = vmatprep.subr.mxu0 0.0
    %2803 = vmatpush1.msra.mxu0 0.0
    %2804 = vmatprep.subr.mxu0 0.0
    %2805 = vmatpush1.msra.mxu0 0.0
    %2806 = vmatprep.subr.mxu0 0.0
    %2807 = vmatpush1.msra.mxu0 0.0
    %2808 = vmatprep.subr.mxu0 0.0
    %2809 = vmatpush1.msra.mxu0 0.0
    %2810 = vmatprep.subr.mxu0 0.0
    %2811 = vmatpush1.msra.mxu0 0.0
    %2812 = vmatprep.subr.mxu0 0.0
    %2813 = vmatpush1.msra.mxu0 0.0
    %2814 = vmatprep.subr.mxu0 0.0
    %2815 = vmatpush1.msra.mxu0 0.0
    %2816 = vmatprep.subr.mxu0 0.0
    %2817 = vmatpush1.msra.mxu0 0.0
    %2818 = vmatprep.subr.mxu0 0.0
    %2819 = vmatpush1.msra.mxu0 0.0
    %2820 = vmatprep.subr.mxu0 0.0
    %2821 = vmatpush1.msra.mxu0 0.0
    %2822 = vmatprep.subr.mxu0 0.0
    %2823 = vmatpush1.msra.mxu0 0.0
    %2824 = vmatprep.subr.mxu0 0.0
    %2825 = vmatpush1.msra.mxu0 0.0
    %2826 = vmatprep.subr.mxu0 0.0
    %2827 = vmatpush1.msra.mxu0 0.0
    %2828 = vmatprep.subr.mxu0 0.0
    %2829 = vmatpush1.msra.mxu0 0.0
    %2830 = vmatprep.subr.mxu0 0.0
    %2831 = vmatpush1.msra.mxu0 0.0
    %2832 = vmatprep.subr.mxu0 0.0
    %2833 = vmatpush1.msra.mxu0 0.0
    %2834 = vmatprep.subr.mxu0 0.0
    %2835 = vmatpush1.msra.mxu0 0.0
    %2836 = vmatprep.mubr.f32.mxu0 0.0
    %2837 = vmatmul.mubr.f32.gmra.mrb[0].mxu0 %v2770
    %v2838 = vpop.f32.mrb[0].mxu0
    %v2839 = vadd.f32 0.0, %v2838
    %v2840 = vpop.f32.mrb[0].mxu0
    %v2841 = vadd.f32 0.0, %v2840
    %2842 = vdwg.mxu0
    %v2845 = vrot.slane %v2839, 4
    %v2846 = vrot.slane %v2841, 4
    %v2849 = vadd.f32 %v2532, %v2845
    %v2850 = vadd.f32 %v2534, %v2846
    %v2851 = vmul.f32 %v2849, 0.5
    %v2852 = vmul.f32 %v2850, 0.5
    %v2853 = vtanh.pop %v2851
    %v2854 = vtanh.pop %v2852
    %v2855 = vmul.f32 %v2853, 0.5
    %v2856 = vmul.f32 %v2854, 0.5
    %v2857 = vadd.f32 %v2855, 0.5
    %v2858 = vadd.f32 %v2856, 0.5
    %v2859 = vtanh.pop %v2850
    %v2861 = vrot.slane %v2761, 6
    %v2863 = vmul.f32 %v2857, %v2861
    %2865 = vrot.lane.b32.xlu0 %v2859, 64
    %v2866 = vpop.permute.xlu0 %2865
    %v2868 = vmul.f32 %v2857, %v2866
    %2870 = vrot.lane.b32.xlu0 %v2868, 64
    %v2871 = vpop.permute.xlu0 %2870
    %v2873 = vadd.f32 %v2863, %v2871
    %v2874 = vtanh.pop %v2873
    %2876 = vrot.lane.b32.xlu0 %v2874, 64
    %v2877 = vpop.permute.xlu0 %2876
    %v2879 = vmul.f32 %v2858, %v2877
    %v2881 = vrot.slane %v2879, 4
    %v2882 = vsel %vm338, %v2881, 0
    %2884 = vmatprep.subr.mxu0 %v2543
    %2885 = vmatpush1.msra.mxu0 %v2542
    %2886 = vmatprep.subr.mxu0 %v2545
    %2887 = vmatpush1.msra.mxu0 %v2544
    %2888 = vmatprep.subr.mxu0 %v2547
    %2889 = vmatpush1.msra.mxu0 %v2546
    %2890 = vmatprep.subr.mxu0 %v2549
    %2891 = vmatpush1.msra.mxu0 %v2548
    %2892 = vmatprep.subr.mxu0 %v2551
    %2893 = vmatpush1.msra.mxu0 %v2550
    %2894 = vmatprep.subr.mxu0 %v2553
    %2895 = vmatpush1.msra.mxu0 %v2552
    %2896 = vmatprep.subr.mxu0 %v2555
    %2897 = vmatpush1.msra.mxu0 %v2554
    %2898 = vmatprep.subr.mxu0 %v2557
    %2899 = vmatpush1.msra.mxu0 %v2556
    %2900 = vmatprep.subr.mxu0 0.0
    %2901 = vmatpush1.msra.mxu0 0.0
    %2902 = vmatprep.subr.mxu0 0.0
    %2903 = vmatpush1.msra.mxu0 0.0
    %2904 = vmatprep.subr.mxu0 0.0
    %2905 = vmatpush1.msra.mxu0 0.0
    %2906 = vmatprep.subr.mxu0 0.0
    %2907 = vmatpush1.msra.mxu0 0.0
    %2908 = vmatprep.subr.mxu0 0.0
    %2909 = vmatpush1.msra.mxu0 0.0
    %2910 = vmatprep.subr.mxu0 0.0
    %2911 = vmatpush1.msra.mxu0 0.0
    %2912 = vmatprep.subr.mxu0 0.0
    %2913 = vmatpush1.msra.mxu0 0.0
    %2914 = vmatprep.subr.mxu0 0.0
    %2915 = vmatpush1.msra.mxu0 0.0
    %2916 = vmatprep.subr.mxu0 0.0
    %2917 = vmatpush1.msra.mxu0 0.0
    %2918 = vmatprep.subr.mxu0 0.0
    %2919 = vmatpush1.msra.mxu0 0.0
    %2920 = vmatprep.subr.mxu0 0.0
    %2921 = vmatpush1.msra.mxu0 0.0
    %2922 = vmatprep.subr.mxu0 0.0
    %2923 = vmatpush1.msra.mxu0 0.0
    %2924 = vmatprep.subr.mxu0 0.0
    %2925 = vmatpush1.msra.mxu0 0.0
    %2926 = vmatprep.subr.mxu0 0.0
    %2927 = vmatpush1.msra.mxu0 0.0
    %2928 = vmatprep.subr.mxu0 0.0
    %2929 = vmatpush1.msra.mxu0 0.0
    %2930 = vmatprep.subr.mxu0 0.0
    %2931 = vmatpush1.msra.mxu0 0.0
    %2932 = vmatprep.subr.mxu0 0.0
    %2933 = vmatpush1.msra.mxu0 0.0
    %2934 = vmatprep.subr.mxu0 0.0
    %2935 = vmatpush1.msra.mxu0 0.0
    %2936 = vmatprep.subr.mxu0 0.0
    %2937 = vmatpush1.msra.mxu0 0.0
    %2938 = vmatprep.subr.mxu0 0.0
    %2939 = vmatpush1.msra.mxu0 0.0
    %2940 = vmatprep.subr.mxu0 0.0
    %2941 = vmatpush1.msra.mxu0 0.0
    %2942 = vmatprep.subr.mxu0 0.0
    %2943 = vmatpush1.msra.mxu0 0.0
    %2944 = vmatprep.subr.mxu0 0.0
    %2945 = vmatpush1.msra.mxu0 0.0
    %2946 = vmatprep.subr.mxu0 0.0
    %2947 = vmatpush1.msra.mxu0 0.0
    %2948 = vmatprep.mubr.f32.mxu0 0.0
    %2949 = vmatmul.mubr.f32.gmra.mrb[0].mxu0 %v2882
    %v2950 = vpop.f32.mrb[0].mxu0
    %v2951 = vadd.f32 0.0, %v2950
    %v2952 = vpop.f32.mrb[0].mxu0
    %v2953 = vadd.f32 0.0, %v2952
    %2954 = vdwg.mxu0
    %v2957 = vrot.slane %v2951, 2
    %v2958 = vrot.slane %v2953, 2
    %v2961 = vadd.f32 %v2532, %v2957
    %v2962 = vadd.f32 %v2534, %v2958
    %v2963 = vmul.f32 %v2961, 0.5
    %v2964 = vmul.f32 %v2962, 0.5
    %v2965 = vtanh.pop %v2963
    %v2966 = vtanh.pop %v2964
    %v2967 = vmul.f32 %v2965, 0.5
    %v2968 = vmul.f32 %v2966, 0.5
    %v2969 = vadd.f32 %v2967, 0.5
    %v2970 = vadd.f32 %v2968, 0.5
    %v2971 = vtanh.pop %v2962
    %v2973 = vrot.slane %v2873, 6
    %v2975 = vmul.f32 %v2969, %v2973
    %2977 = vrot.lane.b32.xlu0 %v2971, 64
    %v2978 = vpop.permute.xlu0 %2977
    %v2980 = vmul.f32 %v2969, %v2978
    %2982 = vrot.lane.b32.xlu0 %v2980, 64
    %v2983 = vpop.permute.xlu0 %2982
    %v2985 = vadd.f32 %v2975, %v2983
    %v2986 = vtanh.pop %v2985
    %2988 = vrot.lane.b32.xlu0 %v2986, 64
    %v2989 = vpop.permute.xlu0 %2988
    %v2991 = vmul.f32 %v2970, %v2989
    %v2993 = vrot.slane %v2991, 6
    %v2994 = vsel %vm338, %v2993, 0
    %2996 = vmatprep.subr.mxu0 %v2543
    %2997 = vmatpush1.msra.mxu0 %v2542
    %2998 = vmatprep.subr.mxu0 %v2545
    %2999 = vmatpush1.msra.mxu0 %v2544
    %3000 = vmatprep.subr.mxu0 %v2547
    %3001 = vmatpush1.msra.mxu0 %v2546
    %3002 = vmatprep.subr.mxu0 %v2549
    %3003 = vmatpush1.msra.mxu0 %v2548
    %3004 = vmatprep.subr.mxu0 %v2551
    %3005 = vmatpush1.msra.mxu0 %v2550
    %3006 = vmatprep.subr.mxu0 %v2553
    %3007 = vmatpush1.msra.mxu0 %v2552
    %3008 = vmatprep.subr.mxu0 %v2555
    %3009 = vmatpush1.msra.mxu0 %v2554
    %3010 = vmatprep.subr.mxu0 %v2557
    %3011 = vmatpush1.msra.mxu0 %v2556
    %3012 = vmatprep.subr.mxu0 0.0
    %3013 = vmatpush1.msra.mxu0 0.0
    %3014 = vmatprep.subr.mxu0 0.0
    %3015 = vmatpush1.msra.mxu0 0.0
    %3016 = vmatprep.subr.mxu0 0.0
    %3017 = vmatpush1.msra.mxu0 0.0
    %3018 = vmatprep.subr.mxu0 0.0
    %3019 = vmatpush1.msra.mxu0 0.0
    %3020 = vmatprep.subr.mxu0 0.0
    %3021 = vmatpush1.msra.mxu0 0.0
    %3022 = vmatprep.subr.mxu0 0.0
    %3023 = vmatpush1.msra.mxu0 0.0
    %3024 = vmatprep.subr.mxu0 0.0
    %3025 = vmatpush1.msra.mxu0 0.0
    %3026 = vmatprep.subr.mxu0 0.0
    %3027 = vmatpush1.msra.mxu0 0.0
    %3028 = vmatprep.subr.mxu0 0.0
    %3029 = vmatpush1.msra.mxu0 0.0
    %3030 = vmatprep.subr.mxu0 0.0
    %3031 = vmatpush1.msra.mxu0 0.0
    %3032 = vmatprep.subr.mxu0 0.0
    %3033 = vmatpush1.msra.mxu0 0.0
    %3034 = vmatprep.subr.mxu0 0.0
    %3035 = vmatpush1.msra.mxu0 0.0
    %3036 = vmatprep.subr.mxu0 0.0
    %3037 = vmatpush1.msra.mxu0 0.0
    %3038 = vmatprep.subr.mxu0 0.0
    %3039 = vmatpush1.msra.mxu0 0.0
    %3040 = vmatprep.subr.mxu0 0.0
    %3041 = vmatpush1.msra.mxu0 0.0
    %3042 = vmatprep.subr.mxu0 0.0
    %3043 = vmatpush1.msra.mxu0 0.0
    %3044 = vmatprep.subr.mxu0 0.0
    %3045 = vmatpush1.msra.mxu0 0.0
    %3046 = vmatprep.subr.mxu0 0.0
    %3047 = vmatpush1.msra.mxu0 0.0
    %3048 = vmatprep.subr.mxu0 0.0
    %3049 = vmatpush1.msra.mxu0 0.0
    %3050 = vmatprep.subr.mxu0 0.0
    %3051 = vmatpush1.msra.mxu0 0.0
    %3052 = vmatprep.subr.mxu0 0.0
    %3053 = vmatpush1.msra.mxu0 0.0
    %3054 = vmatprep.subr.mxu0 0.0
    %3055 = vmatpush1.msra.mxu0 0.0
    %3056 = vmatprep.subr.mxu0 0.0
    %3057 = vmatpush1.msra.mxu0 0.0
    %3058 = vmatprep.subr.mxu0 0.0
    %3059 = vmatpush1.msra.mxu0 0.0
    %3060 = vmatprep.mubr.f32.mxu0 0.0
    %3061 = vmatmul.mubr.f32.gmra.mrb[0].mxu0 %v2994
    %v3062 = vpop.f32.mrb[0].mxu0
    %v3063 = vadd.f32 0.0, %v3062
    %v3064 = vpop.f32.mrb[0].mxu0
    %v3065 = vadd.f32 0.0, %v3064
    %3066 = vdwg.mxu0
    %v3067 = vadd.f32 %v2538, %v3063
    %v3068 = vadd.f32 %v2540, %v3065
    %v3069 = vmul.f32 %v3067, 0.5
    %v3070 = vmul.f32 %v3068, 0.5
    %v3071 = vtanh.pop %v3069
    %v3072 = vtanh.pop %v3070
    %v3073 = vmul.f32 %v3071, 0.5
    %v3074 = vmul.f32 %v3072, 0.5
    %v3075 = vadd.f32 %v3073, 0.5
    %v3076 = vadd.f32 %v3074, 0.5
    %v3077 = vtanh.pop %v3068
    %v3079 = vrot.slane %v2985, 6
    %v3081 = vmul.f32 %v3075, %v3079
    %3083 = vrot.lane.b32.xlu0 %v3077, 64
    %v3084 = vpop.permute.xlu0 %3083
    %v3086 = vmul.f32 %v3075, %v3084
    %3088 = vrot.lane.b32.xlu0 %v3086, 64
    %v3089 = vpop.permute.xlu0 %3088
    %v3091 = vadd.f32 %v3081, %v3089
    %v3092 = vtanh.pop %v3091
    %3094 = vrot.lane.b32.xlu0 %v3092, 64
    %v3095 = vpop.permute.xlu0 %3094
    %v3097 = vmul.f32 %v3076, %v3095
    %v3099 = vsel %vm338, %v3097, 0
    %3101 = vmatprep.subr.mxu0 %v2543
    %3102 = vmatpush1.msra.mxu0 %v2542
    %3103 = vmatprep.subr.mxu0 %v2545
    %3104 = vmatpush1.msra.mxu0 %v2544
    %3105 = vmatprep.subr.mxu0 %v2547
    %3106 = vmatpush1.msra.mxu0 %v2546
    %3107 = vmatprep.subr.mxu0 %v2549
    %3108 = vmatpush1.msra.mxu0 %v2548
    %3109 = vmatprep.subr.mxu0 %v2551
    %3110 = vmatpush1.msra.mxu0 %v2550
    %3111 = vmatprep.subr.mxu0 %v2553
    %3112 = vmatpush1.msra.mxu0 %v2552
    %3113 = vmatprep.subr.mxu0 %v2555
    %3114 = vmatpush1.msra.mxu0 %v2554
    %3115 = vmatprep.subr.mxu0 %v2557
    %3116 = vmatpush1.msra.mxu0 %v2556
    %3117 = vmatprep.subr.mxu0 0.0
    %3118 = vmatpush1.msra.mxu0 0.0
    %3119 = vmatprep.subr.mxu0 0.0
    %3120 = vmatpush1.msra.mxu0 0.0
    %3121 = vmatprep.subr.mxu0 0.0
    %3122 = vmatpush1.msra.mxu0 0.0
    %3123 = vmatprep.subr.mxu0 0.0
    %3124 = vmatpush1.msra.mxu0 0.0
    %3125 = vmatprep.subr.mxu0 0.0
    %3126 = vmatpush1.msra.mxu0 0.0
    %3127 = vmatprep.subr.mxu0 0.0
    %3128 = vmatpush1.msra.mxu0 0.0
    %3129 = vmatprep.subr.mxu0 0.0
    %3130 = vmatpush1.msra.mxu0 0.0
    %3131 = vmatprep.subr.mxu0 0.0
    %3132 = vmatpush1.msra.mxu0 0.0
    %3133 = vmatprep.subr.mxu0 0.0
    %3134 = vmatpush1.msra.mxu0 0.0
    %3135 = vmatprep.subr.mxu0 0.0
    %3136 = vmatpush1.msra.mxu0 0.0
    %3137 = vmatprep.subr.mxu0 0.0
    %3138 = vmatpush1.msra.mxu0 0.0
    %3139 = vmatprep.subr.mxu0 0.0
    %3140 = vmatpush1.msra.mxu0 0.0
    %3141 = vmatprep.subr.mxu0 0.0
    %3142 = vmatpush1.msra.mxu0 0.0
    %3143 = vmatprep.subr.mxu0 0.0
    %3144 = vmatpush1.msra.mxu0 0.0
    %3145 = vmatprep.subr.mxu0 0.0
    %3146 = vmatpush1.msra.mxu0 0.0
    %3147 = vmatprep.subr.mxu0 0.0
    %3148 = vmatpush1.msra.mxu0 0.0
    %3149 = vmatprep.subr.mxu0 0.0
    %3150 = vmatpush1.msra.mxu0 0.0
    %3151 = vmatprep.subr.mxu0 0.0
    %3152 = vmatpush1.msra.mxu0 0.0
    %3153 = vmatprep.subr.mxu0 0.0
    %3154 = vmatpush1.msra.mxu0 0.0
    %3155 = vmatprep.subr.mxu0 0.0
    %3156 = vmatpush1.msra.mxu0 0.0
    %3157 = vmatprep.subr.mxu0 0.0
    %3158 = vmatpush1.msra.mxu0 0.0
    %3159 = vmatprep.subr.mxu0 0.0
    %3160 = vmatpush1.msra.mxu0 0.0
    %3161 = vmatprep.subr.mxu0 0.0
    %3162 = vmatpush1.msra.mxu0 0.0
    %3163 = vmatprep.subr.mxu0 0.0
    %3164 = vmatpush1.msra.mxu0 0.0
    %3165 = vmatprep.mubr.f32.mxu0 0.0
    %3166 = vmatmul.mubr.f32.gmra.mrb[0].mxu0 %v3099
    %v3167 = vpop.f32.mrb[0].mxu0
    %v3168 = vadd.f32 0.0, %v3167
    %v3169 = vpop.f32.mrb[0].mxu0
    %v3170 = vadd.f32 0.0, %v3169
    %3171 = vdwg.mxu0
    %v3174 = vrot.slane %v3168, 6
    %v3175 = vrot.slane %v3170, 6
    %v3178 = vadd.f32 %v2538, %v3174
    %v3179 = vadd.f32 %v2540, %v3175
    %v3180 = vmul.f32 %v3178, 0.5
    %v3181 = vmul.f32 %v3179, 0.5
    %v3182 = vtanh.pop %v3180
    %v3183 = vtanh.pop %v3181
    %v3184 = vmul.f32 %v3182, 0.5
    %v3185 = vmul.f32 %v3183, 0.5
    %v3186 = vadd.f32 %v3184, 0.5
    %v3187 = vadd.f32 %v3185, 0.5
    %v3188 = vtanh.pop %v3179
    %v3190 = vrot.slane %v3091, 6
    %v3192 = vmul.f32 %v3186, %v3190
    %3194 = vrot.lane.b32.xlu0 %v3188, 64
    %v3195 = vpop.permute.xlu0 %3194
    %v3197 = vmul.f32 %v3186, %v3195
    %3199 = vrot.lane.b32.xlu0 %v3197, 64
    %v3200 = vpop.permute.xlu0 %3199
    %v3202 = vadd.f32 %v3192, %v3200
    %v3203 = vtanh.pop %v3202
    %3205 = vrot.lane.b32.xlu0 %v3203, 64
    %v3206 = vpop.permute.xlu0 %3205
    %v3208 = vmul.f32 %v3187, %v3206
    %v3210 = vrot.slane %v3208, 2
    %v3211 = vsel %vm338, %v3210, 0
    %3213 = vmatprep.subr.mxu0 %v2543
    %3214 = vmatpush1.msra.mxu0 %v2542
    %3215 = vmatprep.subr.mxu0 %v2545
    %3216 = vmatpush1.msra.mxu0 %v2544
    %3217 = vmatprep.subr.mxu0 %v2547
    %3218 = vmatpush1.msra.mxu0 %v2546
    %3219 = vmatprep.subr.mxu0 %v2549
    %3220 = vmatpush1.msra.mxu0 %v2548
    %3221 = vmatprep.subr.mxu0 %v2551
    %3222 = vmatpush1.msra.mxu0 %v2550
    %3223 = vmatprep.subr.mxu0 %v2553
    %3224 = vmatpush1.msra.mxu0 %v2552
    %3225 = vmatprep.subr.mxu0 %v2555
    %3226 = vmatpush1.msra.mxu0 %v2554
    %3227 = vmatprep.subr.mxu0 %v2557
    %3228 = vmatpush1.msra.mxu0 %v2556
    %3229 = vmatprep.subr.mxu0 0.0
    %3230 = vmatpush1.msra.mxu0 0.0
    %3231 = vmatprep.subr.mxu0 0.0
    %3232 = vmatpush1.msra.mxu0 0.0
    %3233 = vmatprep.subr.mxu0 0.0
    %3234 = vmatpush1.msra.mxu0 0.0
    %3235 = vmatprep.subr.mxu0 0.0
    %3236 = vmatpush1.msra.mxu0 0.0
    %3237 = vmatprep.subr.mxu0 0.0
    %3238 = vmatpush1.msra.mxu0 0.0
    %3239 = vmatprep.subr.mxu0 0.0
    %3240 = vmatpush1.msra.mxu0 0.0
    %3241 = vmatprep.subr.mxu0 0.0
    %3242 = vmatpush1.msra.mxu0 0.0
    %3243 = vmatprep.subr.mxu0 0.0
    %3244 = vmatpush1.msra.mxu0 0.0
    %3245 = vmatprep.subr.mxu0 0.0
    %3246 = vmatpush1.msra.mxu0 0.0
    %3247 = vmatprep.subr.mxu0 0.0
    %3248 = vmatpush1.msra.mxu0 0.0
    %3249 = vmatprep.subr.mxu0 0.0
    %3250 = vmatpush1.msra.mxu0 0.0
    %3251 = vmatprep.subr.mxu0 0.0
    %3252 = vmatpush1.msra.mxu0 0.0
    %3253 = vmatprep.subr.mxu0 0.0
    %3254 = vmatpush1.msra.mxu0 0.0
    %3255 = vmatprep.subr.mxu0 0.0
    %3256 = vmatpush1.msra.mxu0 0.0
    %3257 = vmatprep.subr.mxu0 0.0
    %3258 = vmatpush1.msra.mxu0 0.0
    %3259 = vmatprep.subr.mxu0 0.0
    %3260 = vmatpush1.msra.mxu0 0.0
    %3261 = vmatprep.subr.mxu0 0.0
    %3262 = vmatpush1.msra.mxu0 0.0
    %3263 = vmatprep.subr.mxu0 0.0
    %3264 = vmatpush1.msra.mxu0 0.0
    %3265 = vmatprep.subr.mxu0 0.0
    %3266 = vmatpush1.msra.mxu0 0.0
    %3267 = vmatprep.subr.mxu0 0.0
    %3268 = vmatpush1.msra.mxu0 0.0
    %3269 = vmatprep.subr.mxu0 0.0
    %3270 = vmatpush1.msra.mxu0 0.0
    %3271 = vmatprep.subr.mxu0 0.0
    %3272 = vmatpush1.msra.mxu0 0.0
    %3273 = vmatprep.subr.mxu0 0.0
    %3274 = vmatpush1.msra.mxu0 0.0
    %3275 = vmatprep.subr.mxu0 0.0
    %3276 = vmatpush1.msra.mxu0 0.0
    %3277 = vmatprep.mubr.f32.mxu0 0.0
    %3278 = vmatmul.mubr.f32.gmra.mrb[0].mxu0 %v3211
    %v3279 = vpop.f32.mrb[0].mxu0
    %v3280 = vadd.f32 0.0, %v3279
    %v3281 = vpop.f32.mrb[0].mxu0
    %v3282 = vadd.f32 0.0, %v3281
    %3283 = vdwg.mxu0
    %v3286 = vrot.slane %v3280, 4
    %v3287 = vrot.slane %v3282, 4
    %v3290 = vadd.f32 %v2538, %v3286
    %v3291 = vadd.f32 %v2540, %v3287
    %v3292 = vmul.f32 %v3290, 0.5
    %v3293 = vmul.f32 %v3291, 0.5
    %v3294 = vtanh.pop %v3292
    %v3295 = vtanh.pop %v3293
    %v3296 = vmul.f32 %v3294, 0.5
    %v3297 = vmul.f32 %v3295, 0.5
    %v3298 = vadd.f32 %v3296, 0.5
    %v3299 = vadd.f32 %v3297, 0.5
    %v3300 = vtanh.pop %v3291
    %v3302 = vrot.slane %v3202, 6
    %v3304 = vmul.f32 %v3298, %v3302
    %3306 = vrot.lane.b32.xlu0 %v3300, 64
    %v3307 = vpop.permute.xlu0 %3306
    %v3309 = vmul.f32 %v3298, %v3307
    %3311 = vrot.lane.b32.xlu0 %v3309, 64
    %v3312 = vpop.permute.xlu0 %3311
    %v3314 = vadd.f32 %v3304, %v3312
    %v3315 = vtanh.pop %v3314
    %3317 = vrot.lane.b32.xlu0 %v3315, 64
    %v3318 = vpop.permute.xlu0 %3317
    %v3320 = vmul.f32 %v3299, %v3318
    %v3322 = vrot.slane %v3320, 4
    %v3323 = vsel %vm338, %v3322, 0
    %3325 = vmatprep.subr.mxu0 %v2543
    %3326 = vmatpush1.msra.mxu0 %v2542
    %3327 = vmatprep.subr.mxu0 %v2545
    %3328 = vmatpush1.msra.mxu0 %v2544
    %3329 = vmatprep.subr.mxu0 %v2547
    %3330 = vmatpush1.msra.mxu0 %v2546
    %3331 = vmatprep.subr.mxu0 %v2549
    %3332 = vmatpush1.msra.mxu0 %v2548
    %3333 = vmatprep.subr.mxu0 %v2551
    %3334 = vmatpush1.msra.mxu0 %v2550
    %3335 = vmatprep.subr.mxu0 %v2553
    %3336 = vmatpush1.msra.mxu0 %v2552
    %3337 = vmatprep.subr.mxu0 %v2555
    %3338 = vmatpush1.msra.mxu0 %v2554
    %3339 = vmatprep.subr.mxu0 %v2557
    %3340 = vmatpush1.msra.mxu0 %v2556
    %3341 = vmatprep.subr.mxu0 0.0
    %3342 = vmatpush1.msra.mxu0 0.0
    %3343 = vmatprep.subr.mxu0 0.0
    %3344 = vmatpush1.msra.mxu0 0.0
    %3345 = vmatprep.subr.mxu0 0.0
    %3346 = vmatpush1.msra.mxu0 0.0
    %3347 = vmatprep.subr.mxu0 0.0
    %3348 = vmatpush1.msra.mxu0 0.0
    %3349 = vmatprep.subr.mxu0 0.0
    %3350 = vmatpush1.msra.mxu0 0.0
    %3351 = vmatprep.subr.mxu0 0.0
    %3352 = vmatpush1.msra.mxu0 0.0
    %3353 = vmatprep.subr.mxu0 0.0
    %3354 = vmatpush1.msra.mxu0 0.0
    %3355 = vmatprep.subr.mxu0 0.0
    %3356 = vmatpush1.msra.mxu0 0.0
    %3357 = vmatprep.subr.mxu0 0.0
    %3358 = vmatpush1.msra.mxu0 0.0
    %3359 = vmatprep.subr.mxu0 0.0
    %3360 = vmatpush1.msra.mxu0 0.0
    %3361 = vmatprep.subr.mxu0 0.0
    %3362 = vmatpush1.msra.mxu0 0.0
    %3363 = vmatprep.subr.mxu0 0.0
    %3364 = vmatpush1.msra.mxu0 0.0
    %3365 = vmatprep.subr.mxu0 0.0
    %3366 = vmatpush1.msra.mxu0 0.0
    %3367 = vmatprep.subr.mxu0 0.0
    %3368 = vmatpush1.msra.mxu0 0.0
    %3369 = vmatprep.subr.mxu0 0.0
    %3370 = vmatpush1.msra.mxu0 0.0
    %3371 = vmatprep.subr.mxu0 0.0
    %3372 = vmatpush1.msra.mxu0 0.0
    %3373 = vmatprep.subr.mxu0 0.0
    %3374 = vmatpush1.msra.mxu0 0.0
    %3375 = vmatprep.subr.mxu0 0.0
    %3376 = vmatpush1.msra.mxu0 0.0
    %3377 = vmatprep.subr.mxu0 0.0
    %3378 = vmatpush1.msra.mxu0 0.0
    %3379 = vmatprep.subr.mxu0 0.0
    %3380 = vmatpush1.msra.mxu0 0.0
    %3381 = vmatprep.subr.mxu0 0.0
    %3382 = vmatpush1.msra.mxu0 0.0
    %3383 = vmatprep.subr.mxu0 0.0
    %3384 = vmatpush1.msra.mxu0 0.0
    %3385 = vmatprep.subr.mxu0 0.0
    %3386 = vmatpush1.msra.mxu0 0.0
    %3387 = vmatprep.subr.mxu0 0.0
    %3388 = vmatpush1.msra.mxu0 0.0
    %3389 = vmatprep.mubr.f32.mxu0 0.0
    %3390 = vmatmul.mubr.f32.gmra.mrb[0].mxu0 %v3323
    %v3391 = vpop.f32.mrb[0].mxu0
    %v3392 = vadd.f32 0.0, %v3391
    %v3393 = vpop.f32.mrb[0].mxu0
    %v3394 = vadd.f32 0.0, %v3393
    %3395 = vdwg.mxu0
    %v3398 = vrot.slane %v3392, 2
    %v3399 = vrot.slane %v3394, 2
    %v3402 = vadd.f32 %v2538, %v3398
    %v3403 = vadd.f32 %v2540, %v3399
    %v3404 = vmul.f32 %v3402, 0.5
    %v3405 = vmul.f32 %v3403, 0.5
    %v3406 = vtanh.pop %v3404
    %v3407 = vtanh.pop %v3405
    %v3408 = vmul.f32 %v3406, 0.5
    %v3409 = vmul.f32 %v3407, 0.5
    %v3410 = vadd.f32 %v3408, 0.5
    %v3411 = vadd.f32 %v3409, 0.5
    %v3412 = vtanh.pop %v3403
    %v3414 = vrot.slane %v3314, 6
    %v3416 = vmul.f32 %v3410, %v3414
    %3418 = vrot.lane.b32.xlu0 %v3412, 64
    %v3419 = vpop.permute.xlu0 %3418
    %v3421 = vmul.f32 %v3410, %v3419
    %3423 = vrot.lane.b32.xlu0 %v3421, 64
    %v3424 = vpop.permute.xlu0 %3423
    %v3426 = vadd.f32 %v3416, %v3424
    %v3427 = vtanh.pop %v3426
    %3429 = vrot.lane.b32.xlu0 %v3427, 64
    %v3430 = vpop.permute.xlu0 %3429
    %v3432 = vmul.f32 %v3411, %v3430
    %v3434 = vrot.slane %v3432, 6
    %vm3436 = vcmask 517120
    %v3437 = vsel %vm3436, %v3434, 0.0
    %v3438 = vrot.slane %v3437, 4
    %v3439 = vadd.f32 %v3437, %v3438
    %v3440 = vrot.slane %v3439, 2
    %v3441 = vadd.f32 %v3439, %v3440
    %v3442 = vrot.slane %v3441, 1
    %v3443 = vadd.f32 %v3441, %v3442
    %v3444 = vrcp.pop 2.0
    %v3445 = vmul.f32 %v3443, %v3444
    %v3446 = vsub.f32 %v3432, %v3445
    %v3447 = vmul.f32 %v3446, %v3446
    %v3449 = vrot.slane %v3447, 6
    %v3451 = vsel %vm3436, %v3449, 0.0
    %v3452 = vrot.slane %v3451, 4
    %v3453 = vadd.f32 %v3451, %v3452
    %v3454 = vrot.slane %v3453, 2
    %v3455 = vadd.f32 %v3453, %v3454
    %v3456 = vrot.slane %v3455, 1
    %v3457 = vadd.f32 %v3455, %v3456
    %v3458 = vmul.f32 %v3457, %v3444
    %v3459 = vadd.f32 %v3458, 1e-05
    %v3460 = vrsqrt.pop %v3459
    %v3461 = vmul.f32 %v3446, %v3460
    %v3462 = vld [vmem:[#allocation16] sm:$0x1]
    %v3464 = vlaneseq
    %v3465 = vshrl.u32 %v3464, 7
    %v3466 = vsub.s32 0, %v3465
    %v3467 = vrot.slane %v3462, %v3466
    %v3469 = vmul.f32 %v3461, %v3467
    %v3470 = vld [vmem:[#allocation17] sm:$0x1]
    %v3472 = vlaneseq
    %v3473 = vshrl.u32 %v3472, 7
    %v3474 = vsub.s32 0, %v3473
    %v3475 = vrot.slane %v3470, %v3474
    %v3477 = vadd.f32 %v3469, %v3475
    %v3478 = vld [vmem:[#allocation19] sm:$0xff]
    %v3479 = vld [vmem:[#allocation19 + $0x8] sm:$0xff]
    %v3480 = vld [vmem:[#allocation19 + $0x10] sm:$0xff]
    %v3481 = vld [vmem:[#allocation19 + $0x18] sm:$0xff]
    %v3482 = vld [vmem:[#allocation19 + $0x20] sm:$0xff]
    %v3483 = vld [vmem:[#allocation19 + $0x28] sm:$0xff]
    %v3484 = vld [vmem:[#allocation19 + $0x30] sm:$0xff]
    %v3485 = vld [vmem:[#allocation19 + $0x38] sm:$0xff]
    %v3486 = vld [vmem:[#allocation20] sm:$0x1]
    %v3488 = vlaneseq
    %v3489 = vshrl.u32 %v3488, 7
    %v3490 = vsub.s32 0, %v3489
    %v3491 = vrot.slane %v3486, %v3490
    %v3494 = vrot.slane %v3477, 6
    %v3495 = vsel %vm338, %v3494, 0
    %3497 = vmatprep.subr.mxu0 0.0
    %3498 = vmatpush1.msra.mxu0 %v3478
    %3499 = vmatprep.subr.mxu0 0.0
    %3500 = vmatpush1.msra.mxu0 %v3479
    %3501 = vmatprep.subr.mxu0 0.0
    %3502 = vmatpush1.msra.mxu0 %v3480
    %3503 = vmatprep.subr.mxu0 0.0
    %3504 = vmatpush1.msra.mxu0 %v3481
    %3505 = vmatprep.subr.mxu0 0.0
    %3506 = vmatpush1.msra.mxu0 %v3482
    %3507 = vmatprep.subr.mxu0 0.0
    %3508 = vmatpush1.msra.mxu0 %v3483
    %3509 = vmatprep.subr.mxu0 0.0
    %3510 = vmatpush1.msra.mxu0 %v3484
    %3511 = vmatprep.subr.mxu0 0.0
    %3512 = vmatpush1.msra.mxu0 %v3485
    %3513 = vmatprep.subr.mxu0 0.0
    %3514 = vmatpush1.msra.mxu0 0.0
    %3515 = vmatprep.subr.mxu0 0.0
    %3516 = vmatpush1.msra.mxu0 0.0
    %3517 = vmatprep.subr.mxu0 0.0
    %3518 = vmatpush1.msra.mxu0 0.0
    %3519 = vmatprep.subr.mxu0 0.0
    %3520 = vmatpush1.msra.mxu0 0.0
    %3521 = vmatprep.subr.mxu0 0.0
    %3522 = vmatpush1.msra.mxu0 0.0
    %3523 = vmatprep.subr.mxu0 0.0
    %3524 = vmatpush1.msra.mxu0 0.0
    %3525 = vmatprep.subr.mxu0 0.0
    %3526 = vmatpush1.msra.mxu0 0.0
    %3527 = vmatprep.subr.mxu0 0.0
    %3528 = vmatpush1.msra.mxu0 0.0
    %3529 = vmatprep.subr.mxu0 0.0
    %3530 = vmatpush1.msra.mxu0 0.0
    %3531 = vmatprep.subr.mxu0 0.0
    %3532 = vmatpush1.msra.mxu0 0.0
    %3533 = vmatprep.subr.mxu0 0.0
    %3534 = vmatpush1.msra.mxu0 0.0
    %3535 = vmatprep.subr.mxu0 0.0
    %3536 = vmatpush1.msra.mxu0 0.0
    %3537 = vmatprep.subr.mxu0 0.0
    %3538 = vmatpush1.msra.mxu0 0.0
    %3539 = vmatprep.subr.mxu0 0.0
    %3540 = vmatpush1.msra.mxu0 0.0
    %3541 = vmatprep.subr.mxu0 0.0
    %3542 = vmatpush1.msra.mxu0 0.0
    %3543 = vmatprep.subr.mxu0 0.0
    %3544 = vmatpush1.msra.mxu0 0.0
    %3545 = vmatprep.subr.mxu0 0.0
    %3546 = vmatpush1.msra.mxu0 0.0
    %3547 = vmatprep.subr.mxu0 0.0
    %3548 = vmatpush1.msra.mxu0 0.0
    %3549 = vmatprep.subr.mxu0 0.0
    %3550 = vmatpush1.msra.mxu0 0.0
    %3551 = vmatprep.subr.mxu0 0.0
    %3552 = vmatpush1.msra.mxu0 0.0
    %3553 = vmatprep.subr.mxu0 0.0
    %3554 = vmatpush1.msra.mxu0 0.0
    %3555 = vmatprep.subr.mxu0 0.0
    %3556 = vmatpush1.msra.mxu0 0.0
    %3557 = vmatprep.subr.mxu0 0.0
    %3558 = vmatpush1.msra.mxu0 0.0
    %3559 = vmatprep.subr.mxu0 0.0
    %3560 = vmatpush1.msra.mxu0 0.0
    %3561 = vmatprep.mubr.f32.mxu0 0.0
    %3562 = vmatmul.mubr.f32.gmra.mrb[0].mxu0 %v3495
    %v3563 = vpop.f32.mrb[0].mxu0
    %v3564 = vadd.f32 %v3491, %v3563
    %v3565 = vpop.f32.mrb[0].mxu0
    %3566 = vdwg.mxu0
    %v3567 = vtanh.pop %v3564
    %v3568 = vld [vmem:[%s14] sm:$0xff]
    %v3569 = vld [vmem:[%s14 + $0x8] sm:$0xff]
    %v3570 = vld [vmem:[%s14 + $0x10] sm:$0xff]
    %v3571 = vld [vmem:[%s14 + $0x18] sm:$0xff]
    %v3572 = vld [vmem:[%s14 + $0x20] sm:$0xff]
    %v3573 = vld [vmem:[%s14 + $0x28] sm:$0xff]
    %v3574 = vld [vmem:[%s14 + $0x30] sm:$0xff]
    %v3575 = vld [vmem:[%s14 + $0x38] sm:$0xff]
    %v3576 = vld [vmem:[#allocation22] sm:$0x1]
    %v3578 = vlaneseq
    %v3579 = vshrl.u32 %v3578, 7
    %v3580 = vsub.s32 0, %v3579
    %v3581 = vrot.slane %v3576, %v3580
    %v3584 = vsel %vm338, %v3567, 0
    %3586 = vmatprep.subr.mxu0 0.0
    %3587 = vmatpush1.msra.mxu0 %v3568
    %3588 = vmatprep.subr.mxu0 0.0
    %3589 = vmatpush1.msra.mxu0 %v3569
    %3590 = vmatprep.subr.mxu0 0.0
    %3591 = vmatpush1.msra.mxu0 %v3570
    %3592 = vmatprep.subr.mxu0 0.0
    %3593 = vmatpush1.msra.mxu0 %v3571
    %3594 = vmatprep.subr.mxu0 0.0
    %3595 = vmatpush1.msra.mxu0 %v3572
    %3596 = vmatprep.subr.mxu0 0.0
    %3597 = vmatpush1.msra.mxu0 %v3573
    %3598 = vmatprep.subr.mxu0 0.0
    %3599 = vmatpush1.msra.mxu0 %v3574
    %3600 = vmatprep.subr.mxu0 0.0
    %3601 = vmatpush1.msra.mxu0 %v3575
    %3602 = vmatprep.subr.mxu0 0.0
    %3603 = vmatpush1.msra.mxu0 0.0
    %3604 = vmatprep.subr.mxu0 0.0
    %3605 = vmatpush1.msra.mxu0 0.0
    %3606 = vmatprep.subr.mxu0 0.0
    %3607 = vmatpush1.msra.mxu0 0.0
    %3608 = vmatprep.subr.mxu0 0.0
    %3609 = vmatpush1.msra.mxu0 0.0
    %3610 = vmatprep.subr.mxu0 0.0
    %3611 = vmatpush1.msra.mxu0 0.0
    %3612 = vmatprep.subr.mxu0 0.0
    %3613 = vmatpush1.msra.mxu0 0.0
    %3614 = vmatprep.subr.mxu0 0.0
    %3615 = vmatpush1.msra.mxu0 0.0
    %3616 = vmatprep.subr.mxu0 0.0
    %3617 = vmatpush1.msra.mxu0 0.0
    %3618 = vmatprep.subr.mxu0 0.0
    %3619 = vmatpush1.msra.mxu0 0.0
    %3620 = vmatprep.subr.mxu0 0.0
    %3621 = vmatpush1.msra.mxu0 0.0
    %3622 = vmatprep.subr.mxu0 0.0
    %3623 = vmatpush1.msra.mxu0 0.0
    %3624 = vmatprep.subr.mxu0 0.0
    %3625 = vmatpush1.msra.mxu0 0.0
    %3626 = vmatprep.subr.mxu0 0.0
    %3627 = vmatpush1.msra.mxu0 0.0
    %3628 = vmatprep.subr.mxu0 0.0
    %3629 = vmatpush1.msra.mxu0 0.0
    %3630 = vmatprep.subr.mxu0 0.0
    %3631 = vmatpush1.msra.mxu0 0.0
    %3632 = vmatprep.subr.mxu0 0.0
    %3633 = vmatpush1.msra.mxu0 0.0
    %3634 = vmatprep.subr.mxu0 0.0
    %3635 = vmatpush1.msra.mxu0 0.0
    %3636 = vmatprep.subr.mxu0 0.0
    %3637 = vmatpush1.msra.mxu0 0.0
    %3638 = vmatprep.subr.mxu0 0.0
    %3639 = vmatpush1.msra.mxu0 0.0
    %3640 = vmatprep.subr.mxu0 0.0
    %3641 = vmatpush1.msra.mxu0 0.0
    %3642 = vmatprep.subr.mxu0 0.0
    %3643 = vmatpush1.msra.mxu0 0.0
    %3644 = vmatprep.subr.mxu0 0.0
    %3645 = vmatpush1.msra.mxu0 0.0
    %3646 = vmatprep.subr.mxu0 0.0
    %3647 = vmatpush1.msra.mxu0 0.0
    %3648 = vmatprep.subr.mxu0 0.0
    %3649 = vmatpush1.msra.mxu0 0.0
    %3650 = vmatprep.mubr.f32.mxu0 0.0
    %3651 = vmatmul.mubr.f32.gmra.mrb[0].mxu0 %v3584
    %v3652 = vpop.f32.mrb[0].mxu0
    %v3653 = vadd.f32 %v3581, %v3652
    %v3654 = vpop.f32.mrb[0].mxu0
    %3655 = vdwg.mxu0
    %vm3656 = vcmask 58368
    %v3657 = vsel %vm3656, %v3653, -inf
    %3658 = vmax.xlane.f32.xlu0 %v3657
    %v3659 = vpop.xlane.xlu0 %3658
    %v3660 = vsub.f32 %v3653, %v3659
    %v3661 = vmul.f32 %v3660, 1.442695
    %v3662 = vpow.pop %v3661
    %v3663 = vsel %vm3656, %v3662, 0.0
    %3664 = vadd.xlane.f32.xlu0 %v3663
    %v3665 = vpop.xlane.xlu0 %3664
    %v3666 = vrcp.pop %v3665
    %v3667 = vmul.f32 %v3662, %v3666
    %3668 = vst.msk [vmem:[#allocation23] sm:$0x3] %vm3656, %v3667
    // Predicated region
    $region118: #{intent_detection_forward.1} parent=1 // pred_check
      _
    $region119: #{intent_detection_forward.1} parent=1 // pred_check_branch
      %3670 = sbr.rel (0) target = $region121
    $region120: #{intent_detection_forward.1} parent=1 // pred_region
      %s3672 = ssub.s32 32, 32
      %3673 = vsyncadd [#allocation4], %s3672
      %s3675 = sshll.u32 [#allocation23], 4
      %s3676 = int_to_ptr.vmem [resolvable:$true] %s3675
      %3678 = dma.vmem_to_hbm [thread:$0]  %s3676, 32, %s16, [#allocation4]
    $region121: #{intent_detection_forward.1} parent=1 // pred_fallthru
      _
    // Predicated region
    $region122: #{intent_detection_forward.1} parent=1 // pred_check
      _
    $region123: #{intent_detection_forward.1} parent=1 // pred_check_branch
      %3680 = sbr.rel (0) target = $region125
    $region124: #{intent_detection_forward.1} parent=1 // pred_region
      %3681 = dma.done [#allocation4], 32
    $region125: #{intent_detection_forward.1} parent=1 // pred_fallthru
      _
    %3682 = vsyncpa [#allocation3], 1
    %3683 = vsyncpa [#allocation6], 1
    %3684 = vsyncpa [#allocation9], 1
    %3685 = vsyncpa [#allocation12], 1
    %3686 = vsyncpa [#allocation15], 1
    %3687 = vsyncpa [#allocation18], 1
    %3688 = vsyncpa [#allocation21], 1
    %3689 = vsyncpa [#allocation4], 1

</llo_original>
